<compile_context>
chip_gen: v5e
topology: v5e:2x2
jax: 0.10.0
libtpu: 0.0.40
codegen_flags: <defaults>
</compile_context>

<pallas_src>
import functools

import jax
import jax.numpy as jnp
from jax import lax
from jax.experimental import pallas as pl
from jax.experimental.pallas import tpu as pltpu

HIDDEN = 64                  # hidden_dim in the reference script
NUM_HEADS = 4
HEAD_DIM = HIDDEN // NUM_HEADS
NUM_LAYERS = 3
DIM_FF = 2048                # nn.TransformerEncoderLayer default dim_feedforward
OUT_DIM = 128                # ogbg-molpcba num_tasks
PE_DIM = 10
WALK_LEN = 10
LN_EPS = 1e-5


# ---------------------------------------------------------------------------
# helpers used inside the kernel
# ---------------------------------------------------------------------------
def _mlp2(x, w1, b1, w2, b2):
    # bf16 weights, f32 accumulation; activations stay f32 for the VPU ReLU/add.
    h = jnp.maximum(jnp.dot(x.astype(jnp.bfloat16), w1,
                            preferred_element_type=jnp.float32) + b1, 0.0)
    return jnp.dot(h.astype(jnp.bfloat16), w2,
                   preferred_element_type=jnp.float32) + b2


def _layernorm(x, gamma, beta):
    # one-pass biased variance (matches torch LN), single rsqrt
    mu = jnp.mean(x, axis=-1, keepdims=True)
    var = jnp.mean(x * x, axis=-1, keepdims=True) - mu * mu
    return (x - mu) * lax.rsqrt(var + LN_EPS) * gamma + beta


# ---------------------------------------------------------------------------
# fused kernel: grid axis = transformer layer; front encodings on l==0,
# pooling + fc_out on l==last; activation [N,HIDDEN] persists in VMEM scratch.
# ---------------------------------------------------------------------------
def fused_kernel(atom_ref, pe2_ref, rwse_ref, pool_ref,
                 sw1, sb1, sw2, sb2,
                 rw1, rb1, rw2, rb2,
                 wqkv, bqkv, wo, bo,
                 g1, be1, wff1, bff1, wff2, bff2, g2, be2,
                 wout, bout,
                 out_ref, x_ref):
    l = pl.program_id(0)
    n = atom_ref.shape[0]

    # --- front: SignNet(pe)+SignNet(-pe) in one stacked pass + RWSE MLP (l==0) ---
    @pl.when(l == 0)
    def _():
        sign2 = _mlp2(pe2_ref[...], sw1[...], sb1[...], sw2[...], sb2[...])  # [2N, H]
        rwse_out = _mlp2(rwse_ref[...], rw1[...], rb1[...], rw2[...], rb2[...])
        x_ref[...] = atom_ref[...] + sign2[:n, :] + sign2[n:, :] + rwse_out

    x = x_ref[...]                                                          # [N, H] f32

    # --- multi-head self-attention (batch=1 semantics over all N nodes) ---
    # Single fused lane-dense QKV projection; 1/sqrt(head_dim) folded into Q cols.
    qkv = jnp.dot(x.astype(jnp.bfloat16), wqkv[0],
                  preferred_element_type=jnp.float32) + bqkv[0]             # [N, 3H]

    o_heads = []
    for h in range(NUM_HEADS):                       # static unroll, tiny per-head work
        lo = h * HEAD_DIM
        qh = qkv[:, lo:lo + HEAD_DIM]                                        # [N, D]
        kh = qkv[:, HIDDEN + lo:HIDDEN + lo + HEAD_DIM]                      # [N, D]
        vh = qkv[:, 2 * HIDDEN + lo:2 * HIDDEN + lo + HEAD_DIM]              # [N, D]
        s = lax.dot_general(qh, kh, (((1,), (1,)), ((), ())),
                            preferred_element_type=jnp.float32)              # [N, N]
        s = s - jnp.max(s, axis=-1, keepdims=True)
        p = jnp.exp(s)
        p = p * pl.reciprocal(jnp.sum(p, axis=-1, keepdims=True), approx=True)
        o_heads.append(jnp.dot(p, vh, preferred_element_type=jnp.float32))   # [N, D]
    o = jnp.concatenate(o_heads, axis=-1)                                    # [N, H]

    # single output projection (K=64 contraction) instead of 4 shallow per-head dots
    attn = jnp.dot(o.astype(jnp.bfloat16), wo[0],
                   preferred_element_type=jnp.float32) + bo[0]               # [N, H]

    # TODO(synk): dropout implemented as identity (eval-mode semantics).
    x1 = _layernorm(x + attn, g1[0], be1[0])

    # FFN: bf16 weights, f32 accumulation on the MXU.
    h1 = jnp.maximum(jnp.dot(x1.astype(jnp.bfloat16), wff1[0],
                             preferred_element_type=jnp.float32) + bff1[0], 0.0)
    ff = jnp.dot(h1.astype(jnp.bfloat16), wff2[0],
                 preferred_element_type=jnp.float32) + bff2[0]
    x_out = _layernorm(x1 + ff, g2[0], be2[0])
    x_ref[...] = x_out                                                       # carry

    # --- global_mean_pool (normalized one-hot matmul) + fc_out on the last layer ---
    @pl.when(l == pl.num_programs(0) - 1)
    def _():
        pooled = jnp.dot(pool_ref[...], x_out, preferred_element_type=jnp.float32)
        out_ref[...] = jnp.dot(pooled.astype(jnp.bfloat16), wout[...],
                               preferred_element_type=jnp.float32) + bout[...]


# ---------------------------------------------------------------------------
# parameters (deterministic, in-script)
# ---------------------------------------------------------------------------
ATOM_FEATURE_DIMS = [119, 5, 12, 12, 10, 6, 6, 2, 2]   # OGB AtomEncoder vocab sizes


def init_params(key):
    keys = iter(jax.random.split(key, 64))

    def nrm(shape, scale=0.05, dtype=jnp.float32):
        return (jax.random.normal(next(keys), shape, jnp.float32) * scale).astype(dtype)

    L = NUM_LAYERS
    scale = 1.0 / (HEAD_DIM ** 0.5)

    # NOTE: weights use the x @ W convention. QKV is packed lane-dense as
    # [L, HIDDEN, 3*HIDDEN] with columns [q_h0..q_h3 | k_h0..k_h3 | v_h0..v_h3];
    # the softmax scale is folded into the Q columns (and Q bias). A real torch
    # nn.MultiheadAttention checkpoint would need transpose + this repack.
    wqkv = jax.random.normal(next(keys), (L, HIDDEN, 3 * HIDDEN), jnp.float32) * 0.05
    wqkv = wqkv.at[:, :, :HIDDEN].multiply(scale)
    bqkv = jnp.zeros((L, 1, 3 * HIDDEN), jnp.float32)   # Q part pre-scaled (zero anyway)

    bf16 = jnp.bfloat16
    params = {
        "atom_tables": [nrm((d, HIDDEN)) for d in ATOM_FEATURE_DIMS],   # gathered in JAX glue
        "sign": (nrm((PE_DIM, HIDDEN), dtype=bf16), jnp.zeros((1, HIDDEN), jnp.float32),
                 nrm((HIDDEN, HIDDEN), dtype=bf16), jnp.zeros((1, HIDDEN), jnp.float32)),
        "rwse": (nrm((WALK_LEN, HIDDEN), dtype=bf16), jnp.zeros((1, HIDDEN), jnp.float32),
                 nrm((HIDDEN, HIDDEN), dtype=bf16), jnp.zeros((1, HIDDEN), jnp.float32)),
        "wqkv": wqkv.astype(bf16),
        "bqkv": bqkv,
        "wo": nrm((L, HIDDEN, HIDDEN), dtype=bf16),
        "bo": jnp.zeros((L, 1, HIDDEN), jnp.float32),
        "g1": jnp.ones((L, 1, HIDDEN), jnp.float32),
        "be1": jnp.zeros((L, 1, HIDDEN), jnp.float32),
        "wff1": nrm((L, HIDDEN, DIM_FF), dtype=bf16),
        "bff1": jnp.zeros((L, 1, DIM_FF), jnp.float32),
        "wff2": nrm((L, DIM_FF, HIDDEN), dtype=bf16),
        "bff2": jnp.zeros((L, 1, HIDDEN), jnp.float32),
        "g2": jnp.ones((L, 1, HIDDEN), jnp.float32),
        "be2": jnp.zeros((L, 1, HIDDEN), jnp.float32),
        "fc_out": (nrm((HIDDEN, OUT_DIM), dtype=bf16), jnp.zeros((1, OUT_DIM), jnp.float32)),
    }
    return params


# ---------------------------------------------------------------------------
# forward
# ---------------------------------------------------------------------------
def pure_transformer_forward(params, x_atoms, lap_pe, rwse, batch_vec, num_graphs):
    n = x_atoms.shape[0]

    # glue: AtomEncoder = sum of per-feature embedding lookups (gather)
    atom_emb = jnp.zeros((n, HIDDEN), jnp.float32)
    for i, tbl in enumerate(params["atom_tables"]):
        atom_emb = atom_emb + tbl[x_atoms[:, i]]

    # glue: stack pe and -pe so SignNet's shared MLP runs once over [2N, PE_DIM]
    pe2 = jnp.concatenate([lap_pe, -lap_pe], axis=0)

    # glue: normalized one-hot pooling matrix for global_mean_pool
    onehot = (batch_vec[None, :] == jnp.arange(num_graphs)[:, None]).astype(jnp.float32)
    counts = jnp.maximum(jnp.sum(onehot, axis=1, keepdims=True), 1.0)
    pool = onehot / counts                                   # [G, N]

    args = (atom_emb, pe2, rwse, pool,
            *params["sign"], *params["rwse"],
            params["wqkv"], params["bqkv"], params["wo"], params["bo"],
            params["g1"], params["be1"],
            params["wff1"], params["bff1"], params["wff2"], params["bff2"],
            params["g2"], params["be2"],
            *params["fc_out"])

    def full_spec(shape):                 # resident for the whole grid (constant block)
        nd = len(shape)
        return pl.BlockSpec(shape, lambda l, _nd=nd: (0,) * _nd)

    def per_layer(shape):                 # per-layer slab, double-buffered by Pallas
        nd = len(shape)
        return pl.BlockSpec((1,) + shape, lambda l, _nd=nd: (l,) + (0,) * _nd)

    in_specs = [
        full_spec((n, HIDDEN)),                 # atom_emb
        full_spec((2 * n, PE_DIM)),             # pe2
        full_spec((n, WALK_LEN)),               # rwse
        full_spec((num_graphs, n)),             # pool
        full_spec((PE_DIM, HIDDEN)), full_spec((1, HIDDEN)),       # sign w1, b1
        full_spec((HIDDEN, HIDDEN)), full_spec((1, HIDDEN)),       # sign w2, b2
        full_spec((WALK_LEN, HIDDEN)), full_spec((1, HIDDEN)),     # rwse w1, b1
        full_spec((HIDDEN, HIDDEN)), full_spec((1, HIDDEN)),       # rwse w2, b2
        per_layer((HIDDEN, 3 * HIDDEN)),        # wqkv
        per_layer((1, 3 * HIDDEN)),             # bqkv
        per_layer((HIDDEN, HIDDEN)),            # wo
        per_layer((1, HIDDEN)),                 # bo
        per_layer((1, HIDDEN)),                 # g1
        per_layer((1, HIDDEN)),                 # be1
        per_layer((HIDDEN, DIM_FF)),            # wff1
        per_layer((1, DIM_FF)),                 # bff1
        per_layer((DIM_FF, HIDDEN)),            # wff2
        per_layer((1, HIDDEN)),                 # bff2
        per_layer((1, HIDDEN)),                 # g2
        per_layer((1, HIDDEN)),                 # be2
        full_spec((HIDDEN, OUT_DIM)),           # fc_out W
        full_spec((1, OUT_DIM)),                # fc_out b
    ]

    # One launch; the layer axis streams FFN/attention weights while the previous
    # layer computes; the [N,HIDDEN] activation lives in a persistent VMEM scratch.
    return pl.pallas_call(
        fused_kernel,
        out_shape=jax.ShapeDtypeStruct((num_graphs, OUT_DIM), jnp.float32),
        grid_spec=pltpu.PrefetchScalarGridSpec(
            num_scalar_prefetch=0,
            grid=(NUM_LAYERS,),
            in_specs=in_specs,
            out_specs=pl.BlockSpec((num_graphs, OUT_DIM), lambda l: (0, 0)),
            scratch_shapes=[pltpu.VMEM((n, HIDDEN), jnp.float32)]),
        compiler_params=pltpu.CompilerParams(
            dimension_semantics=("arbitrary",)),
    )(*args)


if __name__ == "__main__":
    key = jax.random.PRNGKey(0)
    pkey, k1, k2, k3 = jax.random.split(key, 4)
    params = init_params(pkey)

    # NOTE: throughput scales best when many molecules are batched so N is in the
    # hundreds (weights/launch amortized); kept small here for the smoke test.
    N = 16                                                  # total nodes in the batch
    atom_dims = jnp.array(ATOM_FEATURE_DIMS, dtype=jnp.int32)
    x_atoms = jax.random.randint(k1, (N, 9), 0, 10_000, dtype=jnp.int32) % atom_dims[None, :]
    lap_pe = jax.random.normal(k2, (N, PE_DIM), jnp.float32)
    rwse = jax.random.uniform(k3, (N, WALK_LEN), jnp.float32)
    batch_vec = jnp.array([0] * 9 + [1] * 7, dtype=jnp.int32)   # 2 graphs: 9 + 7 nodes
    num_graphs = 2

    fwd = jax.jit(functools.partial(pure_transformer_forward, num_graphs=num_graphs))
    out = fwd(params, x_atoms, lap_pe, rwse, batch_vec)
    jax.block_until_ready(out)
    assert out.shape == (num_graphs, OUT_DIM) and out.dtype == jnp.float32
    print("KERNEL_OK")
</pallas_src>

<mosaic_0001>
module attributes {stable_mosaic.version = 11 : i64} {
  func.func @fused_kernel(%arg0: i32, %arg1: memref<16x64xf32, #tpu.memory_space<vmem>>, %arg2: memref<32x10xf32, #tpu.memory_space<vmem>>, %arg3: memref<16x10xf32, #tpu.memory_space<vmem>>, %arg4: memref<2x16xf32, #tpu.memory_space<vmem>>, %arg5: memref<10x64xbf16, #tpu.memory_space<vmem>>, %arg6: memref<1x64xf32, #tpu.memory_space<vmem>>, %arg7: memref<64x64xbf16, #tpu.memory_space<vmem>>, %arg8: memref<1x64xf32, #tpu.memory_space<vmem>>, %arg9: memref<10x64xbf16, #tpu.memory_space<vmem>>, %arg10: memref<1x64xf32, #tpu.memory_space<vmem>>, %arg11: memref<64x64xbf16, #tpu.memory_space<vmem>>, %arg12: memref<1x64xf32, #tpu.memory_space<vmem>>, %arg13: memref<1x64x192xbf16, #tpu.memory_space<vmem>>, %arg14: memref<1x1x192xf32, #tpu.memory_space<vmem>>, %arg15: memref<1x64x64xbf16, #tpu.memory_space<vmem>>, %arg16: memref<1x1x64xf32, #tpu.memory_space<vmem>>, %arg17: memref<1x1x64xf32, #tpu.memory_space<vmem>>, %arg18: memref<1x1x64xf32, #tpu.memory_space<vmem>>, %arg19: memref<1x64x2048xbf16, #tpu.memory_space<vmem>>, %arg20: memref<1x1x2048xf32, #tpu.memory_space<vmem>>, %arg21: memref<1x2048x64xbf16, #tpu.memory_space<vmem>>, %arg22: memref<1x1x64xf32, #tpu.memory_space<vmem>>, %arg23: memref<1x1x64xf32, #tpu.memory_space<vmem>>, %arg24: memref<1x1x64xf32, #tpu.memory_space<vmem>>, %arg25: memref<64x128xbf16, #tpu.memory_space<vmem>>, %arg26: memref<1x128xf32, #tpu.memory_space<vmem>>, %arg27: memref<2x128xf32, #tpu.memory_space<vmem>>, %arg28: memref<16x64xf32, #tpu.memory_space<vmem>>) attributes {dimension_semantics = [#tpu.dimension_semantics<arbitrary>], iteration_bounds = array<i64: 3>, scalar_prefetch = 0 : i64, scratch_operands = 1 : i64, tpu.core_type = #tpu.core_type<tc>, window_params = [{pipeline_mode = #tpu.pipeline_mode<synchronous>, transform_indices = @transform_0, window_bounds = array<i64: 16, 64>}, {pipeline_mode = #tpu.pipeline_mode<synchronous>, transform_indices = @transform_1, window_bounds = array<i64: 32, 10>}, {pipeline_mode = #tpu.pipeline_mode<synchronous>, transform_indices = @transform_2, window_bounds = array<i64: 16, 10>}, {pipeline_mode = #tpu.pipeline_mode<synchronous>, transform_indices = @transform_3, window_bounds = array<i64: 2, 16>}, {pipeline_mode = #tpu.pipeline_mode<synchronous>, transform_indices = @transform_4, window_bounds = array<i64: 10, 64>}, {pipeline_mode = #tpu.pipeline_mode<synchronous>, transform_indices = @transform_5, window_bounds = array<i64: 1, 64>}, {pipeline_mode = #tpu.pipeline_mode<synchronous>, transform_indices = @transform_6, window_bounds = array<i64: 64, 64>}, {pipeline_mode = #tpu.pipeline_mode<synchronous>, transform_indices = @transform_7, window_bounds = array<i64: 1, 64>}, {pipeline_mode = #tpu.pipeline_mode<synchronous>, transform_indices = @transform_8, window_bounds = array<i64: 10, 64>}, {pipeline_mode = #tpu.pipeline_mode<synchronous>, transform_indices = @transform_9, window_bounds = array<i64: 1, 64>}, {pipeline_mode = #tpu.pipeline_mode<synchronous>, transform_indices = @transform_10, window_bounds = array<i64: 64, 64>}, {pipeline_mode = #tpu.pipeline_mode<synchronous>, transform_indices = @transform_11, window_bounds = array<i64: 1, 64>}, {transform_indices = @transform_12, window_bounds = array<i64: 1, 64, 192>}, {transform_indices = @transform_13, window_bounds = array<i64: 1, 1, 192>}, {transform_indices = @transform_14, window_bounds = array<i64: 1, 64, 64>}, {transform_indices = @transform_15, window_bounds = array<i64: 1, 1, 64>}, {transform_indices = @transform_16, window_bounds = array<i64: 1, 1, 64>}, {transform_indices = @transform_17, window_bounds = array<i64: 1, 1, 64>}, {transform_indices = @transform_18, window_bounds = array<i64: 1, 64, 2048>}, {transform_indices = @transform_19, window_bounds = array<i64: 1, 1, 2048>}, {transform_indices = @transform_20, window_bounds = array<i64: 1, 2048, 64>}, {transform_indices = @transform_21, window_bounds = array<i64: 1, 1, 64>}, {transform_indices = @transform_22, window_bounds = array<i64: 1, 1, 64>}, {transform_indices = @transform_23, window_bounds = array<i64: 1, 1, 64>}, {pipeline_mode = #tpu.pipeline_mode<synchronous>, transform_indices = @transform_24, window_bounds = array<i64: 64, 128>}, {pipeline_mode = #tpu.pipeline_mode<synchronous>, transform_indices = @transform_25, window_bounds = array<i64: 1, 128>}, {pipeline_mode = #tpu.pipeline_mode<synchronous>, transform_indices = @transform_26, window_bounds = array<i64: 2, 128>}]} {
    %c0_i32 = arith.constant 0 : i32
    %0 = arith.cmpi eq, %arg0, %c0_i32 : i32
    %1 = arith.extui %0 : i1 to i32
    %c0_i32_0 = arith.constant 0 : i32
    %2 = arith.cmpi ne, %1, %c0_i32_0 : i32
    scf.if %2 {
      %c0_71 = arith.constant 0 : index
      %c0_72 = arith.constant 0 : index
      %157 = vector.load %arg2[%c0_71, %c0_72] : memref<32x10xf32, #tpu.memory_space<vmem>>, vector<32x10xf32>
      %c0_73 = arith.constant 0 : index
      %c0_74 = arith.constant 0 : index
      %158 = vector.load %arg5[%c0_73, %c0_74] : memref<10x64xbf16, #tpu.memory_space<vmem>>, vector<10x64xbf16>
      %c0_75 = arith.constant 0 : index
      %c0_76 = arith.constant 0 : index
      %159 = vector.load %arg6[%c0_75, %c0_76] : memref<1x64xf32, #tpu.memory_space<vmem>>, vector<1x64xf32>
      %c0_77 = arith.constant 0 : index
      %c0_78 = arith.constant 0 : index
      %160 = vector.load %arg7[%c0_77, %c0_78] : memref<64x64xbf16, #tpu.memory_space<vmem>>, vector<64x64xbf16>
      %c0_79 = arith.constant 0 : index
      %c0_80 = arith.constant 0 : index
      %161 = vector.load %arg8[%c0_79, %c0_80] : memref<1x64xf32, #tpu.memory_space<vmem>>, vector<1x64xf32>
      %162 = arith.truncf %157 : vector<32x10xf32> to vector<32x10xbf16>
      %cst_81 = arith.constant dense<0.000000e+00> : vector<32x64xf32>
      %163 = tpu.matmul %162, %158, %cst_81 {dimension_numbers = #tpu.dot_dimension_numbers<[1], [0], [0], [1], [0, 0, 1, 1], [], []>} : vector<32x10xbf16>, vector<10x64xbf16>, vector<32x64xf32> -> vector<32x64xf32>
      %164 = vector.broadcast %159 : vector<1x64xf32> to vector<32x64xf32>
      %165 = arith.addf %163, %164 : vector<32x64xf32>
      %cst_82 = arith.constant 0.000000e+00 : f32
      %166 = vector.broadcast %cst_82 : f32 to vector<32x64xf32>
      %167 = arith.maximumf %165, %166 : vector<32x64xf32>
      %168 = arith.truncf %167 : vector<32x64xf32> to vector<32x64xbf16>
      %cst_83 = arith.constant dense<0.000000e+00> : vector<32x64xf32>
      %169 = tpu.matmul %168, %160, %cst_83 {dimension_numbers = #tpu.dot_dimension_numbers<[1], [0], [0], [1], [0, 0, 1, 1], [], []>} : vector<32x64xbf16>, vector<64x64xbf16>, vector<32x64xf32> -> vector<32x64xf32>
      %170 = vector.broadcast %161 : vector<1x64xf32> to vector<32x64xf32>
      %171 = arith.addf %169, %170 : vector<32x64xf32>
      %c0_84 = arith.constant 0 : index
      %c0_85 = arith.constant 0 : index
      %172 = vector.load %arg3[%c0_84, %c0_85] : memref<16x10xf32, #tpu.memory_space<vmem>>, vector<16x10xf32>
      %c0_86 = arith.constant 0 : index
      %c0_87 = arith.constant 0 : index
      %173 = vector.load %arg9[%c0_86, %c0_87] : memref<10x64xbf16, #tpu.memory_space<vmem>>, vector<10x64xbf16>
      %c0_88 = arith.constant 0 : index
      %c0_89 = arith.constant 0 : index
      %174 = vector.load %arg10[%c0_88, %c0_89] : memref<1x64xf32, #tpu.memory_space<vmem>>, vector<1x64xf32>
      %c0_90 = arith.constant 0 : index
      %c0_91 = arith.constant 0 : index
      %175 = vector.load %arg11[%c0_90, %c0_91] : memref<64x64xbf16, #tpu.memory_space<vmem>>, vector<64x64xbf16>
      %c0_92 = arith.constant 0 : index
      %c0_93 = arith.constant 0 : index
      %176 = vector.load %arg12[%c0_92, %c0_93] : memref<1x64xf32, #tpu.memory_space<vmem>>, vector<1x64xf32>
      %177 = arith.truncf %172 : vector<16x10xf32> to vector<16x10xbf16>
      %cst_94 = arith.constant dense<0.000000e+00> : vector<16x64xf32>
      %178 = tpu.matmul %177, %173, %cst_94 {dimension_numbers = #tpu.dot_dimension_numbers<[1], [0], [0], [1], [0, 0, 1, 1], [], []>} : vector<16x10xbf16>, vector<10x64xbf16>, vector<16x64xf32> -> vector<16x64xf32>
      %179 = vector.broadcast %174 : vector<1x64xf32> to vector<16x64xf32>
      %180 = arith.addf %178, %179 : vector<16x64xf32>
      %cst_95 = arith.constant 0.000000e+00 : f32
      %181 = vector.broadcast %cst_95 : f32 to vector<16x64xf32>
      %182 = arith.maximumf %180, %181 : vector<16x64xf32>
      %183 = arith.truncf %182 : vector<16x64xf32> to vector<16x64xbf16>
      %cst_96 = arith.constant dense<0.000000e+00> : vector<16x64xf32>
      %184 = tpu.matmul %183, %175, %cst_96 {dimension_numbers = #tpu.dot_dimension_numbers<[1], [0], [0], [1], [0, 0, 1, 1], [], []>} : vector<16x64xbf16>, vector<64x64xbf16>, vector<16x64xf32> -> vector<16x64xf32>
      %185 = vector.broadcast %176 : vector<1x64xf32> to vector<16x64xf32>
      %186 = arith.addf %184, %185 : vector<16x64xf32>
      %c0_97 = arith.constant 0 : index
      %c0_98 = arith.constant 0 : index
      %187 = vector.load %arg1[%c0_97, %c0_98] : memref<16x64xf32, #tpu.memory_space<vmem>>, vector<16x64xf32>
      %188 = vector.extract_strided_slice %171 {offsets = [0, 0], sizes = [16, 64], strides = [1, 1]} : vector<32x64xf32> to vector<16x64xf32>
      %189 = arith.addf %187, %188 : vector<16x64xf32>
      %190 = vector.extract_strided_slice %171 {offsets = [16, 0], sizes = [16, 64], strides = [1, 1]} : vector<32x64xf32> to vector<16x64xf32>
      %191 = arith.addf %189, %190 : vector<16x64xf32>
      %192 = arith.addf %191, %186 : vector<16x64xf32>
      %c0_99 = arith.constant 0 : index
      %c0_100 = arith.constant 0 : index
      %193 = vector.load %arg28[%c0_99, %c0_100] : memref<16x64xf32, #tpu.memory_space<vmem>>, vector<16x64xf32>
      tpu.vector_store %arg28[%c0_99, %c0_100], %192 {strides = array<i32>} : memref<16x64xf32, #tpu.memory_space<vmem>>, vector<16x64xf32>,
    } else {
    }
    %c0 = arith.constant 0 : index
    %c0_1 = arith.constant 0 : index
    %3 = vector.load %arg28[%c0, %c0_1] : memref<16x64xf32, #tpu.memory_space<vmem>>, vector<16x64xf32>
    %4 = arith.truncf %3 : vector<16x64xf32> to vector<16x64xbf16>
    %c0_2 = arith.constant 0 : index
    %c0_3 = arith.constant 0 : index
    %c0_4 = arith.constant 0 : index
    %5 = vector.load %arg13[%c0_2, %c0_3, %c0_4] : memref<1x64x192xbf16, #tpu.memory_space<vmem>>, vector<1x64x192xbf16>
    %6 = vector.shape_cast %5 : vector<1x64x192xbf16> to vector<64x192xbf16>
    %cst = arith.constant dense<0.000000e+00> : vector<16x192xf32>
    %7 = tpu.matmul %4, %6, %cst {dimension_numbers = #tpu.dot_dimension_numbers<[1], [0], [0], [1], [0, 0, 1, 1], [], []>} : vector<16x64xbf16>, vector<64x192xbf16>, vector<16x192xf32> -> vector<16x192xf32>
    %c0_5 = arith.constant 0 : index
    %c0_6 = arith.constant 0 : index
    %c0_7 = arith.constant 0 : index
    %8 = vector.load %arg14[%c0_5, %c0_6, %c0_7] : memref<1x1x192xf32, #tpu.memory_space<vmem>>, vector<1x1x192xf32>
    %9 = vector.shape_cast %8 : vector<1x1x192xf32> to vector<1x192xf32>
    %10 = vector.broadcast %9 : vector<1x192xf32> to vector<16x192xf32>
    %11 = arith.addf %7, %10 : vector<16x192xf32>
    %12 = vector.extract_strided_slice %11 {offsets = [0, 0], sizes = [16, 16], strides = [1, 1]} : vector<16x192xf32> to vector<16x16xf32>
    %13 = vector.extract_strided_slice %11 {offsets = [0, 64], sizes = [16, 16], strides = [1, 1]} : vector<16x192xf32> to vector<16x16xf32>
    %14 = vector.extract_strided_slice %11 {offsets = [0, 128], sizes = [16, 16], strides = [1, 1]} : vector<16x192xf32> to vector<16x16xf32>
    %cst_8 = arith.constant dense<0.000000e+00> : vector<16x16xf32>
    %15 = tpu.matmul %12, %13, %cst_8 {dimension_numbers = #tpu.dot_dimension_numbers<[1], [1], [0], [0], [0, 0, 1, 0], [], []>} : vector<16x16xf32>, vector<16x16xf32>, vector<16x16xf32> -> vector<16x16xf32>
    %cst_9 = arith.constant dense<0xFF800000> : vector<16xf32>
    %16 = vector.multi_reduction <maximumf>, %15, %cst_9 [1] : vector<16x16xf32> to vector<16xf32>
    %17 = vector.shape_cast %16 : vector<16xf32> to vector<16x1xf32>
    %18 = vector.broadcast %17 : vector<16x1xf32> to vector<16x16xf32>
    %19 = arith.subf %15, %18 : vector<16x16xf32>
    %20 = math.exp %19 : vector<16x16xf32>
    %cst_10 = arith.constant dense<0.000000e+00> : vector<16xf32>
    %21 = vector.multi_reduction <add>, %20, %cst_10 [1] : vector<16x16xf32> to vector<16xf32>
    %22 = vector.shape_cast %21 : vector<16xf32> to vector<16x1xf32>
    %23 = tpu.reciprocal %22 {approx = true} : vector<16x1xf32> -> vector<16x1xf32>
    %24 = vector.broadcast %23 : vector<16x1xf32> to vector<16x16xf32>
    %25 = arith.mulf %20, %24 : vector<16x16xf32>
    %cst_11 = arith.constant dense<0.000000e+00> : vector<16x16xf32>
    %26 = tpu.matmul %25, %14, %cst_11 {dimension_numbers = #tpu.dot_dimension_numbers<[1], [0], [0], [1], [0, 0, 1, 1], [], []>} : vector<16x16xf32>, vector<16x16xf32>, vector<16x16xf32> -> vector<16x16xf32>
    %27 = vector.extract_strided_slice %11 {offsets = [0, 16], sizes = [16, 16], strides = [1, 1]} : vector<16x192xf32> to vector<16x16xf32>
    %28 = vector.extract_strided_slice %11 {offsets = [0, 80], sizes = [16, 16], strides = [1, 1]} : vector<16x192xf32> to vector<16x16xf32>
    %29 = vector.extract_strided_slice %11 {offsets = [0, 144], sizes = [16, 16], strides = [1, 1]} : vector<16x192xf32> to vector<16x16xf32>
    %cst_12 = arith.constant dense<0.000000e+00> : vector<16x16xf32>
    %30 = tpu.matmul %27, %28, %cst_12 {dimension_numbers = #tpu.dot_dimension_numbers<[1], [1], [0], [0], [0, 0, 1, 0], [], []>} : vector<16x16xf32>, vector<16x16xf32>, vector<16x16xf32> -> vector<16x16xf32>
    %cst_13 = arith.constant dense<0xFF800000> : vector<16xf32>
    %31 = vector.multi_reduction <maximumf>, %30, %cst_13 [1] : vector<16x16xf32> to vector<16xf32>
    %32 = vector.shape_cast %31 : vector<16xf32> to vector<16x1xf32>
    %33 = vector.broadcast %32 : vector<16x1xf32> to vector<16x16xf32>
    %34 = arith.subf %30, %33 : vector<16x16xf32>
    %35 = math.exp %34 : vector<16x16xf32>
    %cst_14 = arith.constant dense<0.000000e+00> : vector<16xf32>
    %36 = vector.multi_reduction <add>, %35, %cst_14 [1] : vector<16x16xf32> to vector<16xf32>
    %37 = vector.shape_cast %36 : vector<16xf32> to vector<16x1xf32>
    %38 = tpu.reciprocal %37 {approx = true} : vector<16x1xf32> -> vector<16x1xf32>
    %39 = vector.broadcast %38 : vector<16x1xf32> to vector<16x16xf32>
    %40 = arith.mulf %35, %39 : vector<16x16xf32>
    %cst_15 = arith.constant dense<0.000000e+00> : vector<16x16xf32>
    %41 = tpu.matmul %40, %29, %cst_15 {dimension_numbers = #tpu.dot_dimension_numbers<[1], [0], [0], [1], [0, 0, 1, 1], [], []>} : vector<16x16xf32>, vector<16x16xf32>, vector<16x16xf32> -> vector<16x16xf32>
    %42 = vector.extract_strided_slice %11 {offsets = [0, 32], sizes = [16, 16], strides = [1, 1]} : vector<16x192xf32> to vector<16x16xf32>
    %43 = vector.extract_strided_slice %11 {offsets = [0, 96], sizes = [16, 16], strides = [1, 1]} : vector<16x192xf32> to vector<16x16xf32>
    %44 = vector.extract_strided_slice %11 {offsets = [0, 160], sizes = [16, 16], strides = [1, 1]} : vector<16x192xf32> to vector<16x16xf32>
    %cst_16 = arith.constant dense<0.000000e+00> : vector<16x16xf32>
    %45 = tpu.matmul %42, %43, %cst_16 {dimension_numbers = #tpu.dot_dimension_numbers<[1], [1], [0], [0], [0, 0, 1, 0], [], []>} : vector<16x16xf32>, vector<16x16xf32>, vector<16x16xf32> -> vector<16x16xf32>
    %cst_17 = arith.constant dense<0xFF800000> : vector<16xf32>
    %46 = vector.multi_reduction <maximumf>, %45, %cst_17 [1] : vector<16x16xf32> to vector<16xf32>
    %47 = vector.shape_cast %46 : vector<16xf32> to vector<16x1xf32>
    %48 = vector.broadcast %47 : vector<16x1xf32> to vector<16x16xf32>
    %49 = arith.subf %45, %48 : vector<16x16xf32>
    %50 = math.exp %49 : vector<16x16xf32>
    %cst_18 = arith.constant dense<0.000000e+00> : vector<16xf32>
    %51 = vector.multi_reduction <add>, %50, %cst_18 [1] : vector<16x16xf32> to vector<16xf32>
    %52 = vector.shape_cast %51 : vector<16xf32> to vector<16x1xf32>
    %53 = tpu.reciprocal %52 {approx = true} : vector<16x1xf32> -> vector<16x1xf32>
    %54 = vector.broadcast %53 : vector<16x1xf32> to vector<16x16xf32>
    %55 = arith.mulf %50, %54 : vector<16x16xf32>
    %cst_19 = arith.constant dense<0.000000e+00> : vector<16x16xf32>
    %56 = tpu.matmul %55, %44, %cst_19 {dimension_numbers = #tpu.dot_dimension_numbers<[1], [0], [0], [1], [0, 0, 1, 1], [], []>} : vector<16x16xf32>, vector<16x16xf32>, vector<16x16xf32> -> vector<16x16xf32>
    %57 = vector.extract_strided_slice %11 {offsets = [0, 48], sizes = [16, 16], strides = [1, 1]} : vector<16x192xf32> to vector<16x16xf32>
    %58 = vector.extract_strided_slice %11 {offsets = [0, 112], sizes = [16, 16], strides = [1, 1]} : vector<16x192xf32> to vector<16x16xf32>
    %59 = vector.extract_strided_slice %11 {offsets = [0, 176], sizes = [16, 16], strides = [1, 1]} : vector<16x192xf32> to vector<16x16xf32>
    %cst_20 = arith.constant dense<0.000000e+00> : vector<16x16xf32>
    %60 = tpu.matmul %57, %58, %cst_20 {dimension_numbers = #tpu.dot_dimension_numbers<[1], [1], [0], [0], [0, 0, 1, 0], [], []>} : vector<16x16xf32>, vector<16x16xf32>, vector<16x16xf32> -> vector<16x16xf32>
    %cst_21 = arith.constant dense<0xFF800000> : vector<16xf32>
    %61 = vector.multi_reduction <maximumf>, %60, %cst_21 [1] : vector<16x16xf32> to vector<16xf32>
    %62 = vector.shape_cast %61 : vector<16xf32> to vector<16x1xf32>
    %63 = vector.broadcast %62 : vector<16x1xf32> to vector<16x16xf32>
    %64 = arith.subf %60, %63 : vector<16x16xf32>
    %65 = math.exp %64 : vector<16x16xf32>
    %cst_22 = arith.constant dense<0.000000e+00> : vector<16xf32>
    %66 = vector.multi_reduction <add>, %65, %cst_22 [1] : vector<16x16xf32> to vector<16xf32>
    %67 = vector.shape_cast %66 : vector<16xf32> to vector<16x1xf32>
    %68 = tpu.reciprocal %67 {approx = true} : vector<16x1xf32> -> vector<16x1xf32>
    %69 = vector.broadcast %68 : vector<16x1xf32> to vector<16x16xf32>
    %70 = arith.mulf %65, %69 : vector<16x16xf32>
    %cst_23 = arith.constant dense<0.000000e+00> : vector<16x16xf32>
    %71 = tpu.matmul %70, %59, %cst_23 {dimension_numbers = #tpu.dot_dimension_numbers<[1], [0], [0], [1], [0, 0, 1, 1], [], []>} : vector<16x16xf32>, vector<16x16xf32>, vector<16x16xf32> -> vector<16x16xf32>
    %72 = tpu.concatenate %26, %41, %56, %71 in 1 : vector<16x16xf32>, vector<16x16xf32>, vector<16x16xf32>, vector<16x16xf32> -> vector<16x64xf32>
    %73 = arith.truncf %72 : vector<16x64xf32> to vector<16x64xbf16>
    %c0_24 = arith.constant 0 : index
    %c0_25 = arith.constant 0 : index
    %c0_26 = arith.constant 0 : index
    %74 = vector.load %arg15[%c0_24, %c0_25, %c0_26] : memref<1x64x64xbf16, #tpu.memory_space<vmem>>, vector<1x64x64xbf16>
    %75 = vector.shape_cast %74 : vector<1x64x64xbf16> to vector<64x64xbf16>
    %cst_27 = arith.constant dense<0.000000e+00> : vector<16x64xf32>
    %76 = tpu.matmul %73, %75, %cst_27 {dimension_numbers = #tpu.dot_dimension_numbers<[1], [0], [0], [1], [0, 0, 1, 1], [], []>} : vector<16x64xbf16>, vector<64x64xbf16>, vector<16x64xf32> -> vector<16x64xf32>
    %c0_28 = arith.constant 0 : index
    %c0_29 = arith.constant 0 : index
    %c0_30 = arith.constant 0 : index
    %77 = vector.load %arg16[%c0_28, %c0_29, %c0_30] : memref<1x1x64xf32, #tpu.memory_space<vmem>>, vector<1x1x64xf32>
    %78 = vector.shape_cast %77 : vector<1x1x64xf32> to vector<1x64xf32>
    %79 = vector.broadcast %78 : vector<1x64xf32> to vector<16x64xf32>
    %80 = arith.addf %76, %79 : vector<16x64xf32>
    %81 = arith.addf %3, %80 : vector<16x64xf32>
    %c0_31 = arith.constant 0 : index
    %c0_32 = arith.constant 0 : index
    %c0_33 = arith.constant 0 : index
    %82 = vector.load %arg17[%c0_31, %c0_32, %c0_33] : memref<1x1x64xf32, #tpu.memory_space<vmem>>, vector<1x1x64xf32>
    %83 = vector.shape_cast %82 : vector<1x1x64xf32> to vector<1x64xf32>
    %c0_34 = arith.constant 0 : index
    %c0_35 = arith.constant 0 : index
    %c0_36 = arith.constant 0 : index
    %84 = vector.load %arg18[%c0_34, %c0_35, %c0_36] : memref<1x1x64xf32, #tpu.memory_space<vmem>>, vector<1x1x64xf32>
    %85 = vector.shape_cast %84 : vector<1x1x64xf32> to vector<1x64xf32>
    %cst_37 = arith.constant dense<0.000000e+00> : vector<16xf32>
    %86 = vector.multi_reduction <add>, %81, %cst_37 [1] : vector<16x64xf32> to vector<16xf32>
    %87 = vector.shape_cast %86 : vector<16xf32> to vector<16x1xf32>
    %cst_38 = arith.constant 6.400000e+01 : f32
    %88 = vector.broadcast %cst_38 : f32 to vector<16x1xf32>
    %89 = arith.divf %87, %88 : vector<16x1xf32>
    %90 = arith.mulf %81, %81 : vector<16x64xf32>
    %cst_39 = arith.constant dense<0.000000e+00> : vector<16xf32>
    %91 = vector.multi_reduction <add>, %90, %cst_39 [1] : vector<16x64xf32> to vector<16xf32>
    %92 = vector.shape_cast %91 : vector<16xf32> to vector<16x1xf32>
    %cst_40 = arith.constant 6.400000e+01 : f32
    %93 = vector.broadcast %cst_40 : f32 to vector<16x1xf32>
    %94 = arith.divf %92, %93 : vector<16x1xf32>
    %95 = arith.mulf %89, %89 : vector<16x1xf32>
    %96 = arith.subf %94, %95 : vector<16x1xf32>
    %97 = vector.broadcast %89 : vector<16x1xf32> to vector<16x64xf32>
    %98 = arith.subf %81, %97 : vector<16x64xf32>
    %cst_41 = arith.constant 9.99999974E-6 : f32
    %99 = vector.broadcast %cst_41 : f32 to vector<16x1xf32>
    %100 = arith.addf %96, %99 : vector<16x1xf32>
    %101 = math.rsqrt %100 : vector<16x1xf32>
    %102 = vector.broadcast %101 : vector<16x1xf32> to vector<16x64xf32>
    %103 = arith.mulf %98, %102 : vector<16x64xf32>
    %104 = vector.broadcast %83 : vector<1x64xf32> to vector<16x64xf32>
    %105 = arith.mulf %103, %104 : vector<16x64xf32>
    %106 = vector.broadcast %85 : vector<1x64xf32> to vector<16x64xf32>
    %107 = arith.addf %105, %106 : vector<16x64xf32>
    %108 = arith.truncf %107 : vector<16x64xf32> to vector<16x64xbf16>
    %c0_42 = arith.constant 0 : index
    %c0_43 = arith.constant 0 : index
    %c0_44 = arith.constant 0 : index
    %109 = vector.load %arg19[%c0_42, %c0_43, %c0_44] : memref<1x64x2048xbf16, #tpu.memory_space<vmem>>, vector<1x64x2048xbf16>
    %110 = vector.shape_cast %109 : vector<1x64x2048xbf16> to vector<64x2048xbf16>
    %cst_45 = arith.constant dense<0.000000e+00> : vector<16x2048xf32>
    %111 = tpu.matmul %108, %110, %cst_45 {dimension_numbers = #tpu.dot_dimension_numbers<[1], [0], [0], [1], [0, 0, 1, 1], [], []>} : vector<16x64xbf16>, vector<64x2048xbf16>, vector<16x2048xf32> -> vector<16x2048xf32>
    %c0_46 = arith.constant 0 : index
    %c0_47 = arith.constant 0 : index
    %c0_48 = arith.constant 0 : index
    %112 = vector.load %arg20[%c0_46, %c0_47, %c0_48] : memref<1x1x2048xf32, #tpu.memory_space<vmem>>, vector<1x1x2048xf32>
    %113 = vector.shape_cast %112 : vector<1x1x2048xf32> to vector<1x2048xf32>
    %114 = vector.broadcast %113 : vector<1x2048xf32> to vector<16x2048xf32>
    %115 = arith.addf %111, %114 : vector<16x2048xf32>
    %cst_49 = arith.constant 0.000000e+00 : f32
    %116 = vector.broadcast %cst_49 : f32 to vector<16x2048xf32>
    %117 = arith.maximumf %115, %116 : vector<16x2048xf32>
    %118 = arith.truncf %117 : vector<16x2048xf32> to vector<16x2048xbf16>
    %c0_50 = arith.constant 0 : index
    %c0_51 = arith.constant 0 : index
    %c0_52 = arith.constant 0 : index
    %119 = vector.load %arg21[%c0_50, %c0_51, %c0_52] : memref<1x2048x64xbf16, #tpu.memory_space<vmem>>, vector<1x2048x64xbf16>
    %120 = vector.shape_cast %119 : vector<1x2048x64xbf16> to vector<2048x64xbf16>
    %cst_53 = arith.constant dense<0.000000e+00> : vector<16x64xf32>
    %121 = tpu.matmul %118, %120, %cst_53 {dimension_numbers = #tpu.dot_dimension_numbers<[1], [0], [0], [1], [0, 0, 1, 1], [], []>} : vector<16x2048xbf16>, vector<2048x64xbf16>, vector<16x64xf32> -> vector<16x64xf32>
    %c0_54 = arith.constant 0 : index
    %c0_55 = arith.constant 0 : index
    %c0_56 = arith.constant 0 : index
    %122 = vector.load %arg22[%c0_54, %c0_55, %c0_56] : memref<1x1x64xf32, #tpu.memory_space<vmem>>, vector<1x1x64xf32>
    %123 = vector.shape_cast %122 : vector<1x1x64xf32> to vector<1x64xf32>
    %124 = vector.broadcast %123 : vector<1x64xf32> to vector<16x64xf32>
    %125 = arith.addf %121, %124 : vector<16x64xf32>
    %126 = arith.addf %107, %125 : vector<16x64xf32>
    %c0_57 = arith.constant 0 : index
    %c0_58 = arith.constant 0 : index
    %c0_59 = arith.constant 0 : index
    %127 = vector.load %arg23[%c0_57, %c0_58, %c0_59] : memref<1x1x64xf32, #tpu.memory_space<vmem>>, vector<1x1x64xf32>
    %128 = vector.shape_cast %127 : vector<1x1x64xf32> to vector<1x64xf32>
    %c0_60 = arith.constant 0 : index
    %c0_61 = arith.constant 0 : index
    %c0_62 = arith.constant 0 : index
    %129 = vector.load %arg24[%c0_60, %c0_61, %c0_62] : memref<1x1x64xf32, #tpu.memory_space<vmem>>, vector<1x1x64xf32>
    %130 = vector.shape_cast %129 : vector<1x1x64xf32> to vector<1x64xf32>
    %cst_63 = arith.constant dense<0.000000e+00> : vector<16xf32>
    %131 = vector.multi_reduction <add>, %126, %cst_63 [1] : vector<16x64xf32> to vector<16xf32>
    %132 = vector.shape_cast %131 : vector<16xf32> to vector<16x1xf32>
    %cst_64 = arith.constant 6.400000e+01 : f32
    %133 = vector.broadcast %cst_64 : f32 to vector<16x1xf32>
    %134 = arith.divf %132, %133 : vector<16x1xf32>
    %135 = arith.mulf %126, %126 : vector<16x64xf32>
    %cst_65 = arith.constant dense<0.000000e+00> : vector<16xf32>
    %136 = vector.multi_reduction <add>, %135, %cst_65 [1] : vector<16x64xf32> to vector<16xf32>
    %137 = vector.shape_cast %136 : vector<16xf32> to vector<16x1xf32>
    %cst_66 = arith.constant 6.400000e+01 : f32
    %138 = vector.broadcast %cst_66 : f32 to vector<16x1xf32>
    %139 = arith.divf %137, %138 : vector<16x1xf32>
    %140 = arith.mulf %134, %134 : vector<16x1xf32>
    %141 = arith.subf %139, %140 : vector<16x1xf32>
    %142 = vector.broadcast %134 : vector<16x1xf32> to vector<16x64xf32>
    %143 = arith.subf %126, %142 : vector<16x64xf32>
    %cst_67 = arith.constant 9.99999974E-6 : f32
    %144 = vector.broadcast %cst_67 : f32 to vector<16x1xf32>
    %145 = arith.addf %141, %144 : vector<16x1xf32>
    %146 = math.rsqrt %145 : vector<16x1xf32>
    %147 = vector.broadcast %146 : vector<16x1xf32> to vector<16x64xf32>
    %148 = arith.mulf %143, %147 : vector<16x64xf32>
    %149 = vector.broadcast %128 : vector<1x64xf32> to vector<16x64xf32>
    %150 = arith.mulf %148, %149 : vector<16x64xf32>
    %151 = vector.broadcast %130 : vector<1x64xf32> to vector<16x64xf32>
    %152 = arith.addf %150, %151 : vector<16x64xf32>
    %c0_68 = arith.constant 0 : index
    %c0_69 = arith.constant 0 : index
    %153 = vector.load %arg28[%c0_68, %c0_69] : memref<16x64xf32, #tpu.memory_space<vmem>>, vector<16x64xf32>
    tpu.vector_store %arg28[%c0_68, %c0_69], %152 {strides = array<i32>} : memref<16x64xf32, #tpu.memory_space<vmem>>, vector<16x64xf32>,
    %c2_i32 = arith.constant 2 : i32
    %154 = arith.cmpi eq, %arg0, %c2_i32 : i32
    %155 = arith.extui %154 : i1 to i32
    %c0_i32_70 = arith.constant 0 : i32
    %156 = arith.cmpi ne, %155, %c0_i32_70 : i32
    scf.if %156 {
      %c0_71 = arith.constant 0 : index
      %c0_72 = arith.constant 0 : index
      %157 = vector.load %arg4[%c0_71, %c0_72] : memref<2x16xf32, #tpu.memory_space<vmem>>, vector<2x16xf32>
      %cst_73 = arith.constant dense<0.000000e+00> : vector<2x64xf32>
      %158 = tpu.matmul %157, %152, %cst_73 {dimension_numbers = #tpu.dot_dimension_numbers<[1], [0], [0], [1], [0, 0, 1, 1], [], []>} : vector<2x16xf32>, vector<16x64xf32>, vector<2x64xf32> -> vector<2x64xf32>
      %159 = arith.truncf %158 : vector<2x64xf32> to vector<2x64xbf16>
      %c0_74 = arith.constant 0 : index
      %c0_75 = arith.constant 0 : index
      %160 = vector.load %arg25[%c0_74, %c0_75] : memref<64x128xbf16, #tpu.memory_space<vmem>>, vector<64x128xbf16>
      %cst_76 = arith.constant dense<0.000000e+00> : vector<2x128xf32>
      %161 = tpu.matmul %159, %160, %cst_76 {dimension_numbers = #tpu.dot_dimension_numbers<[1], [0], [0], [1], [0, 0, 1, 1], [], []>} : vector<2x64xbf16>, vector<64x128xbf16>, vector<2x128xf32> -> vector<2x128xf32>
      %c0_77 = arith.constant 0 : index
      %c0_78 = arith.constant 0 : index
      %162 = vector.load %arg26[%c0_77, %c0_78] : memref<1x128xf32, #tpu.memory_space<vmem>>, vector<1x128xf32>
      %163 = vector.broadcast %162 : vector<1x128xf32> to vector<2x128xf32>
      %164 = arith.addf %161, %163 : vector<2x128xf32>
      %c0_79 = arith.constant 0 : index
      %c0_80 = arith.constant 0 : index
      %165 = vector.load %arg27[%c0_79, %c0_80] : memref<2x128xf32, #tpu.memory_space<vmem>>, vector<2x128xf32>
      tpu.vector_store %arg27[%c0_79, %c0_80], %164 {strides = array<i32>} : memref<2x128xf32, #tpu.memory_space<vmem>>, vector<2x128xf32>,
    } else {
    }
    return
  }
  func.func @transform_0(%arg0: i32) -> (i32, i32) {
    %c0_i32 = arith.constant 0 : i32
    %c0_i32_0 = arith.constant 0 : i32
    %c0_i32_1 = arith.constant 0 : i32
    return %c0_i32, %c0_i32_0 : i32, i32
  }
  func.func @transform_1(%arg0: i32) -> (i32, i32) {
    %c0_i32 = arith.constant 0 : i32
    %c0_i32_0 = arith.constant 0 : i32
    %c0_i32_1 = arith.constant 0 : i32
    return %c0_i32, %c0_i32_0 : i32, i32
  }
  func.func @transform_2(%arg0: i32) -> (i32, i32) {
    %c0_i32 = arith.constant 0 : i32
    %c0_i32_0 = arith.constant 0 : i32
    %c0_i32_1 = arith.constant 0 : i32
    return %c0_i32, %c0_i32_0 : i32, i32
  }
  func.func @transform_3(%arg0: i32) -> (i32, i32) {
    %c0_i32 = arith.constant 0 : i32
    %c0_i32_0 = arith.constant 0 : i32
    %c0_i32_1 = arith.constant 0 : i32
    return %c0_i32, %c0_i32_0 : i32, i32
  }
  func.func @transform_4(%arg0: i32) -> (i32, i32) {
    %c0_i32 = arith.constant 0 : i32
    %c0_i32_0 = arith.constant 0 : i32
    %c0_i32_1 = arith.constant 0 : i32
    return %c0_i32, %c0_i32_0 : i32, i32
  }
  func.func @transform_5(%arg0: i32) -> (i32, i32) {
    %c0_i32 = arith.constant 0 : i32
    %c0_i32_0 = arith.constant 0 : i32
    %c0_i32_1 = arith.constant 0 : i32
    return %c0_i32, %c0_i32_0 : i32, i32
  }
  func.func @transform_6(%arg0: i32) -> (i32, i32) {
    %c0_i32 = arith.constant 0 : i32
    %c0_i32_0 = arith.constant 0 : i32
    %c0_i32_1 = arith.constant 0 : i32
    return %c0_i32, %c0_i32_0 : i32, i32
  }
  func.func @transform_7(%arg0: i32) -> (i32, i32) {
    %c0_i32 = arith.constant 0 : i32
    %c0_i32_0 = arith.constant 0 : i32
    %c0_i32_1 = arith.constant 0 : i32
    return %c0_i32, %c0_i32_0 : i32, i32
  }
  func.func @transform_8(%arg0: i32) -> (i32, i32) {
    %c0_i32 = arith.constant 0 : i32
    %c0_i32_0 = arith.constant 0 : i32
    %c0_i32_1 = arith.constant 0 : i32
    return %c0_i32, %c0_i32_0 : i32, i32
  }
  func.func @transform_9(%arg0: i32) -> (i32, i32) {
    %c0_i32 = arith.constant 0 : i32
    %c0_i32_0 = arith.constant 0 : i32
    %c0_i32_1 = arith.constant 0 : i32
    return %c0_i32, %c0_i32_0 : i32, i32
  }
  func.func @transform_10(%arg0: i32) -> (i32, i32) {
    %c0_i32 = arith.constant 0 : i32
    %c0_i32_0 = arith.constant 0 : i32
    %c0_i32_1 = arith.constant 0 : i32
    return %c0_i32, %c0_i32_0 : i32, i32
  }
  func.func @transform_11(%arg0: i32) -> (i32, i32) {
    %c0_i32 = arith.constant 0 : i32
    %c0_i32_0 = arith.constant 0 : i32
    %c0_i32_1 = arith.constant 0 : i32
    return %c0_i32, %c0_i32_0 : i32, i32
  }
  func.func @transform_12(%arg0: i32) -> (i32, i32, i32) {
    %c0_i32 = arith.constant 0 : i32
    %c0_i32_0 = arith.constant 0 : i32
    %c0_i32_1 = arith.constant 0 : i32
    return %arg0, %c0_i32, %c0_i32_0 : i32, i32, i32
  }
  func.func @transform_13(%arg0: i32) -> (i32, i32, i32) {
    %c0_i32 = arith.constant 0 : i32
    %c0_i32_0 = arith.constant 0 : i32
    %c0_i32_1 = arith.constant 0 : i32
    return %arg0, %c0_i32, %c0_i32_0 : i32, i32, i32
  }
  func.func @transform_14(%arg0: i32) -> (i32, i32, i32) {
    %c0_i32 = arith.constant 0 : i32
    %c0_i32_0 = arith.constant 0 : i32
    %c0_i32_1 = arith.constant 0 : i32
    return %arg0, %c0_i32, %c0_i32_0 : i32, i32, i32
  }
  func.func @transform_15(%arg0: i32) -> (i32, i32, i32) {
    %c0_i32 = arith.constant 0 : i32
    %c0_i32_0 = arith.constant 0 : i32
    %c0_i32_1 = arith.constant 0 : i32
    return %arg0, %c0_i32, %c0_i32_0 : i32, i32, i32
  }
  func.func @transform_16(%arg0: i32) -> (i32, i32, i32) {
    %c0_i32 = arith.constant 0 : i32
    %c0_i32_0 = arith.constant 0 : i32
    %c0_i32_1 = arith.constant 0 : i32
    return %arg0, %c0_i32, %c0_i32_0 : i32, i32, i32
  }
  func.func @transform_17(%arg0: i32) -> (i32, i32, i32) {
    %c0_i32 = arith.constant 0 : i32
    %c0_i32_0 = arith.constant 0 : i32
    %c0_i32_1 = arith.constant 0 : i32
    return %arg0, %c0_i32, %c0_i32_0 : i32, i32, i32
  }
  func.func @transform_18(%arg0: i32) -> (i32, i32, i32) {
    %c0_i32 = arith.constant 0 : i32
    %c0_i32_0 = arith.constant 0 : i32
    %c0_i32_1 = arith.constant 0 : i32
    return %arg0, %c0_i32, %c0_i32_0 : i32, i32, i32
  }
  func.func @transform_19(%arg0: i32) -> (i32, i32, i32) {
    %c0_i32 = arith.constant 0 : i32
    %c0_i32_0 = arith.constant 0 : i32
    %c0_i32_1 = arith.constant 0 : i32
    return %arg0, %c0_i32, %c0_i32_0 : i32, i32, i32
  }
  func.func @transform_20(%arg0: i32) -> (i32, i32, i32) {
    %c0_i32 = arith.constant 0 : i32
    %c0_i32_0 = arith.constant 0 : i32
    %c0_i32_1 = arith.constant 0 : i32
    return %arg0, %c0_i32, %c0_i32_0 : i32, i32, i32
  }
  func.func @transform_21(%arg0: i32) -> (i32, i32, i32) {
    %c0_i32 = arith.constant 0 : i32
    %c0_i32_0 = arith.constant 0 : i32
    %c0_i32_1 = arith.constant 0 : i32
    return %arg0, %c0_i32, %c0_i32_0 : i32, i32, i32
  }
  func.func @transform_22(%arg0: i32) -> (i32, i32, i32) {
    %c0_i32 = arith.constant 0 : i32
    %c0_i32_0 = arith.constant 0 : i32
    %c0_i32_1 = arith.constant 0 : i32
    return %arg0, %c0_i32, %c0_i32_0 : i32, i32, i32
  }
  func.func @transform_23(%arg0: i32) -> (i32, i32, i32) {
    %c0_i32 = arith.constant 0 : i32
    %c0_i32_0 = arith.constant 0 : i32
    %c0_i32_1 = arith.constant 0 : i32
    return %arg0, %c0_i32, %c0_i32_0 : i32, i32, i32
  }
  func.func @transform_24(%arg0: i32) -> (i32, i32) {
    %c0_i32 = arith.constant 0 : i32
    %c0_i32_0 = arith.constant 0 : i32
    %c0_i32_1 = arith.constant 0 : i32
    return %c0_i32, %c0_i32_0 : i32, i32
  }
  func.func @transform_25(%arg0: i32) -> (i32, i32) {
    %c0_i32 = arith.constant 0 : i32
    %c0_i32_0 = arith.constant 0 : i32
    %c0_i32_1 = arith.constant 0 : i32
    return %c0_i32, %c0_i32_0 : i32, i32
  }
  func.func @transform_26(%arg0: i32) -> (i32, i32) {
    %c0_i32 = arith.constant 0 : i32
    %c0_i32_0 = arith.constant 0 : i32
    %c0_i32_1 = arith.constant 0 : i32
    return %c0_i32, %c0_i32_0 : i32, i32
  }
}

</mosaic_0001>

<llo_original>
// kernel: neg.1
$region0: #{neg.1}
  #allocation2 [shape = 's32[1]{0}', space=sflag, size = 0x4, scoped, tag = 'scoped memory for neg.1']
  %s0 = inlined_call_operand.hbm [shape: f32[16,10], index: 0, kind: input, shape index: {}]
  %s1 = inlined_call_operand.vmem [shape: f32[16,10], index: 1, kind: output, shape index: {}]
  $region1: #{neg.1} parent=0
    #allocation0 [shape = 'u8[8192]{0}', space=vmem, size = 0x2000, scoped, tag = 'operand span for operand 0']
    #allocation1 [shape = 's32[1]{0}', space=sflag, size = 0x4, scoped, tag = 'scoped memory for neg.1']
    %2 = vsyncpa [#allocation1], 0
    %4 = vsyncadd [#allocation1], 0
    %s5 = sshll.u32 %s0, 4
    %s6 = int_to_ptr.hbm [resolvable:$true] %s5
    %s7 = sshll.u32 [#allocation0], 4
    %s8 = int_to_ptr.vmem [resolvable:$true] %s7
    %13 = dma.hbm_to_vmem [thread:$0]  %s6, 256, %s8, [#allocation1], 128, 128, 8
    %15 = dma.done [#allocation1], 256
    %v16 = vld [vmem:[#allocation0] sm:$0xff]
    %17 = xla_tuple %v16
    %18 = xla_tuple %17
    %v19 = vxor.u32 %v16, 2147483648
    %20 = xla_tuple %v19
    %21 = vst [vmem:[%s1] sm:$0xff] %v19
    %s22 = scalar_lea.vmem [#allocation0], 8
    %v23 = vld [vmem:[%s22] sm:$0xff]
    %24 = xla_tuple %v23
    %25 = xla_tuple %24
    %v26 = vxor.u32 %v23, 2147483648
    %27 = xla_tuple %v26
    %s28 = scalar_lea.vmem %s1, 8
    %29 = vst [vmem:[%s28] sm:$0xff] %v26
    %30 = vsyncpa [#allocation1], 1

// kernel: pure_transformer_forward.1
$region0: #{pure_transformer_forward.1}
  #allocation0 [shape = 'u32[]', space=smem, size = 0x4, offset = 0x4, fixed_abs, tag = 'smem constant byte address 0x4 - core index']
  #allocation1 [shape = 'u32[72,128]{1,0:T(1,128)}', space=vmem, size = 0x9000, scoped, tag = 'internal scratch']
  #allocation2 [shape = 'f32[16,64]{1,0:T(8,128)}', space=vmem, size = 0x2000, scoped, tag = 'scratch operand']
  %s0 = inlined_call_operand.vmem [shape: f32[16,64], index: 0, kind: input, shape index: {}]
  %s1 = inlined_call_operand.vmem [shape: f32[32,10], index: 1, kind: input, shape index: {}]
  %s2 = inlined_call_operand.vmem [shape: f32[16,10], index: 2, kind: input, shape index: {}]
  %s3 = inlined_call_operand.vmem [shape: f32[2,16], index: 3, kind: input, shape index: {}]
  %s4 = inlined_call_operand.vmem [shape: bf16[10,64], index: 4, kind: input, shape index: {}]
  %s5 = inlined_call_operand.vmem [shape: f32[1,64], index: 5, kind: input, shape index: {}]
  %s6 = inlined_call_operand.vmem [shape: bf16[64,64], index: 6, kind: input, shape index: {}]
  %s7 = inlined_call_operand.vmem [shape: f32[1,64], index: 7, kind: input, shape index: {}]
  %s8 = inlined_call_operand.vmem [shape: bf16[10,64], index: 8, kind: input, shape index: {}]
  %s9 = inlined_call_operand.vmem [shape: f32[1,64], index: 9, kind: input, shape index: {}]
  %s10 = inlined_call_operand.vmem [shape: bf16[64,64], index: 10, kind: input, shape index: {}]
  %s11 = inlined_call_operand.vmem [shape: f32[1,64], index: 11, kind: input, shape index: {}]
  %s12 = inlined_call_operand.vmem [shape: bf16[3,64,192], index: 12, kind: input, shape index: {}]
  %s13 = inlined_call_operand.vmem [shape: f32[3,1,192], index: 13, kind: input, shape index: {}]
  %s14 = inlined_call_operand.vmem [shape: bf16[3,64,64], index: 14, kind: input, shape index: {}]
  %s15 = inlined_call_operand.vmem [shape: f32[3,1,64], index: 15, kind: input, shape index: {}]
  %s16 = inlined_call_operand.vmem [shape: f32[3,1,64], index: 16, kind: input, shape index: {}]
  %s17 = inlined_call_operand.vmem [shape: f32[3,1,64], index: 17, kind: input, shape index: {}]
  %s18 = inlined_call_operand.vmem [shape: bf16[3,64,2048], index: 18, kind: input, shape index: {}]
  %s19 = inlined_call_operand.vmem [shape: f32[3,1,2048], index: 19, kind: input, shape index: {}]
  %s20 = inlined_call_operand.vmem [shape: bf16[3,2048,64], index: 20, kind: input, shape index: {}]
  %s21 = inlined_call_operand.vmem [shape: f32[3,1,64], index: 21, kind: input, shape index: {}]
  %s22 = inlined_call_operand.vmem [shape: f32[3,1,64], index: 22, kind: input, shape index: {}]
  %s23 = inlined_call_operand.vmem [shape: f32[3,1,64], index: 23, kind: input, shape index: {}]
  %s24 = inlined_call_operand.vmem [shape: bf16[64,128], index: 24, kind: input, shape index: {}]
  %s25 = inlined_call_operand.vmem [shape: f32[1,128], index: 25, kind: input, shape index: {}]
  %s26 = inlined_call_operand.hbm [shape: f32[2,128], index: 26, kind: output, shape index: {}]
  %s27 = sld [smem:[#allocation0]]
  $region145: #{pure_transformer_forward.1} parent=0
    _
  %s29 = ssub.s32 1, %s27
  %s30 = scalar_select 0, %s29, %s27
  $region1: #{pure_transformer_forward.1} parent=0
    #allocation3 [shape = 'u8[1024]{0}', space=vmem, size = 0x400, scoped, tag = 'output window, operand 0, single buffered']
    #allocation4 [shape = 's32[2]{0}', space=sflag, size = 0x8, scoped, tag = 'scoped memory for pure_transformer_forward.1']
    %31 = vsyncpa [#allocation4], 0
    loop: start=0, step=1, limit=5
    $region2: #{pure_transformer_forward.1} parent=1 // loop_pre_header
      _
    $region3: #{pure_transformer_forward.1} parent=1 // loop_header
      %s33 = sphi 0, %s37
      %p34 = scmp.ge.s32.totalorder %s33, 5
      %s41 = sphi 0, %s41
      %s43 = sphi 0, %s41
      %s44 = sphi 0, %s43
      %s58 = sphi 0, %s44
      %s62 = sphi 0, %s62
      %s64 = sphi 0, %s62
      %s65 = sphi 0, %s64
      %s79 = sphi 0, %s65
      %s83 = sphi 0, %s83
      %s85 = sphi 0, %s83
      %s86 = sphi 0, %s85
      %s100 = sphi 0, %s86
      %s104 = sphi 0, %s104
      %s106 = sphi 0, %s104
      %s107 = sphi 0, %s106
      %s121 = sphi 0, %s107
      %s125 = sphi 0, %s125
      %s127 = sphi 0, %s125
      %s128 = sphi 0, %s127
      %s142 = sphi 0, %s128
      %s146 = sphi 0, %s146
      %s148 = sphi 0, %s146
      %s149 = sphi 0, %s148
      %s163 = sphi 0, %s149
      %s167 = sphi 0, %s167
      %s169 = sphi 0, %s167
      %s170 = sphi 0, %s169
      %s184 = sphi 0, %s170
      %s188 = sphi 0, %s188
      %s190 = sphi 0, %s188
      %s191 = sphi 0, %s190
      %s205 = sphi 0, %s191
      %s209 = sphi 0, %s209
      %s211 = sphi 0, %s209
      %s212 = sphi 0, %s211
      %s226 = sphi 0, %s212
      %s230 = sphi 0, %s230
      %s232 = sphi 0, %s230
      %s233 = sphi 0, %s232
      %s247 = sphi 0, %s233
      %s251 = sphi 0, %s251
      %s253 = sphi 0, %s251
      %s254 = sphi 0, %s253
      %s268 = sphi 0, %s254
      %s272 = sphi 0, %s272
      %s274 = sphi 0, %s272
      %s275 = sphi 0, %s274
      %s289 = sphi 0, %s275
      %s295 = sphi 0, %s297
      %s298 = sphi 0, %s295
      %s299 = sphi 0, %s298
      %s315 = sphi 0, %s299
      %s321 = sphi 0, %s323
      %s324 = sphi 0, %s321
      %s325 = sphi 0, %s324
      %s341 = sphi 0, %s325
      %s347 = sphi 0, %s349
      %s350 = sphi 0, %s347
      %s351 = sphi 0, %s350
      %s367 = sphi 0, %s351
      %s373 = sphi 0, %s375
      %s376 = sphi 0, %s373
      %s377 = sphi 0, %s376
      %s393 = sphi 0, %s377
      %s399 = sphi 0, %s401
      %s402 = sphi 0, %s399
      %s403 = sphi 0, %s402
      %s419 = sphi 0, %s403
      %s425 = sphi 0, %s427
      %s428 = sphi 0, %s425
      %s429 = sphi 0, %s428
      %s445 = sphi 0, %s429
      %s451 = sphi 0, %s453
      %s454 = sphi 0, %s451
      %s455 = sphi 0, %s454
      %s471 = sphi 0, %s455
      %s477 = sphi 0, %s479
      %s480 = sphi 0, %s477
      %s481 = sphi 0, %s480
      %s497 = sphi 0, %s481
      %s503 = sphi 0, %s505
      %s506 = sphi 0, %s503
      %s507 = sphi 0, %s506
      %s523 = sphi 0, %s507
      %s529 = sphi 0, %s531
      %s532 = sphi 0, %s529
      %s533 = sphi 0, %s532
      %s549 = sphi 0, %s533
      %s555 = sphi 0, %s557
      %s558 = sphi 0, %s555
      %s559 = sphi 0, %s558
      %s575 = sphi 0, %s559
      %s581 = sphi 0, %s583
      %s584 = sphi 0, %s581
      %s585 = sphi 0, %s584
      %s601 = sphi 0, %s585
      %s605 = sphi 0, %s605
      %s607 = sphi 0, %s605
      %s608 = sphi 0, %s607
      %s622 = sphi 0, %s608
      %s626 = sphi 0, %s626
      %s628 = sphi 0, %s626
      %s629 = sphi 0, %s628
      %s643 = sphi 0, %s629
      %s647 = sphi 0, %s647
      %s649 = sphi 0, %s647
      %s650 = sphi 0, %s649
      %s664 = sphi 0, %s650
    $region4: #{pure_transformer_forward.1} parent=1 // loop_header_branch
      %36 = sbr.rel (%p34) target = $region8
    $region5: #{pure_transformer_forward.1} parent=1 // loop_body
      %s38 = ssub.s32 %s33, 1
      %s39 = ssub.s32 %s33, 2
      %s40 = sadd.s32 %s33, 1
      %s42 = sadd.s32 %s41, 1
      %p45 = scmp.eq.s32.totalorder %s33, 2
      %p46 = scmp.ne.s32.totalorder %s41, %s43
      %p47 = scmp.eq.s32.totalorder %s33, 0
      %p48 = por %p46, %p47
      %p49 = scmp.ne.s32.totalorder %s41, %s43
      %p50 = scmp.eq.s32.totalorder %s38, 2
      %p51 = por %p49, %p50
      %p52 = scmp.ne.s32.totalorder %s43, %s44
      %p53 = scmp.eq.s32.totalorder %s38, 0
      %p54 = por %p52, %p53
      %p55 = scmp.ne.s32.totalorder %s43, %s44
      %p56 = scmp.eq.s32.totalorder %s39, 2
      %p57 = por %p55, %p56
      %p59 = scmp.ne.s32.totalorder %s44, %s58
      %p60 = scmp.eq.s32.totalorder %s39, 0
      %p61 = por %p59, %p60
      %s63 = sadd.s32 %s62, 1
      %p66 = scmp.eq.s32.totalorder %s33, 2
      %p67 = scmp.ne.s32.totalorder %s62, %s64
      %p68 = scmp.eq.s32.totalorder %s33, 0
      %p69 = por %p67, %p68
      %p70 = scmp.ne.s32.totalorder %s62, %s64
      %p71 = scmp.eq.s32.totalorder %s38, 2
      %p72 = por %p70, %p71
      %p73 = scmp.ne.s32.totalorder %s64, %s65
      %p74 = scmp.eq.s32.totalorder %s38, 0
      %p75 = por %p73, %p74
      %p76 = scmp.ne.s32.totalorder %s64, %s65
      %p77 = scmp.eq.s32.totalorder %s39, 2
      %p78 = por %p76, %p77
      %p80 = scmp.ne.s32.totalorder %s65, %s79
      %p81 = scmp.eq.s32.totalorder %s39, 0
      %p82 = por %p80, %p81
      %s84 = sadd.s32 %s83, 1
      %p87 = scmp.eq.s32.totalorder %s33, 2
      %p88 = scmp.ne.s32.totalorder %s83, %s85
      %p89 = scmp.eq.s32.totalorder %s33, 0
      %p90 = por %p88, %p89
      %p91 = scmp.ne.s32.totalorder %s83, %s85
      %p92 = scmp.eq.s32.totalorder %s38, 2
      %p93 = por %p91, %p92
      %p94 = scmp.ne.s32.totalorder %s85, %s86
      %p95 = scmp.eq.s32.totalorder %s38, 0
      %p96 = por %p94, %p95
      %p97 = scmp.ne.s32.totalorder %s85, %s86
      %p98 = scmp.eq.s32.totalorder %s39, 2
      %p99 = por %p97, %p98
      %p101 = scmp.ne.s32.totalorder %s86, %s100
      %p102 = scmp.eq.s32.totalorder %s39, 0
      %p103 = por %p101, %p102
      %s105 = sadd.s32 %s104, 1
      %p108 = scmp.eq.s32.totalorder %s33, 2
      %p109 = scmp.ne.s32.totalorder %s104, %s106
      %p110 = scmp.eq.s32.totalorder %s33, 0
      %p111 = por %p109, %p110
      %p112 = scmp.ne.s32.totalorder %s104, %s106
      %p113 = scmp.eq.s32.totalorder %s38, 2
      %p114 = por %p112, %p113
      %p115 = scmp.ne.s32.totalorder %s106, %s107
      %p116 = scmp.eq.s32.totalorder %s38, 0
      %p117 = por %p115, %p116
      %p118 = scmp.ne.s32.totalorder %s106, %s107
      %p119 = scmp.eq.s32.totalorder %s39, 2
      %p120 = por %p118, %p119
      %p122 = scmp.ne.s32.totalorder %s107, %s121
      %p123 = scmp.eq.s32.totalorder %s39, 0
      %p124 = por %p122, %p123
      %s126 = sadd.s32 %s125, 1
      %p129 = scmp.eq.s32.totalorder %s33, 2
      %p130 = scmp.ne.s32.totalorder %s125, %s127
      %p131 = scmp.eq.s32.totalorder %s33, 0
      %p132 = por %p130, %p131
      %p133 = scmp.ne.s32.totalorder %s125, %s127
      %p134 = scmp.eq.s32.totalorder %s38, 2
      %p135 = por %p133, %p134
      %p136 = scmp.ne.s32.totalorder %s127, %s128
      %p137 = scmp.eq.s32.totalorder %s38, 0
      %p138 = por %p136, %p137
      %p139 = scmp.ne.s32.totalorder %s127, %s128
      %p140 = scmp.eq.s32.totalorder %s39, 2
      %p141 = por %p139, %p140
      %p143 = scmp.ne.s32.totalorder %s128, %s142
      %p144 = scmp.eq.s32.totalorder %s39, 0
      %p145 = por %p143, %p144
      %s147 = sadd.s32 %s146, 1
      %p150 = scmp.eq.s32.totalorder %s33, 2
      %p151 = scmp.ne.s32.totalorder %s146, %s148
      %p152 = scmp.eq.s32.totalorder %s33, 0
      %p153 = por %p151, %p152
      %p154 = scmp.ne.s32.totalorder %s146, %s148
      %p155 = scmp.eq.s32.totalorder %s38, 2
      %p156 = por %p154, %p155
      %p157 = scmp.ne.s32.totalorder %s148, %s149
      %p158 = scmp.eq.s32.totalorder %s38, 0
      %p159 = por %p157, %p158
      %p160 = scmp.ne.s32.totalorder %s148, %s149
      %p161 = scmp.eq.s32.totalorder %s39, 2
      %p162 = por %p160, %p161
      %p164 = scmp.ne.s32.totalorder %s149, %s163
      %p165 = scmp.eq.s32.totalorder %s39, 0
      %p166 = por %p164, %p165
      %s168 = sadd.s32 %s167, 1
      %p171 = scmp.eq.s32.totalorder %s33, 2
      %p172 = scmp.ne.s32.totalorder %s167, %s169
      %p173 = scmp.eq.s32.totalorder %s33, 0
      %p174 = por %p172, %p173
      %p175 = scmp.ne.s32.totalorder %s167, %s169
      %p176 = scmp.eq.s32.totalorder %s38, 2
      %p177 = por %p175, %p176
      %p178 = scmp.ne.s32.totalorder %s169, %s170
      %p179 = scmp.eq.s32.totalorder %s38, 0
      %p180 = por %p178, %p179
      %p181 = scmp.ne.s32.totalorder %s169, %s170
      %p182 = scmp.eq.s32.totalorder %s39, 2
      %p183 = por %p181, %p182
      %p185 = scmp.ne.s32.totalorder %s170, %s184
      %p186 = scmp.eq.s32.totalorder %s39, 0
      %p187 = por %p185, %p186
      %s189 = sadd.s32 %s188, 1
      %p192 = scmp.eq.s32.totalorder %s33, 2
      %p193 = scmp.ne.s32.totalorder %s188, %s190
      %p194 = scmp.eq.s32.totalorder %s33, 0
      %p195 = por %p193, %p194
      %p196 = scmp.ne.s32.totalorder %s188, %s190
      %p197 = scmp.eq.s32.totalorder %s38, 2
      %p198 = por %p196, %p197
      %p199 = scmp.ne.s32.totalorder %s190, %s191
      %p200 = scmp.eq.s32.totalorder %s38, 0
      %p201 = por %p199, %p200
      %p202 = scmp.ne.s32.totalorder %s190, %s191
      %p203 = scmp.eq.s32.totalorder %s39, 2
      %p204 = por %p202, %p203
      %p206 = scmp.ne.s32.totalorder %s191, %s205
      %p207 = scmp.eq.s32.totalorder %s39, 0
      %p208 = por %p206, %p207
      %s210 = sadd.s32 %s209, 1
      %p213 = scmp.eq.s32.totalorder %s33, 2
      %p214 = scmp.ne.s32.totalorder %s209, %s211
      %p215 = scmp.eq.s32.totalorder %s33, 0
      %p216 = por %p214, %p215
      %p217 = scmp.ne.s32.totalorder %s209, %s211
      %p218 = scmp.eq.s32.totalorder %s38, 2
      %p219 = por %p217, %p218
      %p220 = scmp.ne.s32.totalorder %s211, %s212
      %p221 = scmp.eq.s32.totalorder %s38, 0
      %p222 = por %p220, %p221
      %p223 = scmp.ne.s32.totalorder %s211, %s212
      %p224 = scmp.eq.s32.totalorder %s39, 2
      %p225 = por %p223, %p224
      %p227 = scmp.ne.s32.totalorder %s212, %s226
      %p228 = scmp.eq.s32.totalorder %s39, 0
      %p229 = por %p227, %p228
      %s231 = sadd.s32 %s230, 1
      %p234 = scmp.eq.s32.totalorder %s33, 2
      %p235 = scmp.ne.s32.totalorder %s230, %s232
      %p236 = scmp.eq.s32.totalorder %s33, 0
      %p237 = por %p235, %p236
      %p238 = scmp.ne.s32.totalorder %s230, %s232
      %p239 = scmp.eq.s32.totalorder %s38, 2
      %p240 = por %p238, %p239
      %p241 = scmp.ne.s32.totalorder %s232, %s233
      %p242 = scmp.eq.s32.totalorder %s38, 0
      %p243 = por %p241, %p242
      %p244 = scmp.ne.s32.totalorder %s232, %s233
      %p245 = scmp.eq.s32.totalorder %s39, 2
      %p246 = por %p244, %p245
      %p248 = scmp.ne.s32.totalorder %s233, %s247
      %p249 = scmp.eq.s32.totalorder %s39, 0
      %p250 = por %p248, %p249
      %s252 = sadd.s32 %s251, 1
      %p255 = scmp.eq.s32.totalorder %s33, 2
      %p256 = scmp.ne.s32.totalorder %s251, %s253
      %p257 = scmp.eq.s32.totalorder %s33, 0
      %p258 = por %p256, %p257
      %p259 = scmp.ne.s32.totalorder %s251, %s253
      %p260 = scmp.eq.s32.totalorder %s38, 2
      %p261 = por %p259, %p260
      %p262 = scmp.ne.s32.totalorder %s253, %s254
      %p263 = scmp.eq.s32.totalorder %s38, 0
      %p264 = por %p262, %p263
      %p265 = scmp.ne.s32.totalorder %s253, %s254
      %p266 = scmp.eq.s32.totalorder %s39, 2
      %p267 = por %p265, %p266
      %p269 = scmp.ne.s32.totalorder %s254, %s268
      %p270 = scmp.eq.s32.totalorder %s39, 0
      %p271 = por %p269, %p270
      %s273 = sadd.s32 %s272, 1
      %p276 = scmp.eq.s32.totalorder %s33, 2
      %p277 = scmp.ne.s32.totalorder %s272, %s274
      %p278 = scmp.eq.s32.totalorder %s33, 0
      %p279 = por %p277, %p278
      %p280 = scmp.ne.s32.totalorder %s272, %s274
      %p281 = scmp.eq.s32.totalorder %s38, 2
      %p282 = por %p280, %p281
      %p283 = scmp.ne.s32.totalorder %s274, %s275
      %p284 = scmp.eq.s32.totalorder %s38, 0
      %p285 = por %p283, %p284
      %p286 = scmp.ne.s32.totalorder %s274, %s275
      %p287 = scmp.eq.s32.totalorder %s39, 2
      %p288 = por %p286, %p287
      %p290 = scmp.ne.s32.totalorder %s275, %s289
      %p291 = scmp.eq.s32.totalorder %s39, 0
      %p292 = por %p290, %p291
      %s293 = ssub.s32 %s33, %s40
      %p294 = scmp.eq.s32.totalorder %s293, 0
      %s296 = sadd.s32 %s295, 1
      %s297 = scalar_select %p294, %s295, %s296
      %p300 = pneg %p294
      %p301 = scmp.eq.s32.totalorder %s33, 2
      %p302 = por %p300, %p301
      %p303 = scmp.ne.s32.totalorder %s295, %s298
      %p304 = scmp.eq.s32.totalorder %s33, 0
      %p305 = por %p303, %p304
      %p306 = scmp.ne.s32.totalorder %s295, %s298
      %p307 = scmp.eq.s32.totalorder %s38, 2
      %p308 = por %p306, %p307
      %p309 = scmp.ne.s32.totalorder %s298, %s299
      %p310 = scmp.eq.s32.totalorder %s38, 0
      %p311 = por %p309, %p310
      %p312 = scmp.ne.s32.totalorder %s298, %s299
      %p313 = scmp.eq.s32.totalorder %s39, 2
      %p314 = por %p312, %p313
      %p316 = scmp.ne.s32.totalorder %s299, %s315
      %p317 = scmp.eq.s32.totalorder %s39, 0
      %p318 = por %p316, %p317
      %s319 = ssub.s32 %s33, %s40
      %p320 = scmp.eq.s32.totalorder %s319, 0
      %s322 = sadd.s32 %s321, 1
      %s323 = scalar_select %p320, %s321, %s322
      %p326 = pneg %p320
      %p327 = scmp.eq.s32.totalorder %s33, 2
      %p328 = por %p326, %p327
      %p329 = scmp.ne.s32.totalorder %s321, %s324
      %p330 = scmp.eq.s32.totalorder %s33, 0
      %p331 = por %p329, %p330
      %p332 = scmp.ne.s32.totalorder %s321, %s324
      %p333 = scmp.eq.s32.totalorder %s38, 2
      %p334 = por %p332, %p333
      %p335 = scmp.ne.s32.totalorder %s324, %s325
      %p336 = scmp.eq.s32.totalorder %s38, 0
      %p337 = por %p335, %p336
      %p338 = scmp.ne.s32.totalorder %s324, %s325
      %p339 = scmp.eq.s32.totalorder %s39, 2
      %p340 = por %p338, %p339
      %p342 = scmp.ne.s32.totalorder %s325, %s341
      %p343 = scmp.eq.s32.totalorder %s39, 0
      %p344 = por %p342, %p343
      %s345 = ssub.s32 %s33, %s40
      %p346 = scmp.eq.s32.totalorder %s345, 0
      %s348 = sadd.s32 %s347, 1
      %s349 = scalar_select %p346, %s347, %s348
      %p352 = pneg %p346
      %p353 = scmp.eq.s32.totalorder %s33, 2
      %p354 = por %p352, %p353
      %p355 = scmp.ne.s32.totalorder %s347, %s350
      %p356 = scmp.eq.s32.totalorder %s33, 0
      %p357 = por %p355, %p356
      %p358 = scmp.ne.s32.totalorder %s347, %s350
      %p359 = scmp.eq.s32.totalorder %s38, 2
      %p360 = por %p358, %p359
      %p361 = scmp.ne.s32.totalorder %s350, %s351
      %p362 = scmp.eq.s32.totalorder %s38, 0
      %p363 = por %p361, %p362
      %p364 = scmp.ne.s32.totalorder %s350, %s351
      %p365 = scmp.eq.s32.totalorder %s39, 2
      %p366 = por %p364, %p365
      %p368 = scmp.ne.s32.totalorder %s351, %s367
      %p369 = scmp.eq.s32.totalorder %s39, 0
      %p370 = por %p368, %p369
      %s371 = ssub.s32 %s33, %s40
      %p372 = scmp.eq.s32.totalorder %s371, 0
      %s374 = sadd.s32 %s373, 1
      %s375 = scalar_select %p372, %s373, %s374
      %p378 = pneg %p372
      %p379 = scmp.eq.s32.totalorder %s33, 2
      %p380 = por %p378, %p379
      %p381 = scmp.ne.s32.totalorder %s373, %s376
      %p382 = scmp.eq.s32.totalorder %s33, 0
      %p383 = por %p381, %p382
      %p384 = scmp.ne.s32.totalorder %s373, %s376
      %p385 = scmp.eq.s32.totalorder %s38, 2
      %p386 = por %p384, %p385
      %p387 = scmp.ne.s32.totalorder %s376, %s377
      %p388 = scmp.eq.s32.totalorder %s38, 0
      %p389 = por %p387, %p388
      %p390 = scmp.ne.s32.totalorder %s376, %s377
      %p391 = scmp.eq.s32.totalorder %s39, 2
      %p392 = por %p390, %p391
      %p394 = scmp.ne.s32.totalorder %s377, %s393
      %p395 = scmp.eq.s32.totalorder %s39, 0
      %p396 = por %p394, %p395
      %s397 = ssub.s32 %s33, %s40
      %p398 = scmp.eq.s32.totalorder %s397, 0
      %s400 = sadd.s32 %s399, 1
      %s401 = scalar_select %p398, %s399, %s400
      %p404 = pneg %p398
      %p405 = scmp.eq.s32.totalorder %s33, 2
      %p406 = por %p404, %p405
      %p407 = scmp.ne.s32.totalorder %s399, %s402
      %p408 = scmp.eq.s32.totalorder %s33, 0
      %p409 = por %p407, %p408
      %p410 = scmp.ne.s32.totalorder %s399, %s402
      %p411 = scmp.eq.s32.totalorder %s38, 2
      %p412 = por %p410, %p411
      %p413 = scmp.ne.s32.totalorder %s402, %s403
      %p414 = scmp.eq.s32.totalorder %s38, 0
      %p415 = por %p413, %p414
      %p416 = scmp.ne.s32.totalorder %s402, %s403
      %p417 = scmp.eq.s32.totalorder %s39, 2
      %p418 = por %p416, %p417
      %p420 = scmp.ne.s32.totalorder %s403, %s419
      %p421 = scmp.eq.s32.totalorder %s39, 0
      %p422 = por %p420, %p421
      %s423 = ssub.s32 %s33, %s40
      %p424 = scmp.eq.s32.totalorder %s423, 0
      %s426 = sadd.s32 %s425, 1
      %s427 = scalar_select %p424, %s425, %s426
      %p430 = pneg %p424
      %p431 = scmp.eq.s32.totalorder %s33, 2
      %p432 = por %p430, %p431
      %p433 = scmp.ne.s32.totalorder %s425, %s428
      %p434 = scmp.eq.s32.totalorder %s33, 0
      %p435 = por %p433, %p434
      %p436 = scmp.ne.s32.totalorder %s425, %s428
      %p437 = scmp.eq.s32.totalorder %s38, 2
      %p438 = por %p436, %p437
      %p439 = scmp.ne.s32.totalorder %s428, %s429
      %p440 = scmp.eq.s32.totalorder %s38, 0
      %p441 = por %p439, %p440
      %p442 = scmp.ne.s32.totalorder %s428, %s429
      %p443 = scmp.eq.s32.totalorder %s39, 2
      %p444 = por %p442, %p443
      %p446 = scmp.ne.s32.totalorder %s429, %s445
      %p447 = scmp.eq.s32.totalorder %s39, 0
      %p448 = por %p446, %p447
      %s449 = ssub.s32 %s33, %s40
      %p450 = scmp.eq.s32.totalorder %s449, 0
      %s452 = sadd.s32 %s451, 1
      %s453 = scalar_select %p450, %s451, %s452
      %p456 = pneg %p450
      %p457 = scmp.eq.s32.totalorder %s33, 2
      %p458 = por %p456, %p457
      %p459 = scmp.ne.s32.totalorder %s451, %s454
      %p460 = scmp.eq.s32.totalorder %s33, 0
      %p461 = por %p459, %p460
      %p462 = scmp.ne.s32.totalorder %s451, %s454
      %p463 = scmp.eq.s32.totalorder %s38, 2
      %p464 = por %p462, %p463
      %p465 = scmp.ne.s32.totalorder %s454, %s455
      %p466 = scmp.eq.s32.totalorder %s38, 0
      %p467 = por %p465, %p466
      %p468 = scmp.ne.s32.totalorder %s454, %s455
      %p469 = scmp.eq.s32.totalorder %s39, 2
      %p470 = por %p468, %p469
      %p472 = scmp.ne.s32.totalorder %s455, %s471
      %p473 = scmp.eq.s32.totalorder %s39, 0
      %p474 = por %p472, %p473
      %s475 = ssub.s32 %s33, %s40
      %p476 = scmp.eq.s32.totalorder %s475, 0
      %s478 = sadd.s32 %s477, 1
      %s479 = scalar_select %p476, %s477, %s478
      %p482 = pneg %p476
      %p483 = scmp.eq.s32.totalorder %s33, 2
      %p484 = por %p482, %p483
      %p485 = scmp.ne.s32.totalorder %s477, %s480
      %p486 = scmp.eq.s32.totalorder %s33, 0
      %p487 = por %p485, %p486
      %p488 = scmp.ne.s32.totalorder %s477, %s480
      %p489 = scmp.eq.s32.totalorder %s38, 2
      %p490 = por %p488, %p489
      %p491 = scmp.ne.s32.totalorder %s480, %s481
      %p492 = scmp.eq.s32.totalorder %s38, 0
      %p493 = por %p491, %p492
      %p494 = scmp.ne.s32.totalorder %s480, %s481
      %p495 = scmp.eq.s32.totalorder %s39, 2
      %p496 = por %p494, %p495
      %p498 = scmp.ne.s32.totalorder %s481, %s497
      %p499 = scmp.eq.s32.totalorder %s39, 0
      %p500 = por %p498, %p499
      %s501 = ssub.s32 %s33, %s40
      %p502 = scmp.eq.s32.totalorder %s501, 0
      %s504 = sadd.s32 %s503, 1
      %s505 = scalar_select %p502, %s503, %s504
      %p508 = pneg %p502
      %p509 = scmp.eq.s32.totalorder %s33, 2
      %p510 = por %p508, %p509
      %p511 = scmp.ne.s32.totalorder %s503, %s506
      %p512 = scmp.eq.s32.totalorder %s33, 0
      %p513 = por %p511, %p512
      %p514 = scmp.ne.s32.totalorder %s503, %s506
      %p515 = scmp.eq.s32.totalorder %s38, 2
      %p516 = por %p514, %p515
      %p517 = scmp.ne.s32.totalorder %s506, %s507
      %p518 = scmp.eq.s32.totalorder %s38, 0
      %p519 = por %p517, %p518
      %p520 = scmp.ne.s32.totalorder %s506, %s507
      %p521 = scmp.eq.s32.totalorder %s39, 2
      %p522 = por %p520, %p521
      %p524 = scmp.ne.s32.totalorder %s507, %s523
      %p525 = scmp.eq.s32.totalorder %s39, 0
      %p526 = por %p524, %p525
      %s527 = ssub.s32 %s33, %s40
      %p528 = scmp.eq.s32.totalorder %s527, 0
      %s530 = sadd.s32 %s529, 1
      %s531 = scalar_select %p528, %s529, %s530
      %p534 = pneg %p528
      %p535 = scmp.eq.s32.totalorder %s33, 2
      %p536 = por %p534, %p535
      %p537 = scmp.ne.s32.totalorder %s529, %s532
      %p538 = scmp.eq.s32.totalorder %s33, 0
      %p539 = por %p537, %p538
      %p540 = scmp.ne.s32.totalorder %s529, %s532
      %p541 = scmp.eq.s32.totalorder %s38, 2
      %p542 = por %p540, %p541
      %p543 = scmp.ne.s32.totalorder %s532, %s533
      %p544 = scmp.eq.s32.totalorder %s38, 0
      %p545 = por %p543, %p544
      %p546 = scmp.ne.s32.totalorder %s532, %s533
      %p547 = scmp.eq.s32.totalorder %s39, 2
      %p548 = por %p546, %p547
      %p550 = scmp.ne.s32.totalorder %s533, %s549
      %p551 = scmp.eq.s32.totalorder %s39, 0
      %p552 = por %p550, %p551
      %s553 = ssub.s32 %s33, %s40
      %p554 = scmp.eq.s32.totalorder %s553, 0
      %s556 = sadd.s32 %s555, 1
      %s557 = scalar_select %p554, %s555, %s556
      %p560 = pneg %p554
      %p561 = scmp.eq.s32.totalorder %s33, 2
      %p562 = por %p560, %p561
      %p563 = scmp.ne.s32.totalorder %s555, %s558
      %p564 = scmp.eq.s32.totalorder %s33, 0
      %p565 = por %p563, %p564
      %p566 = scmp.ne.s32.totalorder %s555, %s558
      %p567 = scmp.eq.s32.totalorder %s38, 2
      %p568 = por %p566, %p567
      %p569 = scmp.ne.s32.totalorder %s558, %s559
      %p570 = scmp.eq.s32.totalorder %s38, 0
      %p571 = por %p569, %p570
      %p572 = scmp.ne.s32.totalorder %s558, %s559
      %p573 = scmp.eq.s32.totalorder %s39, 2
      %p574 = por %p572, %p573
      %p576 = scmp.ne.s32.totalorder %s559, %s575
      %p577 = scmp.eq.s32.totalorder %s39, 0
      %p578 = por %p576, %p577
      %s579 = ssub.s32 %s33, %s40
      %p580 = scmp.eq.s32.totalorder %s579, 0
      %s582 = sadd.s32 %s581, 1
      %s583 = scalar_select %p580, %s581, %s582
      %p586 = pneg %p580
      %p587 = scmp.eq.s32.totalorder %s33, 2
      %p588 = por %p586, %p587
      %p589 = scmp.ne.s32.totalorder %s581, %s584
      %p590 = scmp.eq.s32.totalorder %s33, 0
      %p591 = por %p589, %p590
      %p592 = scmp.ne.s32.totalorder %s581, %s584
      %p593 = scmp.eq.s32.totalorder %s38, 2
      %p594 = por %p592, %p593
      %p595 = scmp.ne.s32.totalorder %s584, %s585
      %p596 = scmp.eq.s32.totalorder %s38, 0
      %p597 = por %p595, %p596
      %p598 = scmp.ne.s32.totalorder %s584, %s585
      %p599 = scmp.eq.s32.totalorder %s39, 2
      %p600 = por %p598, %p599
      %p602 = scmp.ne.s32.totalorder %s585, %s601
      %p603 = scmp.eq.s32.totalorder %s39, 0
      %p604 = por %p602, %p603
      %s606 = sadd.s32 %s605, 1
      %p609 = scmp.eq.s32.totalorder %s33, 2
      %p610 = scmp.ne.s32.totalorder %s605, %s607
      %p611 = scmp.eq.s32.totalorder %s33, 0
      %p612 = por %p610, %p611
      %p613 = scmp.ne.s32.totalorder %s605, %s607
      %p614 = scmp.eq.s32.totalorder %s38, 2
      %p615 = por %p613, %p614
      %p616 = scmp.ne.s32.totalorder %s607, %s608
      %p617 = scmp.eq.s32.totalorder %s38, 0
      %p618 = por %p616, %p617
      %p619 = scmp.ne.s32.totalorder %s607, %s608
      %p620 = scmp.eq.s32.totalorder %s39, 2
      %p621 = por %p619, %p620
      %p623 = scmp.ne.s32.totalorder %s608, %s622
      %p624 = scmp.eq.s32.totalorder %s39, 0
      %p625 = por %p623, %p624
      %s627 = sadd.s32 %s626, 1
      %p630 = scmp.eq.s32.totalorder %s33, 2
      %p631 = scmp.ne.s32.totalorder %s626, %s628
      %p632 = scmp.eq.s32.totalorder %s33, 0
      %p633 = por %p631, %p632
      %p634 = scmp.ne.s32.totalorder %s626, %s628
      %p635 = scmp.eq.s32.totalorder %s38, 2
      %p636 = por %p634, %p635
      %p637 = scmp.ne.s32.totalorder %s628, %s629
      %p638 = scmp.eq.s32.totalorder %s38, 0
      %p639 = por %p637, %p638
      %p640 = scmp.ne.s32.totalorder %s628, %s629
      %p641 = scmp.eq.s32.totalorder %s39, 2
      %p642 = por %p640, %p641
      %p644 = scmp.ne.s32.totalorder %s629, %s643
      %p645 = scmp.eq.s32.totalorder %s39, 0
      %p646 = por %p644, %p645
      %s648 = sadd.s32 %s647, 1
      %p651 = scmp.eq.s32.totalorder %s33, 2
      %p652 = scmp.ne.s32.totalorder %s647, %s649
      %p653 = scmp.eq.s32.totalorder %s33, 0
      %p654 = por %p652, %p653
      %p655 = scmp.ne.s32.totalorder %s647, %s649
      %p656 = scmp.eq.s32.totalorder %s38, 2
      %p657 = por %p655, %p656
      %p658 = scmp.ne.s32.totalorder %s649, %s650
      %p659 = scmp.eq.s32.totalorder %s38, 0
      %p660 = por %p658, %p659
      %p661 = scmp.ne.s32.totalorder %s649, %s650
      %p662 = scmp.eq.s32.totalorder %s39, 2
      %p663 = por %p661, %p662
      %p665 = scmp.ne.s32.totalorder %s650, %s664
      %p666 = scmp.eq.s32.totalorder %s39, 0
      %p667 = por %p665, %p666
      %p668 = scmp.le.s32.totalorder 1, %s33
      %p669 = scmp.lt.s32.totalorder %s33, 4
      %p670 = pnand %p668, %p669
      %p671 = pneg %p670
      // Predicated region
      $region9: #{pure_transformer_forward.1} parent=5 // pred_check
        _
      $region10: #{pure_transformer_forward.1} parent=5 // pred_check_branch
        %673 = sbr.rel (%p670) target = $region12
      $region11: #{pure_transformer_forward.1} parent=5 // pred_region
        %s674 = ssub.s32 %s33, 1
        // Predicated region
        $region13: #{pure_transformer_forward.1} parent=11 // pred_check
          %p675 = pneg %p54
        $region14: #{pure_transformer_forward.1} parent=11 // pred_check_branch
          %677 = sbr.rel (%p675) target = $region16
        $region15: #{pure_transformer_forward.1} parent=11 // pred_region
          _
        $region16: #{pure_transformer_forward.1} parent=11 // pred_fallthru
          _
        // Predicated region
        $region17: #{pure_transformer_forward.1} parent=11 // pred_check
          %p678 = pneg %p75
        $region18: #{pure_transformer_forward.1} parent=11 // pred_check_branch
          %680 = sbr.rel (%p678) target = $region20
        $region19: #{pure_transformer_forward.1} parent=11 // pred_region
          _
        $region20: #{pure_transformer_forward.1} parent=11 // pred_fallthru
          _
        // Predicated region
        $region21: #{pure_transformer_forward.1} parent=11 // pred_check
          %p681 = pneg %p96
        $region22: #{pure_transformer_forward.1} parent=11 // pred_check_branch
          %683 = sbr.rel (%p681) target = $region24
        $region23: #{pure_transformer_forward.1} parent=11 // pred_region
          _
        $region24: #{pure_transformer_forward.1} parent=11 // pred_fallthru
          _
        // Predicated region
        $region25: #{pure_transformer_forward.1} parent=11 // pred_check
          %p684 = pneg %p117
        $region26: #{pure_transformer_forward.1} parent=11 // pred_check_branch
          %686 = sbr.rel (%p684) target = $region28
        $region27: #{pure_transformer_forward.1} parent=11 // pred_region
          _
        $region28: #{pure_transformer_forward.1} parent=11 // pred_fallthru
          _
        // Predicated region
        $region29: #{pure_transformer_forward.1} parent=11 // pred_check
          %p687 = pneg %p138
        $region30: #{pure_transformer_forward.1} parent=11 // pred_check_branch
          %689 = sbr.rel (%p687) target = $region32
        $region31: #{pure_transformer_forward.1} parent=11 // pred_region
          _
        $region32: #{pure_transformer_forward.1} parent=11 // pred_fallthru
          _
        // Predicated region
        $region33: #{pure_transformer_forward.1} parent=11 // pred_check
          %p690 = pneg %p159
        $region34: #{pure_transformer_forward.1} parent=11 // pred_check_branch
          %692 = sbr.rel (%p690) target = $region36
        $region35: #{pure_transformer_forward.1} parent=11 // pred_region
          _
        $region36: #{pure_transformer_forward.1} parent=11 // pred_fallthru
          _
        // Predicated region
        $region37: #{pure_transformer_forward.1} parent=11 // pred_check
          %p693 = pneg %p180
        $region38: #{pure_transformer_forward.1} parent=11 // pred_check_branch
          %695 = sbr.rel (%p693) target = $region40
        $region39: #{pure_transformer_forward.1} parent=11 // pred_region
          _
        $region40: #{pure_transformer_forward.1} parent=11 // pred_fallthru
          _
        // Predicated region
        $region41: #{pure_transformer_forward.1} parent=11 // pred_check
          %p696 = pneg %p201
        $region42: #{pure_transformer_forward.1} parent=11 // pred_check_branch
          %698 = sbr.rel (%p696) target = $region44
        $region43: #{pure_transformer_forward.1} parent=11 // pred_region
          _
        $region44: #{pure_transformer_forward.1} parent=11 // pred_fallthru
          _
        // Predicated region
        $region45: #{pure_transformer_forward.1} parent=11 // pred_check
          %p699 = pneg %p222
        $region46: #{pure_transformer_forward.1} parent=11 // pred_check_branch
          %701 = sbr.rel (%p699) target = $region48
        $region47: #{pure_transformer_forward.1} parent=11 // pred_region
          _
        $region48: #{pure_transformer_forward.1} parent=11 // pred_fallthru
          _
        // Predicated region
        $region49: #{pure_transformer_forward.1} parent=11 // pred_check
          %p702 = pneg %p243
        $region50: #{pure_transformer_forward.1} parent=11 // pred_check_branch
          %704 = sbr.rel (%p702) target = $region52
        $region51: #{pure_transformer_forward.1} parent=11 // pred_region
          _
        $region52: #{pure_transformer_forward.1} parent=11 // pred_fallthru
          _
        // Predicated region
        $region53: #{pure_transformer_forward.1} parent=11 // pred_check
          %p705 = pneg %p264
        $region54: #{pure_transformer_forward.1} parent=11 // pred_check_branch
          %707 = sbr.rel (%p705) target = $region56
        $region55: #{pure_transformer_forward.1} parent=11 // pred_region
          _
        $region56: #{pure_transformer_forward.1} parent=11 // pred_fallthru
          _
        // Predicated region
        $region57: #{pure_transformer_forward.1} parent=11 // pred_check
          %p708 = pneg %p285
        $region58: #{pure_transformer_forward.1} parent=11 // pred_check_branch
          %710 = sbr.rel (%p708) target = $region60
        $region59: #{pure_transformer_forward.1} parent=11 // pred_region
          _
        $region60: #{pure_transformer_forward.1} parent=11 // pred_fallthru
          _
        // Predicated region
        $region61: #{pure_transformer_forward.1} parent=11 // pred_check
          %p711 = pneg %p618
        $region62: #{pure_transformer_forward.1} parent=11 // pred_check_branch
          %713 = sbr.rel (%p711) target = $region64
        $region63: #{pure_transformer_forward.1} parent=11 // pred_region
          _
        $region64: #{pure_transformer_forward.1} parent=11 // pred_fallthru
          _
        // Predicated region
        $region65: #{pure_transformer_forward.1} parent=11 // pred_check
          %p714 = pneg %p639
        $region66: #{pure_transformer_forward.1} parent=11 // pred_check_branch
          %716 = sbr.rel (%p714) target = $region68
        $region67: #{pure_transformer_forward.1} parent=11 // pred_region
          _
        $region68: #{pure_transformer_forward.1} parent=11 // pred_fallthru
          _
      $region12: #{pure_transformer_forward.1} parent=5 // pred_fallthru
        _
      %p717 = scmp.lt.s32.totalorder %s33, 3
      // Predicated region
      $region69: #{pure_transformer_forward.1} parent=5 // pred_check
        %p718 = pneg %p717
      $region70: #{pure_transformer_forward.1} parent=5 // pred_check_branch
        %720 = sbr.rel (%p718) target = $region72
      $region71: #{pure_transformer_forward.1} parent=5 // pred_region
        // Predicated region
        $region73: #{pure_transformer_forward.1} parent=71 // pred_check
          %p721 = pneg %p305
        $region74: #{pure_transformer_forward.1} parent=71 // pred_check_branch
          %723 = sbr.rel (%p721) target = $region76
        $region75: #{pure_transformer_forward.1} parent=71 // pred_region
          %p724 = scmp.lt.s32.totalorder %s33, 2
          %s725 = scalar_select %p724, %s33, 2
          %s726 = smul.addr %s725, 16
          %s727 = smul.addr %s726, 4
          %s728 = scalar_lea.vmem %s12, %s727
        $region76: #{pure_transformer_forward.1} parent=71 // pred_fallthru
          _
        // Predicated region
        $region77: #{pure_transformer_forward.1} parent=71 // pred_check
          %p729 = pneg %p331
        $region78: #{pure_transformer_forward.1} parent=71 // pred_check_branch
          %731 = sbr.rel (%p729) target = $region80
        $region79: #{pure_transformer_forward.1} parent=71 // pred_region
          %p732 = scmp.lt.s32.totalorder %s33, 2
          %s733 = scalar_select %p732, %s33, 2
          %s734 = smul.addr %s733, 2
          %s735 = scalar_lea.vmem %s13, %s734
        $region80: #{pure_transformer_forward.1} parent=71 // pred_fallthru
          _
        // Predicated region
        $region81: #{pure_transformer_forward.1} parent=71 // pred_check
          %p736 = pneg %p357
        $region82: #{pure_transformer_forward.1} parent=71 // pred_check_branch
          %738 = sbr.rel (%p736) target = $region84
        $region83: #{pure_transformer_forward.1} parent=71 // pred_region
          %p739 = scmp.lt.s32.totalorder %s33, 2
          %s740 = scalar_select %p739, %s33, 2
          %s741 = smul.addr %s740, 8
          %s742 = smul.addr %s741, 4
          %s743 = scalar_lea.vmem %s14, %s742
        $region84: #{pure_transformer_forward.1} parent=71 // pred_fallthru
          _
        // Predicated region
        $region85: #{pure_transformer_forward.1} parent=71 // pred_check
          %p744 = pneg %p383
        $region86: #{pure_transformer_forward.1} parent=71 // pred_check_branch
          %746 = sbr.rel (%p744) target = $region88
        $region87: #{pure_transformer_forward.1} parent=71 // pred_region
          %p747 = scmp.lt.s32.totalorder %s33, 2
          %s748 = scalar_select %p747, %s33, 2
          %s749 = scalar_lea.vmem %s15, %s748
        $region88: #{pure_transformer_forward.1} parent=71 // pred_fallthru
          _
        // Predicated region
        $region89: #{pure_transformer_forward.1} parent=71 // pred_check
          %p750 = pneg %p409
        $region90: #{pure_transformer_forward.1} parent=71 // pred_check_branch
          %752 = sbr.rel (%p750) target = $region92
        $region91: #{pure_transformer_forward.1} parent=71 // pred_region
          %p753 = scmp.lt.s32.totalorder %s33, 2
          %s754 = scalar_select %p753, %s33, 2
          %s755 = scalar_lea.vmem %s16, %s754
        $region92: #{pure_transformer_forward.1} parent=71 // pred_fallthru
          _
        // Predicated region
        $region93: #{pure_transformer_forward.1} parent=71 // pred_check
          %p756 = pneg %p435
        $region94: #{pure_transformer_forward.1} parent=71 // pred_check_branch
          %758 = sbr.rel (%p756) target = $region96
        $region95: #{pure_transformer_forward.1} parent=71 // pred_region
          %p759 = scmp.lt.s32.totalorder %s33, 2
          %s760 = scalar_select %p759, %s33, 2
          %s761 = scalar_lea.vmem %s17, %s760
        $region96: #{pure_transformer_forward.1} parent=71 // pred_fallthru
          _
        // Predicated region
        $region97: #{pure_transformer_forward.1} parent=71 // pred_check
          %p762 = pneg %p461
        $region98: #{pure_transformer_forward.1} parent=71 // pred_check_branch
          %764 = sbr.rel (%p762) target = $region100
        $region99: #{pure_transformer_forward.1} parent=71 // pred_region
          %p765 = scmp.lt.s32.totalorder %s33, 2
          %s766 = scalar_select %p765, %s33, 2
          %s767 = smul.addr %s766, 128
          %s768 = smul.addr %s767, 4
          %s769 = scalar_lea.vmem %s18, %s768
        $region100: #{pure_transformer_forward.1} parent=71 // pred_fallthru
          _
        // Predicated region
        $region101: #{pure_transformer_forward.1} parent=71 // pred_check
          %p770 = pneg %p487
        $region102: #{pure_transformer_forward.1} parent=71 // pred_check_branch
          %772 = sbr.rel (%p770) target = $region104
        $region103: #{pure_transformer_forward.1} parent=71 // pred_region
          %p773 = scmp.lt.s32.totalorder %s33, 2
          %s774 = scalar_select %p773, %s33, 2
          %s775 = smul.addr %s774, 16
          %s776 = scalar_lea.vmem %s19, %s775
        $region104: #{pure_transformer_forward.1} parent=71 // pred_fallthru
          _
        // Predicated region
        $region105: #{pure_transformer_forward.1} parent=71 // pred_check
          %p777 = pneg %p513
        $region106: #{pure_transformer_forward.1} parent=71 // pred_check_branch
          %779 = sbr.rel (%p777) target = $region108
        $region107: #{pure_transformer_forward.1} parent=71 // pred_region
          %p780 = scmp.lt.s32.totalorder %s33, 2
          %s781 = scalar_select %p780, %s33, 2
          %s782 = smul.addr %s781, 256
          %s783 = smul.addr %s782, 4
          %s784 = scalar_lea.vmem %s20, %s783
        $region108: #{pure_transformer_forward.1} parent=71 // pred_fallthru
          _
        // Predicated region
        $region109: #{pure_transformer_forward.1} parent=71 // pred_check
          %p785 = pneg %p539
        $region110: #{pure_transformer_forward.1} parent=71 // pred_check_branch
          %787 = sbr.rel (%p785) target = $region112
        $region111: #{pure_transformer_forward.1} parent=71 // pred_region
          %p788 = scmp.lt.s32.totalorder %s33, 2
          %s789 = scalar_select %p788, %s33, 2
          %s790 = scalar_lea.vmem %s21, %s789
        $region112: #{pure_transformer_forward.1} parent=71 // pred_fallthru
          _
        // Predicated region
        $region113: #{pure_transformer_forward.1} parent=71 // pred_check
          %p791 = pneg %p565
        $region114: #{pure_transformer_forward.1} parent=71 // pred_check_branch
          %793 = sbr.rel (%p791) target = $region116
        $region115: #{pure_transformer_forward.1} parent=71 // pred_region
          %p794 = scmp.lt.s32.totalorder %s33, 2
          %s795 = scalar_select %p794, %s33, 2
          %s796 = scalar_lea.vmem %s22, %s795
        $region116: #{pure_transformer_forward.1} parent=71 // pred_fallthru
          _
        // Predicated region
        $region117: #{pure_transformer_forward.1} parent=71 // pred_check
          %p797 = pneg %p591
        $region118: #{pure_transformer_forward.1} parent=71 // pred_check_branch
          %799 = sbr.rel (%p797) target = $region120
        $region119: #{pure_transformer_forward.1} parent=71 // pred_region
          %p800 = scmp.lt.s32.totalorder %s33, 2
          %s801 = scalar_select %p800, %s33, 2
          %s802 = scalar_lea.vmem %s23, %s801
        $region120: #{pure_transformer_forward.1} parent=71 // pred_fallthru
          _
      $region72: #{pure_transformer_forward.1} parent=5 // pred_fallthru
        _
      %p803 = scmp.le.s32.totalorder 1, %s33
      %p804 = scmp.lt.s32.totalorder %s33, 4
      %p805 = pnand %p803, %p804
      %p806 = pneg %p805
      // Predicated region
      $region121: #{pure_transformer_forward.1} parent=5 // pred_check
        _
      $region122: #{pure_transformer_forward.1} parent=5 // pred_check_branch
        %808 = sbr.rel (%p805) target = $region124
      $region123: #{pure_transformer_forward.1} parent=5 // pred_region
        %s809 = ssub.s32 %s33, 1
        %p810 = pneg %p54
        %p811 = pneg %p51
        %p812 = pneg %p75
        %p813 = pneg %p72
        %p814 = pneg %p96
        %p815 = pneg %p93
        %p816 = pneg %p117
        %p817 = pneg %p114
        %p818 = pneg %p138
        %p819 = pneg %p135
        %p820 = pneg %p159
        %p821 = pneg %p156
        %p822 = pneg %p180
        %p823 = pneg %p177
        %p824 = pneg %p201
        %p825 = pneg %p198
        %p826 = pneg %p222
        %p827 = pneg %p219
        %p828 = pneg %p243
        %p829 = pneg %p240
        %p830 = pneg %p264
        %p831 = pneg %p261
        %p832 = pneg %p285
        %p833 = pneg %p282
        %p834 = scmp.lt.s32.totalorder %s38, 2
        %s835 = scalar_select %p834, %s38, 2
        %s836 = smul.addr %s835, 16
        %s837 = smul.addr %s836, 4
        %s838 = scalar_lea.vmem %s12, %s837
        %p839 = pneg %p311
        %p840 = pneg %p308
        %p841 = scmp.lt.s32.totalorder %s38, 2
        %s842 = scalar_select %p841, %s38, 2
        %s843 = smul.addr %s842, 2
        %s844 = scalar_lea.vmem %s13, %s843
        %p845 = pneg %p337
        %p846 = pneg %p334
        %p847 = scmp.lt.s32.totalorder %s38, 2
        %s848 = scalar_select %p847, %s38, 2
        %s849 = smul.addr %s848, 8
        %s850 = smul.addr %s849, 4
        %s851 = scalar_lea.vmem %s14, %s850
        %p852 = pneg %p363
        %p853 = pneg %p360
        %p854 = scmp.lt.s32.totalorder %s38, 2
        %s855 = scalar_select %p854, %s38, 2
        %s856 = scalar_lea.vmem %s15, %s855
        %p857 = pneg %p389
        %p858 = pneg %p386
        %p859 = scmp.lt.s32.totalorder %s38, 2
        %s860 = scalar_select %p859, %s38, 2
        %s861 = scalar_lea.vmem %s16, %s860
        %p862 = pneg %p415
        %p863 = pneg %p412
        %p864 = scmp.lt.s32.totalorder %s38, 2
        %s865 = scalar_select %p864, %s38, 2
        %s866 = scalar_lea.vmem %s17, %s865
        %p867 = pneg %p441
        %p868 = pneg %p438
        %p869 = scmp.lt.s32.totalorder %s38, 2
        %s870 = scalar_select %p869, %s38, 2
        %s871 = smul.addr %s870, 128
        %s872 = smul.addr %s871, 4
        %s873 = scalar_lea.vmem %s18, %s872
        %p874 = pneg %p467
        %p875 = pneg %p464
        %p876 = scmp.lt.s32.totalorder %s38, 2
        %s877 = scalar_select %p876, %s38, 2
        %s878 = smul.addr %s877, 16
        %s879 = scalar_lea.vmem %s19, %s878
        %p880 = pneg %p493
        %p881 = pneg %p490
        %p882 = scmp.lt.s32.totalorder %s38, 2
        %s883 = scalar_select %p882, %s38, 2
        %s884 = smul.addr %s883, 256
        %s885 = smul.addr %s884, 4
        %s886 = scalar_lea.vmem %s20, %s885
        %p887 = pneg %p519
        %p888 = pneg %p516
        %p889 = scmp.lt.s32.totalorder %s38, 2
        %s890 = scalar_select %p889, %s38, 2
        %s891 = scalar_lea.vmem %s21, %s890
        %p892 = pneg %p545
        %p893 = pneg %p542
        %p894 = scmp.lt.s32.totalorder %s38, 2
        %s895 = scalar_select %p894, %s38, 2
        %s896 = scalar_lea.vmem %s22, %s895
        %p897 = pneg %p571
        %p898 = pneg %p568
        %p899 = scmp.lt.s32.totalorder %s38, 2
        %s900 = scalar_select %p899, %s38, 2
        %s901 = scalar_lea.vmem %s23, %s900
        %p902 = pneg %p597
        %p903 = pneg %p594
        %p904 = pneg %p618
        %p905 = pneg %p615
        %p906 = pneg %p639
        %p907 = pneg %p636
        %p908 = pneg %p660
        %p909 = pneg %p657
        %p910 = scmp.lt.s32.totalorder %s38, 2
        %s911 = scalar_select %p910, %s38, 2
        %s912 = smul.addr %s911, 16
        %s913 = smul.addr %s912, 4
        %s914 = scalar_lea.vmem %s12, %s913
        %p915 = scmp.lt.s32.totalorder %s38, 2
        %s916 = scalar_select %p915, %s38, 2
        %s917 = smul.addr %s916, 2
        %s918 = scalar_lea.vmem %s13, %s917
        %p919 = scmp.lt.s32.totalorder %s38, 2
        %s920 = scalar_select %p919, %s38, 2
        %s921 = smul.addr %s920, 8
        %s922 = smul.addr %s921, 4
        %s923 = scalar_lea.vmem %s14, %s922
        %p924 = scmp.lt.s32.totalorder %s38, 2
        %s925 = scalar_select %p924, %s38, 2
        %s926 = scalar_lea.vmem %s15, %s925
        %p927 = scmp.lt.s32.totalorder %s38, 2
        %s928 = scalar_select %p927, %s38, 2
        %s929 = scalar_lea.vmem %s16, %s928
        %p930 = scmp.lt.s32.totalorder %s38, 2
        %s931 = scalar_select %p930, %s38, 2
        %s932 = scalar_lea.vmem %s17, %s931
        %p933 = scmp.lt.s32.totalorder %s38, 2
        %s934 = scalar_select %p933, %s38, 2
        %s935 = smul.addr %s934, 128
        %s936 = smul.addr %s935, 4
        %s937 = scalar_lea.vmem %s18, %s936
        %p938 = scmp.lt.s32.totalorder %s38, 2
        %s939 = scalar_select %p938, %s38, 2
        %s940 = smul.addr %s939, 16
        %s941 = scalar_lea.vmem %s19, %s940
        %p942 = scmp.lt.s32.totalorder %s38, 2
        %s943 = scalar_select %p942, %s38, 2
        %s944 = smul.addr %s943, 256
        %s945 = smul.addr %s944, 4
        %s946 = scalar_lea.vmem %s20, %s945
        %p947 = scmp.lt.s32.totalorder %s38, 2
        %s948 = scalar_select %p947, %s38, 2
        %s949 = scalar_lea.vmem %s21, %s948
        %p950 = scmp.lt.s32.totalorder %s38, 2
        %s951 = scalar_select %p950, %s38, 2
        %s952 = scalar_lea.vmem %s22, %s951
        %p953 = scmp.lt.s32.totalorder %s38, 2
        %s954 = scalar_select %p953, %s38, 2
        %s955 = scalar_lea.vmem %s23, %s954
        %p957 = scmp.eq.s32.totalorder %s38, 0
        // Predicated region
        $region125: #{pure_transformer_forward.1} parent=123 // pred_check
          %p958 = pneg %p957
        $region126: #{pure_transformer_forward.1} parent=123 // pred_check_branch
          %960 = sbr.rel (%p958) target = $region128
        $region127: #{pure_transformer_forward.1} parent=123 // pred_region
          %v961 = vld [vmem:[%s1] sm:$0xff]
          %v962 = vld [vmem:[%s1 + $0x8] sm:$0xff]
          %v963 = vld [vmem:[%s1 + $0x10] sm:$0xff]
          %v964 = vld [vmem:[%s1 + $0x18] sm:$0xff]
          %v965 = vld [vmem:[%s4] sm:$0xf]
          %v966 = vld [vmem:[%s4 + $0x4] sm:$0x1]
          %v967 = vld [vmem:[%s5] sm:$0x1]
          %v968 = vld [vmem:[%s6] sm:$0xf]
          %v969 = vld [vmem:[%s6 + $0x4] sm:$0xf]
          %v970 = vld [vmem:[%s6 + $0x8] sm:$0xf]
          %v971 = vld [vmem:[%s6 + $0xc] sm:$0xf]
          %v972 = vld [vmem:[%s6 + $0x10] sm:$0xf]
          %v973 = vld [vmem:[%s6 + $0x14] sm:$0xf]
          %v974 = vld [vmem:[%s6 + $0x18] sm:$0xf]
          %v975 = vld [vmem:[%s6 + $0x1c] sm:$0xf]
          %v976 = vld [vmem:[%s7] sm:$0x1]
          %v977 = vpack.c.bf16 %v962, %v961
          %v978 = vpack.c.bf16 %v964, %v963
          %v980 = vperm.slane %v967, 0
          %v984 = vunpack.c.l.b16 %v965
          %v985 = vunpack.c.l.b16 %v966
          %v986 = vpack.c.b16 %v985, %v984
          %vm987 = vcmask 80896
          %v989 = vsel %vm987, %v977, 0
          %v992 = vsel %vm987, %v978, 0
          %vm994 = vcmask 1044480
          %v996 = vsel %vm994, %v986, 0
          %998 = vmatpush.bf16.msra.mxu0 0
          %999 = vmatpush.bf16.msra.mxu0 0
          %1000 = vmatpush.bf16.msra.mxu0 0
          %1001 = vmatpush.bf16.msra.mxu0 0
          %1002 = vmatpush.bf16.msra.mxu0 0
          %1003 = vmatpush.bf16.msra.mxu0 0
          %1004 = vmatpush.bf16.msra.mxu0 0
          %1005 = vmatpush.bf16.msra.mxu0 %v996
          %1006 = vmatmul.bf16.gmra.mxu0 %v989
          %v1007 = vpop.f32.mrf.mxu0
          %v1008 = vadd.f32 %v980, %v1007
          %v1009 = vpop.f32.mrf.mxu0
          %v1010 = vadd.f32 %v980, %v1009
          %1011 = vmatmul.bf16.gmra.mxu0 %v992
          %v1012 = vpop.f32.mrf.mxu0
          %v1013 = vadd.f32 %v980, %v1012
          %v1014 = vpop.f32.mrf.mxu0
          %v1015 = vadd.f32 %v980, %v1014
          %1016 = vdwg.mxu0
          %v1017 = vmax.f32 %v1008, 0.0
          %v1018 = vmax.f32 %v1010, 0.0
          %v1019 = vmax.f32 %v1013, 0.0
          %v1020 = vmax.f32 %v1015, 0.0
          %v1021 = vpack.c.bf16 %v1018, %v1017
          %v1022 = vpack.c.bf16 %v1020, %v1019
          %v1024 = vperm.slane %v976, 0
          %v1034 = vunpack.c.l.b16 %v968
          %v1035 = vunpack.c.l.b16 %v969
          %v1036 = vunpack.c.l.b16 %v970
          %v1037 = vunpack.c.l.b16 %v971
          %v1038 = vunpack.c.l.b16 %v972
          %v1039 = vunpack.c.l.b16 %v973
          %v1040 = vunpack.c.l.b16 %v974
          %v1041 = vunpack.c.l.b16 %v975
          %v1042 = vpack.c.b16 %v1035, %v1034
          %v1043 = vpack.c.b16 %v1037, %v1036
          %v1044 = vpack.c.b16 %v1039, %v1038
          %v1045 = vpack.c.b16 %v1041, %v1040
          %vm1050 = vcmask 523264
          %v1052 = vsel %vm1050, %v1021, 0
          %v1055 = vsel %vm1050, %v1022, 0
          %1057 = vmatpush.bf16.msra.mxu0 0
          %1058 = vmatpush.bf16.msra.mxu0 0
          %1059 = vmatpush.bf16.msra.mxu0 0
          %1060 = vmatpush.bf16.msra.mxu0 0
          %1061 = vmatpush.bf16.msra.mxu0 %v1045
          %1062 = vmatpush.bf16.msra.mxu0 %v1044
          %1063 = vmatpush.bf16.msra.mxu0 %v1043
          %1064 = vmatpush.bf16.msra.mxu0 %v1042
          %1065 = vmatmul.bf16.gmra.mxu0 %v1052
          %v1066 = vpop.f32.mrf.mxu0
          %v1067 = vadd.f32 %v1024, %v1066
          %v1068 = vpop.f32.mrf.mxu0
          %v1069 = vadd.f32 %v1024, %v1068
          %1070 = vmatmul.bf16.gmra.mxu0 %v1055
          %v1071 = vpop.f32.mrf.mxu0
          %v1072 = vadd.f32 %v1024, %v1071
          %v1073 = vpop.f32.mrf.mxu0
          %v1074 = vadd.f32 %v1024, %v1073
          %1075 = vdwg.mxu0
          %v1076 = vld [vmem:[%s2] sm:$0xff]
          %v1077 = vld [vmem:[%s2 + $0x8] sm:$0xff]
          %v1078 = vld [vmem:[%s8] sm:$0xf]
          %v1079 = vld [vmem:[%s8 + $0x4] sm:$0x1]
          %v1080 = vld [vmem:[%s9] sm:$0x1]
          %v1081 = vld [vmem:[%s10] sm:$0xf]
          %v1082 = vld [vmem:[%s10 + $0x4] sm:$0xf]
          %v1083 = vld [vmem:[%s10 + $0x8] sm:$0xf]
          %v1084 = vld [vmem:[%s10 + $0xc] sm:$0xf]
          %v1085 = vld [vmem:[%s10 + $0x10] sm:$0xf]
          %v1086 = vld [vmem:[%s10 + $0x14] sm:$0xf]
          %v1087 = vld [vmem:[%s10 + $0x18] sm:$0xf]
          %v1088 = vld [vmem:[%s10 + $0x1c] sm:$0xf]
          %v1089 = vld [vmem:[%s11] sm:$0x1]
          %v1090 = vpack.c.bf16 %v1077, %v1076
          %v1092 = vperm.slane %v1080, 0
          %v1096 = vunpack.c.l.b16 %v1078
          %v1097 = vunpack.c.l.b16 %v1079
          %v1098 = vpack.c.b16 %v1097, %v1096
          %v1100 = vsel %vm987, %v1090, 0
          %v1103 = vsel %vm994, %v1098, 0
          %1105 = vmatpush.bf16.msra.mxu0 0
          %1106 = vmatpush.bf16.msra.mxu0 0
          %1107 = vmatpush.bf16.msra.mxu0 0
          %1108 = vmatpush.bf16.msra.mxu0 0
          %1109 = vmatpush.bf16.msra.mxu0 0
          %1110 = vmatpush.bf16.msra.mxu0 0
          %1111 = vmatpush.bf16.msra.mxu0 0
          %1112 = vmatpush.bf16.msra.mxu0 %v1103
          %1113 = vmatmul.bf16.gmra.mxu0 %v1100
          %v1114 = vpop.f32.mrf.mxu0
          %v1115 = vadd.f32 %v1092, %v1114
          %v1116 = vpop.f32.mrf.mxu0
          %v1117 = vadd.f32 %v1092, %v1116
          %1118 = vdwg.mxu0
          %v1119 = vmax.f32 %v1115, 0.0
          %v1120 = vmax.f32 %v1117, 0.0
          %v1121 = vpack.c.bf16 %v1120, %v1119
          %v1123 = vperm.slane %v1089, 0
          %v1133 = vunpack.c.l.b16 %v1081
          %v1134 = vunpack.c.l.b16 %v1082
          %v1135 = vunpack.c.l.b16 %v1083
          %v1136 = vunpack.c.l.b16 %v1084
          %v1137 = vunpack.c.l.b16 %v1085
          %v1138 = vunpack.c.l.b16 %v1086
          %v1139 = vunpack.c.l.b16 %v1087
          %v1140 = vunpack.c.l.b16 %v1088
          %v1141 = vpack.c.b16 %v1134, %v1133
          %v1142 = vpack.c.b16 %v1136, %v1135
          %v1143 = vpack.c.b16 %v1138, %v1137
          %v1144 = vpack.c.b16 %v1140, %v1139
          %v1150 = vsel %vm1050, %v1121, 0
          %1152 = vmatpush.bf16.msra.mxu0 0
          %1153 = vmatpush.bf16.msra.mxu0 0
          %1154 = vmatpush.bf16.msra.mxu0 0
          %1155 = vmatpush.bf16.msra.mxu0 0
          %1156 = vmatpush.bf16.msra.mxu0 %v1144
          %1157 = vmatpush.bf16.msra.mxu0 %v1143
          %1158 = vmatpush.bf16.msra.mxu0 %v1142
          %1159 = vmatpush.bf16.msra.mxu0 %v1141
          %1160 = vmatmul.bf16.gmra.mxu0 %v1150
          %v1161 = vpop.f32.mrf.mxu0
          %v1162 = vadd.f32 %v1123, %v1161
          %v1163 = vpop.f32.mrf.mxu0
          %v1164 = vadd.f32 %v1123, %v1163
          %1165 = vdwg.mxu0
          %v1166 = vld [vmem:[%s0] sm:$0xff]
          %v1167 = vld [vmem:[%s0 + $0x8] sm:$0xff]
          %v1168 = vadd.f32 %v1166, %v1067
          %v1169 = vadd.f32 %v1167, %v1069
          %v1170 = vadd.f32 %v1168, %v1072
          %v1171 = vadd.f32 %v1169, %v1074
          %v1172 = vadd.f32 %v1170, %v1162
          %v1173 = vadd.f32 %v1171, %v1164
          %1174 = vst.msk [vmem:[#allocation2] sm:$0xff] %vm1050, %v1172
          %1175 = vst.msk [vmem:[#allocation2 + $0x8] sm:$0xff] %vm1050, %v1173
        $region128: #{pure_transformer_forward.1} parent=123 // pred_fallthru
          _
        %v1176 = vld [vmem:[#allocation2] sm:$0xff]
        %v1177 = vld [vmem:[#allocation2 + $0x8] sm:$0xff]
        %v1178 = vpack.c.bf16 %v1177, %v1176
        %v1179 = vld [vmem:[%s914] sm:$0xff]
        %v1180 = vld [vmem:[%s914 + $0x8] sm:$0xff]
        %v1181 = vld [vmem:[%s914 + $0x10] sm:$0xff]
        %v1182 = vld [vmem:[%s914 + $0x18] sm:$0xff]
        %v1183 = vld [vmem:[%s914 + $0x20] sm:$0xff]
        %v1184 = vld [vmem:[%s914 + $0x28] sm:$0xff]
        %v1185 = vld [vmem:[%s914 + $0x30] sm:$0xff]
        %v1186 = vld [vmem:[%s914 + $0x38] sm:$0xff]
        %v1187 = vld [vmem:[%s918] sm:$0x3]
        %v1189 = vperm.slane %v1187, 0
        %v1190 = vperm.slane %v1187, 1
        %v1201 = vunpack.c.l.b16 %v1179
        %v1202 = vunpack.c.h.b16 %v1179
        %v1203 = vunpack.c.l.b16 %v1180
        %v1204 = vunpack.c.h.b16 %v1180
        %v1205 = vunpack.c.l.b16 %v1181
        %v1206 = vunpack.c.h.b16 %v1181
        %v1207 = vunpack.c.l.b16 %v1182
        %v1208 = vunpack.c.h.b16 %v1182
        %v1209 = vunpack.c.l.b16 %v1183
        %v1210 = vunpack.c.h.b16 %v1183
        %v1211 = vunpack.c.l.b16 %v1184
        %v1212 = vunpack.c.h.b16 %v1184
        %v1213 = vunpack.c.l.b16 %v1185
        %v1214 = vunpack.c.h.b16 %v1185
        %v1215 = vunpack.c.l.b16 %v1186
        %v1216 = vunpack.c.h.b16 %v1186
        %v1217 = vpack.c.b16 %v1203, %v1201
        %v1218 = vpack.c.b16 %v1204, %v1202
        %v1219 = vpack.c.b16 %v1207, %v1205
        %v1220 = vpack.c.b16 %v1208, %v1206
        %v1221 = vpack.c.b16 %v1211, %v1209
        %v1222 = vpack.c.b16 %v1212, %v1210
        %v1223 = vpack.c.b16 %v1215, %v1213
        %v1224 = vpack.c.b16 %v1216, %v1214
        %vm1233 = vcmask 523264
        %v1235 = vsel %vm1233, %v1178, 0
        %1237 = vmatpush.bf16.msra.mxu0 0
        %1238 = vmatpush.bf16.msra.mxu0 0
        %1239 = vmatpush.bf16.msra.mxu0 0
        %1240 = vmatpush.bf16.msra.mxu0 0
        %1241 = vmatpush.bf16.msra.mxu0 %v1223
        %1242 = vmatpush.bf16.msra.mxu0 %v1221
        %1243 = vmatpush.bf16.msra.mxu0 %v1219
        %1244 = vmatpush.bf16.msra.mxu0 %v1217
        %1245 = vmatmul.bf16.gmra.mxu0 %v1235
        %v1246 = vpop.f32.mrf.mxu0
        %v1247 = vadd.f32 %v1189, %v1246
        %v1248 = vpop.f32.mrf.mxu0
        %v1249 = vadd.f32 %v1189, %v1248
        %1250 = vdwg.mxu0
        %1251 = vmatpush.bf16.msra.mxu0 0
        %1252 = vmatpush.bf16.msra.mxu0 0
        %1253 = vmatpush.bf16.msra.mxu0 0
        %1254 = vmatpush.bf16.msra.mxu0 0
        %1255 = vmatpush.bf16.msra.mxu0 %v1224
        %1256 = vmatpush.bf16.msra.mxu0 %v1222
        %1257 = vmatpush.bf16.msra.mxu0 %v1220
        %1258 = vmatpush.bf16.msra.mxu0 %v1218
        %1259 = vmatmul.bf16.gmra.mxu0 %v1235
        %v1260 = vpop.f32.mrf.mxu0
        %v1261 = vadd.f32 %v1190, %v1260
        %v1262 = vpop.f32.mrf.mxu0
        %v1263 = vadd.f32 %v1190, %v1262
        %1264 = vdwg.mxu0
        %1267 = vrot.lane.b32.xlu0 %v1247, 64
        %v1268 = vpop.permute.xlu0 %1267
        %1269 = vrot.lane.b32.xlu0 %v1249, 64
        %v1270 = vpop.permute.xlu0 %1269
        %vm1271 = vcmask 130048
        %v1272 = vsel %vm1271, %v1247, 0
        %v1274 = vsel %vm1271, %v1249, 0
        %v1276 = vsel %vm1271, %v1268, 0
        %v1278 = vsel %vm1271, %v1270, 0
        %1280 = vmatpush.xpose.msra.mxu0 0.0
        %1281 = vmatpush.xpose.msra.mxu0 0.0
        %1282 = vmatpush.xpose.msra.mxu0 0.0
        %1283 = vmatpush.xpose.msra.mxu0 0.0
        %1284 = vmatpush.xpose.msra.mxu0 0.0
        %1285 = vmatpush.xpose.msra.mxu0 0.0
        %1286 = vmatpush.xpose.msra.mxu0 0.0
        %1287 = vmatpush.xpose.msra.mxu0 0.0
        %1288 = vmatpush.xpose.msra.mxu0 0.0
        %1289 = vmatpush.xpose.msra.mxu0 0.0
        %1290 = vmatpush.xpose.msra.mxu0 0.0
        %1291 = vmatpush.xpose.msra.mxu0 0.0
        %1292 = vmatpush.xpose.msra.mxu0 0.0
        %1293 = vmatpush.xpose.msra.mxu0 0.0
        %1294 = vmatpush.xpose.msra.mxu0 %v1278
        %1295 = vmatpush.xpose.msra.mxu0 %v1276
        %1296 = vmatmul.f32.gmra.mxu0 %v1272
        %v1297 = vpop.f32.mrf.mxu0
        %v1298 = vadd.f32 0.0, %v1297
        %1299 = vmatmul.f32.gmra.mxu0 %v1274
        %v1300 = vpop.f32.mrf.mxu0
        %v1301 = vadd.f32 0.0, %v1300
        %1302 = vdwg.mxu0
        %v1303 = vsel %vm1271, %v1298, -inf
        %1304 = vmax.xlane.f32.xlu0 %v1303
        %v1305 = vpop.xlane.xlu0 %1304
        %v1306 = vsel %vm1271, %v1301, -inf
        %1307 = vmax.xlane.f32.xlu0 %v1306
        %v1308 = vpop.xlane.xlu0 %1307
        %v1309 = vsub.f32 %v1298, %v1305
        %v1310 = vsub.f32 %v1301, %v1308
        %v1311 = vmul.f32 %v1309, 1.442695
        %v1312 = vpow.pop %v1311
        %v1313 = vmul.f32 %v1310, 1.442695
        %v1314 = vpow.pop %v1313
        %v1315 = vsel %vm1271, %v1312, 0.0
        %1316 = vadd.xlane.f32.xlu0 %v1315
        %v1317 = vpop.xlane.xlu0 %1316
        %v1318 = vsel %vm1271, %v1314, 0.0
        %1319 = vadd.xlane.f32.xlu0 %v1318
        %v1320 = vpop.xlane.xlu0 %1319
        %v1321 = vrcp.pop %v1317
        %v1322 = vrcp.pop %v1320
        %v1323 = vmul.f32 %v1312, %v1321
        %v1324 = vmul.f32 %v1314, %v1322
        %v1326 = vsel %vm1271, %v1323, 0
        %v1329 = vsel %vm1271, %v1324, 0
        %1331 = vmatpush.msra.mxu0 0.0
        %1332 = vmatpush.msra.mxu0 0.0
        %1333 = vmatpush.msra.mxu0 0.0
        %1334 = vmatpush.msra.mxu0 0.0
        %1335 = vmatpush.msra.mxu0 0.0
        %1336 = vmatpush.msra.mxu0 0.0
        %1337 = vmatpush.msra.mxu0 0.0
        %1338 = vmatpush.msra.mxu0 0.0
        %1339 = vmatpush.msra.mxu0 0.0
        %1340 = vmatpush.msra.mxu0 0.0
        %1341 = vmatpush.msra.mxu0 0.0
        %1342 = vmatpush.msra.mxu0 0.0
        %1343 = vmatpush.msra.mxu0 0.0
        %1344 = vmatpush.msra.mxu0 0.0
        %1345 = vmatpush.msra.mxu0 %v1263
        %1346 = vmatpush.msra.mxu0 %v1261
        %1347 = vmatmul.f32.gmra.mxu0 %v1326
        %v1348 = vpop.f32.mrf.mxu0
        %v1349 = vadd.f32 0.0, %v1348
        %1350 = vmatmul.f32.gmra.mxu0 %v1329
        %v1351 = vpop.f32.mrf.mxu0
        %v1352 = vadd.f32 0.0, %v1351
        %1353 = vdwg.mxu0
        %1354 = vrot.lane.b32.xlu0 %v1247, 112
        %v1355 = vpop.permute.xlu0 %1354
        %1356 = vrot.lane.b32.xlu0 %v1249, 112
        %v1357 = vpop.permute.xlu0 %1356
        %1358 = vrot.lane.b32.xlu0 %v1247, 48
        %v1359 = vpop.permute.xlu0 %1358
        %1360 = vrot.lane.b32.xlu0 %v1249, 48
        %v1361 = vpop.permute.xlu0 %1360
        %v1362 = vsel %vm1271, %v1355, 0
        %v1364 = vsel %vm1271, %v1357, 0
        %v1366 = vsel %vm1271, %v1359, 0
        %v1368 = vsel %vm1271, %v1361, 0
        %1370 = vmatpush.xpose.msra.mxu0 0.0
        %1371 = vmatpush.xpose.msra.mxu0 0.0
        %1372 = vmatpush.xpose.msra.mxu0 0.0
        %1373 = vmatpush.xpose.msra.mxu0 0.0
        %1374 = vmatpush.xpose.msra.mxu0 0.0
        %1375 = vmatpush.xpose.msra.mxu0 0.0
        %1376 = vmatpush.xpose.msra.mxu0 0.0
        %1377 = vmatpush.xpose.msra.mxu0 0.0
        %1378 = vmatpush.xpose.msra.mxu0 0.0
        %1379 = vmatpush.xpose.msra.mxu0 0.0
        %1380 = vmatpush.xpose.msra.mxu0 0.0
        %1381 = vmatpush.xpose.msra.mxu0 0.0
        %1382 = vmatpush.xpose.msra.mxu0 0.0
        %1383 = vmatpush.xpose.msra.mxu0 0.0
        %1384 = vmatpush.xpose.msra.mxu0 %v1368
        %1385 = vmatpush.xpose.msra.mxu0 %v1366
        %1386 = vmatmul.f32.gmra.mxu0 %v1362
        %v1387 = vpop.f32.mrf.mxu0
        %v1388 = vadd.f32 0.0, %v1387
        %1389 = vmatmul.f32.gmra.mxu0 %v1364
        %v1390 = vpop.f32.mrf.mxu0
        %v1391 = vadd.f32 0.0, %v1390
        %1392 = vdwg.mxu0
        %v1393 = vsel %vm1271, %v1388, -inf
        %1394 = vmax.xlane.f32.xlu0 %v1393
        %v1395 = vpop.xlane.xlu0 %1394
        %v1396 = vsel %vm1271, %v1391, -inf
        %1397 = vmax.xlane.f32.xlu0 %v1396
        %v1398 = vpop.xlane.xlu0 %1397
        %v1399 = vsub.f32 %v1388, %v1395
        %v1400 = vsub.f32 %v1391, %v1398
        %v1401 = vmul.f32 %v1399, 1.442695
        %v1402 = vpow.pop %v1401
        %v1403 = vmul.f32 %v1400, 1.442695
        %v1404 = vpow.pop %v1403
        %v1405 = vsel %vm1271, %v1402, 0.0
        %1406 = vadd.xlane.f32.xlu0 %v1405
        %v1407 = vpop.xlane.xlu0 %1406
        %v1408 = vsel %vm1271, %v1404, 0.0
        %1409 = vadd.xlane.f32.xlu0 %v1408
        %v1410 = vpop.xlane.xlu0 %1409
        %v1411 = vrcp.pop %v1407
        %v1412 = vrcp.pop %v1410
        %v1413 = vmul.f32 %v1402, %v1411
        %v1414 = vmul.f32 %v1404, %v1412
        %1417 = vrot.lane.b32.xlu0 %v1261, 112
        %v1418 = vpop.permute.xlu0 %1417
        %1419 = vrot.lane.b32.xlu0 %v1263, 112
        %v1420 = vpop.permute.xlu0 %1419
        %v1424 = vsel %vm1271, %v1413, 0
        %v1427 = vsel %vm1271, %v1414, 0
        %1429 = vmatpush.msra.mxu0 0.0
        %1430 = vmatpush.msra.mxu0 0.0
        %1431 = vmatpush.msra.mxu0 0.0
        %1432 = vmatpush.msra.mxu0 0.0
        %1433 = vmatpush.msra.mxu0 0.0
        %1434 = vmatpush.msra.mxu0 0.0
        %1435 = vmatpush.msra.mxu0 0.0
        %1436 = vmatpush.msra.mxu0 0.0
        %1437 = vmatpush.msra.mxu0 0.0
        %1438 = vmatpush.msra.mxu0 0.0
        %1439 = vmatpush.msra.mxu0 0.0
        %1440 = vmatpush.msra.mxu0 0.0
        %1441 = vmatpush.msra.mxu0 0.0
        %1442 = vmatpush.msra.mxu0 0.0
        %1443 = vmatpush.msra.mxu0 %v1420
        %1444 = vmatpush.msra.mxu0 %v1418
        %1445 = vmatmul.f32.gmra.mxu0 %v1424
        %v1446 = vpop.f32.mrf.mxu0
        %v1447 = vadd.f32 0.0, %v1446
        %1448 = vmatmul.f32.gmra.mxu0 %v1427
        %v1449 = vpop.f32.mrf.mxu0
        %v1450 = vadd.f32 0.0, %v1449
        %1451 = vdwg.mxu0
        %1452 = vrot.lane.b32.xlu0 %v1247, 96
        %v1453 = vpop.permute.xlu0 %1452
        %1454 = vrot.lane.b32.xlu0 %v1249, 96
        %v1455 = vpop.permute.xlu0 %1454
        %1456 = vrot.lane.b32.xlu0 %v1247, 32
        %v1457 = vpop.permute.xlu0 %1456
        %1458 = vrot.lane.b32.xlu0 %v1249, 32
        %v1459 = vpop.permute.xlu0 %1458
        %v1460 = vsel %vm1271, %v1453, 0
        %v1462 = vsel %vm1271, %v1455, 0
        %v1464 = vsel %vm1271, %v1457, 0
        %v1466 = vsel %vm1271, %v1459, 0
        %1468 = vmatpush.xpose.msra.mxu0 0.0
        %1469 = vmatpush.xpose.msra.mxu0 0.0
        %1470 = vmatpush.xpose.msra.mxu0 0.0
        %1471 = vmatpush.xpose.msra.mxu0 0.0
        %1472 = vmatpush.xpose.msra.mxu0 0.0
        %1473 = vmatpush.xpose.msra.mxu0 0.0
        %1474 = vmatpush.xpose.msra.mxu0 0.0
        %1475 = vmatpush.xpose.msra.mxu0 0.0
        %1476 = vmatpush.xpose.msra.mxu0 0.0
        %1477 = vmatpush.xpose.msra.mxu0 0.0
        %1478 = vmatpush.xpose.msra.mxu0 0.0
        %1479 = vmatpush.xpose.msra.mxu0 0.0
        %1480 = vmatpush.xpose.msra.mxu0 0.0
        %1481 = vmatpush.xpose.msra.mxu0 0.0
        %1482 = vmatpush.xpose.msra.mxu0 %v1466
        %1483 = vmatpush.xpose.msra.mxu0 %v1464
        %1484 = vmatmul.f32.gmra.mxu0 %v1460
        %v1485 = vpop.f32.mrf.mxu0
        %v1486 = vadd.f32 0.0, %v1485
        %1487 = vmatmul.f32.gmra.mxu0 %v1462
        %v1488 = vpop.f32.mrf.mxu0
        %v1489 = vadd.f32 0.0, %v1488
        %1490 = vdwg.mxu0
        %v1491 = vsel %vm1271, %v1486, -inf
        %1492 = vmax.xlane.f32.xlu0 %v1491
        %v1493 = vpop.xlane.xlu0 %1492
        %v1494 = vsel %vm1271, %v1489, -inf
        %1495 = vmax.xlane.f32.xlu0 %v1494
        %v1496 = vpop.xlane.xlu0 %1495
        %v1497 = vsub.f32 %v1486, %v1493
        %v1498 = vsub.f32 %v1489, %v1496
        %v1499 = vmul.f32 %v1497, 1.442695
        %v1500 = vpow.pop %v1499
        %v1501 = vmul.f32 %v1498, 1.442695
        %v1502 = vpow.pop %v1501
        %v1503 = vsel %vm1271, %v1500, 0.0
        %1504 = vadd.xlane.f32.xlu0 %v1503
        %v1505 = vpop.xlane.xlu0 %1504
        %v1506 = vsel %vm1271, %v1502, 0.0
        %1507 = vadd.xlane.f32.xlu0 %v1506
        %v1508 = vpop.xlane.xlu0 %1507
        %v1509 = vrcp.pop %v1505
        %v1510 = vrcp.pop %v1508
        %v1511 = vmul.f32 %v1500, %v1509
        %v1512 = vmul.f32 %v1502, %v1510
        %1513 = vrot.lane.b32.xlu0 %v1261, 96
        %v1514 = vpop.permute.xlu0 %1513
        %1515 = vrot.lane.b32.xlu0 %v1263, 96
        %v1516 = vpop.permute.xlu0 %1515
        %v1520 = vsel %vm1271, %v1511, 0
        %v1523 = vsel %vm1271, %v1512, 0
        %1525 = vmatpush.msra.mxu0 0.0
        %1526 = vmatpush.msra.mxu0 0.0
        %1527 = vmatpush.msra.mxu0 0.0
        %1528 = vmatpush.msra.mxu0 0.0
        %1529 = vmatpush.msra.mxu0 0.0
        %1530 = vmatpush.msra.mxu0 0.0
        %1531 = vmatpush.msra.mxu0 0.0
        %1532 = vmatpush.msra.mxu0 0.0
        %1533 = vmatpush.msra.mxu0 0.0
        %1534 = vmatpush.msra.mxu0 0.0
        %1535 = vmatpush.msra.mxu0 0.0
        %1536 = vmatpush.msra.mxu0 0.0
        %1537 = vmatpush.msra.mxu0 0.0
        %1538 = vmatpush.msra.mxu0 0.0
        %1539 = vmatpush.msra.mxu0 %v1516
        %1540 = vmatpush.msra.mxu0 %v1514
        %1541 = vmatmul.f32.gmra.mxu0 %v1520
        %v1542 = vpop.f32.mrf.mxu0
        %v1543 = vadd.f32 0.0, %v1542
        %1544 = vmatmul.f32.gmra.mxu0 %v1523
        %v1545 = vpop.f32.mrf.mxu0
        %v1546 = vadd.f32 0.0, %v1545
        %1547 = vdwg.mxu0
        %1548 = vrot.lane.b32.xlu0 %v1247, 80
        %v1549 = vpop.permute.xlu0 %1548
        %1550 = vrot.lane.b32.xlu0 %v1249, 80
        %v1551 = vpop.permute.xlu0 %1550
        %1552 = vrot.lane.b32.xlu0 %v1247, 16
        %v1553 = vpop.permute.xlu0 %1552
        %1554 = vrot.lane.b32.xlu0 %v1249, 16
        %v1555 = vpop.permute.xlu0 %1554
        %v1556 = vsel %vm1271, %v1549, 0
        %v1558 = vsel %vm1271, %v1551, 0
        %v1560 = vsel %vm1271, %v1553, 0
        %v1562 = vsel %vm1271, %v1555, 0
        %1564 = vmatpush.xpose.msra.mxu0 0.0
        %1565 = vmatpush.xpose.msra.mxu0 0.0
        %1566 = vmatpush.xpose.msra.mxu0 0.0
        %1567 = vmatpush.xpose.msra.mxu0 0.0
        %1568 = vmatpush.xpose.msra.mxu0 0.0
        %1569 = vmatpush.xpose.msra.mxu0 0.0
        %1570 = vmatpush.xpose.msra.mxu0 0.0
        %1571 = vmatpush.xpose.msra.mxu0 0.0
        %1572 = vmatpush.xpose.msra.mxu0 0.0
        %1573 = vmatpush.xpose.msra.mxu0 0.0
        %1574 = vmatpush.xpose.msra.mxu0 0.0
        %1575 = vmatpush.xpose.msra.mxu0 0.0
        %1576 = vmatpush.xpose.msra.mxu0 0.0
        %1577 = vmatpush.xpose.msra.mxu0 0.0
        %1578 = vmatpush.xpose.msra.mxu0 %v1562
        %1579 = vmatpush.xpose.msra.mxu0 %v1560
        %1580 = vmatmul.f32.gmra.mxu0 %v1556
        %v1581 = vpop.f32.mrf.mxu0
        %v1582 = vadd.f32 0.0, %v1581
        %1583 = vmatmul.f32.gmra.mxu0 %v1558
        %v1584 = vpop.f32.mrf.mxu0
        %v1585 = vadd.f32 0.0, %v1584
        %1586 = vdwg.mxu0
        %v1587 = vsel %vm1271, %v1582, -inf
        %1588 = vmax.xlane.f32.xlu0 %v1587
        %v1589 = vpop.xlane.xlu0 %1588
        %v1590 = vsel %vm1271, %v1585, -inf
        %1591 = vmax.xlane.f32.xlu0 %v1590
        %v1592 = vpop.xlane.xlu0 %1591
        %v1593 = vsub.f32 %v1582, %v1589
        %v1594 = vsub.f32 %v1585, %v1592
        %v1595 = vmul.f32 %v1593, 1.442695
        %v1596 = vpow.pop %v1595
        %v1597 = vmul.f32 %v1594, 1.442695
        %v1598 = vpow.pop %v1597
        %v1599 = vsel %vm1271, %v1596, 0.0
        %1600 = vadd.xlane.f32.xlu0 %v1599
        %v1601 = vpop.xlane.xlu0 %1600
        %v1602 = vsel %vm1271, %v1598, 0.0
        %1603 = vadd.xlane.f32.xlu0 %v1602
        %v1604 = vpop.xlane.xlu0 %1603
        %v1605 = vrcp.pop %v1601
        %v1606 = vrcp.pop %v1604
        %v1607 = vmul.f32 %v1596, %v1605
        %v1608 = vmul.f32 %v1598, %v1606
        %1609 = vrot.lane.b32.xlu0 %v1261, 80
        %v1610 = vpop.permute.xlu0 %1609
        %1611 = vrot.lane.b32.xlu0 %v1263, 80
        %v1612 = vpop.permute.xlu0 %1611
        %v1616 = vsel %vm1271, %v1607, 0
        %v1619 = vsel %vm1271, %v1608, 0
        %1621 = vmatpush.msra.mxu0 0.0
        %1622 = vmatpush.msra.mxu0 0.0
        %1623 = vmatpush.msra.mxu0 0.0
        %1624 = vmatpush.msra.mxu0 0.0
        %1625 = vmatpush.msra.mxu0 0.0
        %1626 = vmatpush.msra.mxu0 0.0
        %1627 = vmatpush.msra.mxu0 0.0
        %1628 = vmatpush.msra.mxu0 0.0
        %1629 = vmatpush.msra.mxu0 0.0
        %1630 = vmatpush.msra.mxu0 0.0
        %1631 = vmatpush.msra.mxu0 0.0
        %1632 = vmatpush.msra.mxu0 0.0
        %1633 = vmatpush.msra.mxu0 0.0
        %1634 = vmatpush.msra.mxu0 0.0
        %1635 = vmatpush.msra.mxu0 %v1612
        %1636 = vmatpush.msra.mxu0 %v1610
        %1637 = vmatmul.f32.gmra.mxu0 %v1616
        %v1638 = vpop.f32.mrf.mxu0
        %v1639 = vadd.f32 0.0, %v1638
        %1640 = vmatmul.f32.gmra.mxu0 %v1619
        %v1641 = vpop.f32.mrf.mxu0
        %v1642 = vadd.f32 0.0, %v1641
        %1643 = vdwg.mxu0
        %1646 = vrot.lane.b32.xlu0 %v1447, 16
        %v1647 = vpop.permute.xlu0 %1646
        %1648 = vrot.lane.b32.xlu0 %v1450, 16
        %v1649 = vpop.permute.xlu0 %1648
        %1654 = vrot.lane.b32.xlu0 %v1543, 32
        %v1655 = vpop.permute.xlu0 %1654
        %1656 = vrot.lane.b32.xlu0 %v1546, 32
        %v1657 = vpop.permute.xlu0 %1656
        %1662 = vrot.lane.b32.xlu0 %v1639, 48
        %v1663 = vpop.permute.xlu0 %1662
        %1664 = vrot.lane.b32.xlu0 %v1642, 48
        %v1665 = vpop.permute.xlu0 %1664
        %v1668 = vsel %vm1271, %v1349, %v1647
        %v1669 = vsel %vm1271, %v1352, %v1649
        %vm1670 = vcmask 261120
        %v1671 = vsel %vm1670, %v1668, %v1655
        %v1672 = vsel %vm1670, %v1669, %v1657
        %vm1673 = vcmask 392192
        %v1674 = vsel %vm1673, %v1671, %v1663
        %v1675 = vsel %vm1673, %v1672, %v1665
        %v1676 = vpack.c.bf16 %v1675, %v1674
        %v1677 = vld [vmem:[%s923] sm:$0xf]
        %v1678 = vld [vmem:[%s923 + $0x4] sm:$0xf]
        %v1679 = vld [vmem:[%s923 + $0x8] sm:$0xf]
        %v1680 = vld [vmem:[%s923 + $0xc] sm:$0xf]
        %v1681 = vld [vmem:[%s923 + $0x10] sm:$0xf]
        %v1682 = vld [vmem:[%s923 + $0x14] sm:$0xf]
        %v1683 = vld [vmem:[%s923 + $0x18] sm:$0xf]
        %v1684 = vld [vmem:[%s923 + $0x1c] sm:$0xf]
        %v1685 = vld [vmem:[%s926] sm:$0x1]
        %v1687 = vperm.slane %v1685, 0
        %v1697 = vunpack.c.l.b16 %v1677
        %v1698 = vunpack.c.l.b16 %v1678
        %v1699 = vunpack.c.l.b16 %v1679
        %v1700 = vunpack.c.l.b16 %v1680
        %v1701 = vunpack.c.l.b16 %v1681
        %v1702 = vunpack.c.l.b16 %v1682
        %v1703 = vunpack.c.l.b16 %v1683
        %v1704 = vunpack.c.l.b16 %v1684
        %v1705 = vpack.c.b16 %v1698, %v1697
        %v1706 = vpack.c.b16 %v1700, %v1699
        %v1707 = vpack.c.b16 %v1702, %v1701
        %v1708 = vpack.c.b16 %v1704, %v1703
        %v1714 = vsel %vm1233, %v1676, 0
        %1716 = vmatpush.bf16.msra.mxu0 0
        %1717 = vmatpush.bf16.msra.mxu0 0
        %1718 = vmatpush.bf16.msra.mxu0 0
        %1719 = vmatpush.bf16.msra.mxu0 0
        %1720 = vmatpush.bf16.msra.mxu0 %v1708
        %1721 = vmatpush.bf16.msra.mxu0 %v1707
        %1722 = vmatpush.bf16.msra.mxu0 %v1706
        %1723 = vmatpush.bf16.msra.mxu0 %v1705
        %1724 = vmatmul.bf16.gmra.mxu0 %v1714
        %v1725 = vpop.f32.mrf.mxu0
        %v1726 = vadd.f32 %v1687, %v1725
        %v1727 = vpop.f32.mrf.mxu0
        %v1728 = vadd.f32 %v1687, %v1727
        %1729 = vdwg.mxu0
        %v1730 = vadd.f32 %v1176, %v1726
        %v1731 = vadd.f32 %v1177, %v1728
        %v1732 = vld [vmem:[%s929] sm:$0x1]
        %v1733 = vld [vmem:[%s932] sm:$0x1]
        %v1734 = vsel %vm1233, %v1730, 0.0
        %1735 = vadd.xlane.f32.xlu0 %v1734
        %v1736 = vpop.xlane.xlu0 %1735
        %v1737 = vsel %vm1233, %v1731, 0.0
        %1738 = vadd.xlane.f32.xlu0 %v1737
        %v1739 = vpop.xlane.xlu0 %1738
        %v1740 = vrcp.pop 64.0
        %v1741 = vmul.f32 64.0, %v1740
        %v1742 = vsub.f32 1.0, %v1741
        %v1743 = vmul.f32 %v1740, %v1742
        %v1744 = vadd.f32 %v1740, %v1743
        %vm1745 = vweird.f32 %v1740
        %v1746 = vsel %vm1745, %v1740, %v1744
        %v1747 = vmul.f32 %v1736, %v1746
        %v1748 = vmul.f32 %v1739, %v1746
        %v1749 = vmul.f32 %v1730, %v1730
        %v1750 = vmul.f32 %v1731, %v1731
        %v1751 = vsel %vm1233, %v1749, 0.0
        %1752 = vadd.xlane.f32.xlu0 %v1751
        %v1753 = vpop.xlane.xlu0 %1752
        %v1754 = vsel %vm1233, %v1750, 0.0
        %1755 = vadd.xlane.f32.xlu0 %v1754
        %v1756 = vpop.xlane.xlu0 %1755
        %v1757 = vmul.f32 %v1753, %v1746
        %v1758 = vmul.f32 %v1756, %v1746
        %v1759 = vmul.f32 %v1747, %v1747
        %v1760 = vmul.f32 %v1748, %v1748
        %v1761 = vsub.f32 %v1757, %v1759
        %v1762 = vsub.f32 %v1758, %v1760
        %v1763 = vsub.f32 %v1730, %v1747
        %v1764 = vsub.f32 %v1731, %v1748
        %v1765 = vadd.f32 %v1761, 1e-05
        %v1766 = vadd.f32 %v1762, 1e-05
        %v1767 = vrsqrt.pop %v1765
        %v1768 = vmul.f32 %v1767, %v1765
        %v1769 = vmul.f32 %v1768, %v1767
        %v1770 = vmul.f32 0.5, %v1769
        %v1771 = vsub.f32 1.5, %v1770
        %v1772 = vmul.f32 %v1767, %v1771
        %vm1773 = vweird.f32 %v1765
        %vm1774 = vweird.f32 %v1767
        %vm1775 = vmor %vm1773, %vm1774
        %v1776 = vsel %vm1775, %v1767, %v1772
        %v1777 = vrsqrt.pop %v1766
        %v1778 = vmul.f32 %v1777, %v1766
        %v1779 = vmul.f32 %v1778, %v1777
        %v1780 = vmul.f32 0.5, %v1779
        %v1781 = vsub.f32 1.5, %v1780
        %v1782 = vmul.f32 %v1777, %v1781
        %vm1783 = vweird.f32 %v1766
        %vm1784 = vweird.f32 %v1777
        %vm1785 = vmor %vm1783, %vm1784
        %v1786 = vsel %vm1785, %v1777, %v1782
        %v1787 = vmul.f32 %v1763, %v1776
        %v1788 = vmul.f32 %v1764, %v1786
        %v1790 = vperm.slane %v1732, 0
        %v1792 = vmul.f32 %v1787, %v1790
        %v1793 = vmul.f32 %v1788, %v1790
        %v1795 = vperm.slane %v1733, 0
        %v1797 = vadd.f32 %v1792, %v1795
        %v1798 = vadd.f32 %v1793, %v1795
        %v1799 = vpack.c.bf16 %v1798, %v1797
        %v1800 = vld [vmem:[%s937] sm:$0xff]
        %v1801 = vld [vmem:[%s937 + $0x8] sm:$0xff]
        %v1802 = vld [vmem:[%s937 + $0x10] sm:$0xff]
        %v1803 = vld [vmem:[%s937 + $0x18] sm:$0xff]
        %v1804 = vld [vmem:[%s937 + $0x20] sm:$0xff]
        %v1805 = vld [vmem:[%s937 + $0x28] sm:$0xff]
        %v1806 = vld [vmem:[%s937 + $0x30] sm:$0xff]
        %v1807 = vld [vmem:[%s937 + $0x38] sm:$0xff]
        %v1808 = vld [vmem:[%s937 + $0x40] sm:$0xff]
        %v1809 = vld [vmem:[%s937 + $0x48] sm:$0xff]
        %v1810 = vld [vmem:[%s937 + $0x50] sm:$0xff]
        %v1811 = vld [vmem:[%s937 + $0x58] sm:$0xff]
        %v1812 = vld [vmem:[%s937 + $0x60] sm:$0xff]
        %v1813 = vld [vmem:[%s937 + $0x68] sm:$0xff]
        %v1814 = vld [vmem:[%s937 + $0x70] sm:$0xff]
        %v1815 = vld [vmem:[%s937 + $0x78] sm:$0xff]
        %v1816 = vld [vmem:[%s937 + $0x80] sm:$0xff]
        %v1817 = vld [vmem:[%s937 + $0x88] sm:$0xff]
        %v1818 = vld [vmem:[%s937 + $0x90] sm:$0xff]
        %v1819 = vld [vmem:[%s937 + $0x98] sm:$0xff]
        %v1820 = vld [vmem:[%s937 + $0xa0] sm:$0xff]
        %v1821 = vld [vmem:[%s937 + $0xa8] sm:$0xff]
        %v1822 = vld [vmem:[%s937 + $0xb0] sm:$0xff]
        %v1823 = vld [vmem:[%s937 + $0xb8] sm:$0xff]
        %v1824 = vld [vmem:[%s937 + $0xc0] sm:$0xff]
        %v1825 = vld [vmem:[%s937 + $0xc8] sm:$0xff]
        %v1826 = vld [vmem:[%s937 + $0xd0] sm:$0xff]
        %v1827 = vld [vmem:[%s937 + $0xd8] sm:$0xff]
        %v1828 = vld [vmem:[%s937 + $0xe0] sm:$0xff]
        %v1829 = vld [vmem:[%s937 + $0xe8] sm:$0xff]
        %v1830 = vld [vmem:[%s937 + $0xf0] sm:$0xff]
        %v1831 = vld [vmem:[%s937 + $0xf8] sm:$0xff]
        %v1832 = vld [vmem:[%s937 + $0x100] sm:$0xff]
        %v1833 = vld [vmem:[%s937 + $0x108] sm:$0xff]
        %v1834 = vld [vmem:[%s937 + $0x110] sm:$0xff]
        %v1835 = vld [vmem:[%s937 + $0x118] sm:$0xff]
        %v1836 = vld [vmem:[%s937 + $0x120] sm:$0xff]
        %v1837 = vld [vmem:[%s937 + $0x128] sm:$0xff]
        %v1838 = vld [vmem:[%s937 + $0x130] sm:$0xff]
        %v1839 = vld [vmem:[%s937 + $0x138] sm:$0xff]
        %v1840 = vld [vmem:[%s937 + $0x140] sm:$0xff]
        %v1841 = vld [vmem:[%s937 + $0x148] sm:$0xff]
        %v1842 = vld [vmem:[%s937 + $0x150] sm:$0xff]
        %v1843 = vld [vmem:[%s937 + $0x158] sm:$0xff]
        %v1844 = vld [vmem:[%s937 + $0x160] sm:$0xff]
        %v1845 = vld [vmem:[%s937 + $0x168] sm:$0xff]
        %v1846 = vld [vmem:[%s937 + $0x170] sm:$0xff]
        %v1847 = vld [vmem:[%s937 + $0x178] sm:$0xff]
        %v1848 = vld [vmem:[%s937 + $0x180] sm:$0xff]
        %v1849 = vld [vmem:[%s937 + $0x188] sm:$0xff]
        %v1850 = vld [vmem:[%s937 + $0x190] sm:$0xff]
        %v1851 = vld [vmem:[%s937 + $0x198] sm:$0xff]
        %v1852 = vld [vmem:[%s937 + $0x1a0] sm:$0xff]
        %v1853 = vld [vmem:[%s937 + $0x1a8] sm:$0xff]
        %v1854 = vld [vmem:[%s937 + $0x1b0] sm:$0xff]
        %v1855 = vld [vmem:[%s937 + $0x1b8] sm:$0xff]
        %v1856 = vld [vmem:[%s937 + $0x1c0] sm:$0xff]
        %v1857 = vld [vmem:[%s937 + $0x1c8] sm:$0xff]
        %v1858 = vld [vmem:[%s937 + $0x1d0] sm:$0xff]
        %v1859 = vld [vmem:[%s937 + $0x1d8] sm:$0xff]
        %v1860 = vld [vmem:[%s937 + $0x1e0] sm:$0xff]
        %v1861 = vld [vmem:[%s937 + $0x1e8] sm:$0xff]
        %v1862 = vld [vmem:[%s937 + $0x1f0] sm:$0xff]
        %v1863 = vld [vmem:[%s937 + $0x1f8] sm:$0xff]
        %v1864 = vld [vmem:[%s941] sm:$0xff]
        %v1865 = vld [vmem:[%s941 + $0x8] sm:$0xff]
        %v1868 = vperm.slane %v1864, 0
        %v1869 = vperm.slane %v1864, 1
        %v1870 = vperm.slane %v1864, 2
        %v1871 = vperm.slane %v1864, 3
        %v1872 = vperm.slane %v1864, 4
        %v1873 = vperm.slane %v1864, 5
        %v1874 = vperm.slane %v1864, 6
        %v1875 = vperm.slane %v1864, 7
        %v1876 = vperm.slane %v1865, 0
        %v1877 = vperm.slane %v1865, 1
        %v1878 = vperm.slane %v1865, 2
        %v1879 = vperm.slane %v1865, 3
        %v1880 = vperm.slane %v1865, 4
        %v1881 = vperm.slane %v1865, 5
        %v1882 = vperm.slane %v1865, 6
        %v1883 = vperm.slane %v1865, 7
        %v1964 = vunpack.c.l.b16 %v1800
        %v1965 = vunpack.c.h.b16 %v1800
        %v1966 = vunpack.c.l.b16 %v1801
        %v1967 = vunpack.c.h.b16 %v1801
        %v1968 = vunpack.c.l.b16 %v1802
        %v1969 = vunpack.c.h.b16 %v1802
        %v1970 = vunpack.c.l.b16 %v1803
        %v1971 = vunpack.c.h.b16 %v1803
        %v1972 = vunpack.c.l.b16 %v1804
        %v1973 = vunpack.c.h.b16 %v1804
        %v1974 = vunpack.c.l.b16 %v1805
        %v1975 = vunpack.c.h.b16 %v1805
        %v1976 = vunpack.c.l.b16 %v1806
        %v1977 = vunpack.c.h.b16 %v1806
        %v1978 = vunpack.c.l.b16 %v1807
        %v1979 = vunpack.c.h.b16 %v1807
        %v1980 = vunpack.c.l.b16 %v1808
        %v1981 = vunpack.c.h.b16 %v1808
        %v1982 = vunpack.c.l.b16 %v1809
        %v1983 = vunpack.c.h.b16 %v1809
        %v1984 = vunpack.c.l.b16 %v1810
        %v1985 = vunpack.c.h.b16 %v1810
        %v1986 = vunpack.c.l.b16 %v1811
        %v1987 = vunpack.c.h.b16 %v1811
        %v1988 = vunpack.c.l.b16 %v1812
        %v1989 = vunpack.c.h.b16 %v1812
        %v1990 = vunpack.c.l.b16 %v1813
        %v1991 = vunpack.c.h.b16 %v1813
        %v1992 = vunpack.c.l.b16 %v1814
        %v1993 = vunpack.c.h.b16 %v1814
        %v1994 = vunpack.c.l.b16 %v1815
        %v1995 = vunpack.c.h.b16 %v1815
        %v1996 = vunpack.c.l.b16 %v1816
        %v1997 = vunpack.c.h.b16 %v1816
        %v1998 = vunpack.c.l.b16 %v1817
        %v1999 = vunpack.c.h.b16 %v1817
        %v2000 = vunpack.c.l.b16 %v1818
        %v2001 = vunpack.c.h.b16 %v1818
        %v2002 = vunpack.c.l.b16 %v1819
        %v2003 = vunpack.c.h.b16 %v1819
        %v2004 = vunpack.c.l.b16 %v1820
        %v2005 = vunpack.c.h.b16 %v1820
        %v2006 = vunpack.c.l.b16 %v1821
        %v2007 = vunpack.c.h.b16 %v1821
        %v2008 = vunpack.c.l.b16 %v1822
        %v2009 = vunpack.c.h.b16 %v1822
        %v2010 = vunpack.c.l.b16 %v1823
        %v2011 = vunpack.c.h.b16 %v1823
        %v2012 = vunpack.c.l.b16 %v1824
        %v2013 = vunpack.c.h.b16 %v1824
        %v2014 = vunpack.c.l.b16 %v1825
        %v2015 = vunpack.c.h.b16 %v1825
        %v2016 = vunpack.c.l.b16 %v1826
        %v2017 = vunpack.c.h.b16 %v1826
        %v2018 = vunpack.c.l.b16 %v1827
        %v2019 = vunpack.c.h.b16 %v1827
        %v2020 = vunpack.c.l.b16 %v1828
        %v2021 = vunpack.c.h.b16 %v1828
        %v2022 = vunpack.c.l.b16 %v1829
        %v2023 = vunpack.c.h.b16 %v1829
        %v2024 = vunpack.c.l.b16 %v1830
        %v2025 = vunpack.c.h.b16 %v1830
        %v2026 = vunpack.c.l.b16 %v1831
        %v2027 = vunpack.c.h.b16 %v1831
        %v2028 = vunpack.c.l.b16 %v1832
        %v2029 = vunpack.c.h.b16 %v1832
        %v2030 = vunpack.c.l.b16 %v1833
        %v2031 = vunpack.c.h.b16 %v1833
        %v2032 = vunpack.c.l.b16 %v1834
        %v2033 = vunpack.c.h.b16 %v1834
        %v2034 = vunpack.c.l.b16 %v1835
        %v2035 = vunpack.c.h.b16 %v1835
        %v2036 = vunpack.c.l.b16 %v1836
        %v2037 = vunpack.c.h.b16 %v1836
        %v2038 = vunpack.c.l.b16 %v1837
        %v2039 = vunpack.c.h.b16 %v1837
        %v2040 = vunpack.c.l.b16 %v1838
        %v2041 = vunpack.c.h.b16 %v1838
        %v2042 = vunpack.c.l.b16 %v1839
        %v2043 = vunpack.c.h.b16 %v1839
        %v2044 = vunpack.c.l.b16 %v1840
        %v2045 = vunpack.c.h.b16 %v1840
        %v2046 = vunpack.c.l.b16 %v1841
        %v2047 = vunpack.c.h.b16 %v1841
        %v2048 = vunpack.c.l.b16 %v1842
        %v2049 = vunpack.c.h.b16 %v1842
        %v2050 = vunpack.c.l.b16 %v1843
        %v2051 = vunpack.c.h.b16 %v1843
        %v2052 = vunpack.c.l.b16 %v1844
        %v2053 = vunpack.c.h.b16 %v1844
        %v2054 = vunpack.c.l.b16 %v1845
        %v2055 = vunpack.c.h.b16 %v1845
        %v2056 = vunpack.c.l.b16 %v1846
        %v2057 = vunpack.c.h.b16 %v1846
        %v2058 = vunpack.c.l.b16 %v1847
        %v2059 = vunpack.c.h.b16 %v1847
        %v2060 = vunpack.c.l.b16 %v1848
        %v2061 = vunpack.c.h.b16 %v1848
        %v2062 = vunpack.c.l.b16 %v1849
        %v2063 = vunpack.c.h.b16 %v1849
        %v2064 = vunpack.c.l.b16 %v1850
        %v2065 = vunpack.c.h.b16 %v1850
        %v2066 = vunpack.c.l.b16 %v1851
        %v2067 = vunpack.c.h.b16 %v1851
        %v2068 = vunpack.c.l.b16 %v1852
        %v2069 = vunpack.c.h.b16 %v1852
        %v2070 = vunpack.c.l.b16 %v1853
        %v2071 = vunpack.c.h.b16 %v1853
        %v2072 = vunpack.c.l.b16 %v1854
        %v2073 = vunpack.c.h.b16 %v1854
        %v2074 = vunpack.c.l.b16 %v1855
        %v2075 = vunpack.c.h.b16 %v1855
        %v2076 = vunpack.c.l.b16 %v1856
        %v2077 = vunpack.c.h.b16 %v1856
        %v2078 = vunpack.c.l.b16 %v1857
        %v2079 = vunpack.c.h.b16 %v1857
        %v2080 = vunpack.c.l.b16 %v1858
        %v2081 = vunpack.c.h.b16 %v1858
        %v2082 = vunpack.c.l.b16 %v1859
        %v2083 = vunpack.c.h.b16 %v1859
        %v2084 = vunpack.c.l.b16 %v1860
        %v2085 = vunpack.c.h.b16 %v1860
        %v2086 = vunpack.c.l.b16 %v1861
        %v2087 = vunpack.c.h.b16 %v1861
        %v2088 = vunpack.c.l.b16 %v1862
        %v2089 = vunpack.c.h.b16 %v1862
        %v2090 = vunpack.c.l.b16 %v1863
        %v2091 = vunpack.c.h.b16 %v1863
        %v2092 = vpack.c.b16 %v1980, %v1964
        %v2093 = vpack.c.b16 %v1981, %v1965
        %v2094 = vpack.c.b16 %v1982, %v1966
        %v2095 = vpack.c.b16 %v1983, %v1967
        %v2096 = vpack.c.b16 %v1984, %v1968
        %v2097 = vpack.c.b16 %v1985, %v1969
        %v2098 = vpack.c.b16 %v1986, %v1970
        %v2099 = vpack.c.b16 %v1987, %v1971
        %v2100 = vpack.c.b16 %v1988, %v1972
        %v2101 = vpack.c.b16 %v1989, %v1973
        %v2102 = vpack.c.b16 %v1990, %v1974
        %v2103 = vpack.c.b16 %v1991, %v1975
        %v2104 = vpack.c.b16 %v1992, %v1976
        %v2105 = vpack.c.b16 %v1993, %v1977
        %v2106 = vpack.c.b16 %v1994, %v1978
        %v2107 = vpack.c.b16 %v1995, %v1979
        %v2108 = vpack.c.b16 %v2012, %v1996
        %v2109 = vpack.c.b16 %v2013, %v1997
        %v2110 = vpack.c.b16 %v2014, %v1998
        %v2111 = vpack.c.b16 %v2015, %v1999
        %v2112 = vpack.c.b16 %v2016, %v2000
        %v2113 = vpack.c.b16 %v2017, %v2001
        %v2114 = vpack.c.b16 %v2018, %v2002
        %v2115 = vpack.c.b16 %v2019, %v2003
        %v2116 = vpack.c.b16 %v2020, %v2004
        %v2117 = vpack.c.b16 %v2021, %v2005
        %v2118 = vpack.c.b16 %v2022, %v2006
        %v2119 = vpack.c.b16 %v2023, %v2007
        %v2120 = vpack.c.b16 %v2024, %v2008
        %v2121 = vpack.c.b16 %v2025, %v2009
        %v2122 = vpack.c.b16 %v2026, %v2010
        %v2123 = vpack.c.b16 %v2027, %v2011
        %v2124 = vpack.c.b16 %v2044, %v2028
        %v2125 = vpack.c.b16 %v2045, %v2029
        %v2126 = vpack.c.b16 %v2046, %v2030
        %v2127 = vpack.c.b16 %v2047, %v2031
        %v2128 = vpack.c.b16 %v2048, %v2032
        %v2129 = vpack.c.b16 %v2049, %v2033
        %v2130 = vpack.c.b16 %v2050, %v2034
        %v2131 = vpack.c.b16 %v2051, %v2035
        %v2132 = vpack.c.b16 %v2052, %v2036
        %v2133 = vpack.c.b16 %v2053, %v2037
        %v2134 = vpack.c.b16 %v2054, %v2038
        %v2135 = vpack.c.b16 %v2055, %v2039
        %v2136 = vpack.c.b16 %v2056, %v2040
        %v2137 = vpack.c.b16 %v2057, %v2041
        %v2138 = vpack.c.b16 %v2058, %v2042
        %v2139 = vpack.c.b16 %v2059, %v2043
        %v2140 = vpack.c.b16 %v2076, %v2060
        %v2141 = vpack.c.b16 %v2077, %v2061
        %v2142 = vpack.c.b16 %v2078, %v2062
        %v2143 = vpack.c.b16 %v2079, %v2063
        %v2144 = vpack.c.b16 %v2080, %v2064
        %v2145 = vpack.c.b16 %v2081, %v2065
        %v2146 = vpack.c.b16 %v2082, %v2066
        %v2147 = vpack.c.b16 %v2083, %v2067
        %v2148 = vpack.c.b16 %v2084, %v2068
        %v2149 = vpack.c.b16 %v2085, %v2069
        %v2150 = vpack.c.b16 %v2086, %v2070
        %v2151 = vpack.c.b16 %v2087, %v2071
        %v2152 = vpack.c.b16 %v2088, %v2072
        %v2153 = vpack.c.b16 %v2089, %v2073
        %v2154 = vpack.c.b16 %v2090, %v2074
        %v2155 = vpack.c.b16 %v2091, %v2075
        %v2221 = vsel %vm1233, %v1799, 0
        %2223 = vmatpush.bf16.msra.mxu0 0
        %2224 = vmatpush.bf16.msra.mxu0 0
        %2225 = vmatpush.bf16.msra.mxu0 0
        %2226 = vmatpush.bf16.msra.mxu0 0
        %2227 = vmatpush.bf16.msra.mxu0 %v2140
        %2228 = vmatpush.bf16.msra.mxu0 %v2124
        %2229 = vmatpush.bf16.msra.mxu0 %v2108
        %2230 = vmatpush.bf16.msra.mxu0 %v2092
        %2231 = vmatmul.bf16.gmra.mxu0 %v2221
        %v2232 = vpop.f32.mrf.mxu0
        %v2233 = vadd.f32 %v1868, %v2232
        %v2234 = vpop.f32.mrf.mxu0
        %v2235 = vadd.f32 %v1868, %v2234
        %2236 = vdwg.mxu0
        %2237 = vmatpush.bf16.msra.mxu0 0
        %2238 = vmatpush.bf16.msra.mxu0 0
        %2239 = vmatpush.bf16.msra.mxu0 0
        %2240 = vmatpush.bf16.msra.mxu0 0
        %2241 = vmatpush.bf16.msra.mxu0 %v2141
        %2242 = vmatpush.bf16.msra.mxu0 %v2125
        %2243 = vmatpush.bf16.msra.mxu0 %v2109
        %2244 = vmatpush.bf16.msra.mxu0 %v2093
        %2245 = vmatmul.bf16.gmra.mxu0 %v2221
        %v2246 = vpop.f32.mrf.mxu0
        %v2247 = vadd.f32 %v1869, %v2246
        %v2248 = vpop.f32.mrf.mxu0
        %v2249 = vadd.f32 %v1869, %v2248
        %2250 = vdwg.mxu0
        %2251 = vmatpush.bf16.msra.mxu0 0
        %2252 = vmatpush.bf16.msra.mxu0 0
        %2253 = vmatpush.bf16.msra.mxu0 0
        %2254 = vmatpush.bf16.msra.mxu0 0
        %2255 = vmatpush.bf16.msra.mxu0 %v2142
        %2256 = vmatpush.bf16.msra.mxu0 %v2126
        %2257 = vmatpush.bf16.msra.mxu0 %v2110
        %2258 = vmatpush.bf16.msra.mxu0 %v2094
        %2259 = vmatmul.bf16.gmra.mxu0 %v2221
        %v2260 = vpop.f32.mrf.mxu0
        %v2261 = vadd.f32 %v1870, %v2260
        %v2262 = vpop.f32.mrf.mxu0
        %v2263 = vadd.f32 %v1870, %v2262
        %2264 = vdwg.mxu0
        %2265 = vmatpush.bf16.msra.mxu0 0
        %2266 = vmatpush.bf16.msra.mxu0 0
        %2267 = vmatpush.bf16.msra.mxu0 0
        %2268 = vmatpush.bf16.msra.mxu0 0
        %2269 = vmatpush.bf16.msra.mxu0 %v2143
        %2270 = vmatpush.bf16.msra.mxu0 %v2127
        %2271 = vmatpush.bf16.msra.mxu0 %v2111
        %2272 = vmatpush.bf16.msra.mxu0 %v2095
        %2273 = vmatmul.bf16.gmra.mxu0 %v2221
        %v2274 = vpop.f32.mrf.mxu0
        %v2275 = vadd.f32 %v1871, %v2274
        %v2276 = vpop.f32.mrf.mxu0
        %v2277 = vadd.f32 %v1871, %v2276
        %2278 = vdwg.mxu0
        %2279 = vmatpush.bf16.msra.mxu0 0
        %2280 = vmatpush.bf16.msra.mxu0 0
        %2281 = vmatpush.bf16.msra.mxu0 0
        %2282 = vmatpush.bf16.msra.mxu0 0
        %2283 = vmatpush.bf16.msra.mxu0 %v2144
        %2284 = vmatpush.bf16.msra.mxu0 %v2128
        %2285 = vmatpush.bf16.msra.mxu0 %v2112
        %2286 = vmatpush.bf16.msra.mxu0 %v2096
        %2287 = vmatmul.bf16.gmra.mxu0 %v2221
        %v2288 = vpop.f32.mrf.mxu0
        %v2289 = vadd.f32 %v1872, %v2288
        %v2290 = vpop.f32.mrf.mxu0
        %v2291 = vadd.f32 %v1872, %v2290
        %2292 = vdwg.mxu0
        %2293 = vmatpush.bf16.msra.mxu0 0
        %2294 = vmatpush.bf16.msra.mxu0 0
        %2295 = vmatpush.bf16.msra.mxu0 0
        %2296 = vmatpush.bf16.msra.mxu0 0
        %2297 = vmatpush.bf16.msra.mxu0 %v2145
        %2298 = vmatpush.bf16.msra.mxu0 %v2129
        %2299 = vmatpush.bf16.msra.mxu0 %v2113
        %2300 = vmatpush.bf16.msra.mxu0 %v2097
        %2301 = vmatmul.bf16.gmra.mxu0 %v2221
        %v2302 = vpop.f32.mrf.mxu0
        %v2303 = vadd.f32 %v1873, %v2302
        %v2304 = vpop.f32.mrf.mxu0
        %v2305 = vadd.f32 %v1873, %v2304
        %2306 = vdwg.mxu0
        %2307 = vmatpush.bf16.msra.mxu0 0
        %2308 = vmatpush.bf16.msra.mxu0 0
        %2309 = vmatpush.bf16.msra.mxu0 0
        %2310 = vmatpush.bf16.msra.mxu0 0
        %2311 = vmatpush.bf16.msra.mxu0 %v2146
        %2312 = vmatpush.bf16.msra.mxu0 %v2130
        %2313 = vmatpush.bf16.msra.mxu0 %v2114
        %2314 = vmatpush.bf16.msra.mxu0 %v2098
        %2315 = vmatmul.bf16.gmra.mxu0 %v2221
        %v2316 = vpop.f32.mrf.mxu0
        %v2317 = vadd.f32 %v1874, %v2316
        %v2318 = vpop.f32.mrf.mxu0
        %v2319 = vadd.f32 %v1874, %v2318
        %2320 = vdwg.mxu0
        %2321 = vmatpush.bf16.msra.mxu0 0
        %2322 = vmatpush.bf16.msra.mxu0 0
        %2323 = vmatpush.bf16.msra.mxu0 0
        %2324 = vmatpush.bf16.msra.mxu0 0
        %2325 = vmatpush.bf16.msra.mxu0 %v2147
        %2326 = vmatpush.bf16.msra.mxu0 %v2131
        %2327 = vmatpush.bf16.msra.mxu0 %v2115
        %2328 = vmatpush.bf16.msra.mxu0 %v2099
        %2329 = vmatmul.bf16.gmra.mxu0 %v2221
        %v2330 = vpop.f32.mrf.mxu0
        %v2331 = vadd.f32 %v1875, %v2330
        %v2332 = vpop.f32.mrf.mxu0
        %v2333 = vadd.f32 %v1875, %v2332
        %2334 = vdwg.mxu0
        %2335 = vmatpush.bf16.msra.mxu0 0
        %2336 = vmatpush.bf16.msra.mxu0 0
        %2337 = vmatpush.bf16.msra.mxu0 0
        %2338 = vmatpush.bf16.msra.mxu0 0
        %2339 = vmatpush.bf16.msra.mxu0 %v2148
        %2340 = vmatpush.bf16.msra.mxu0 %v2132
        %2341 = vmatpush.bf16.msra.mxu0 %v2116
        %2342 = vmatpush.bf16.msra.mxu0 %v2100
        %2343 = vmatmul.bf16.gmra.mxu0 %v2221
        %v2344 = vpop.f32.mrf.mxu0
        %v2345 = vadd.f32 %v1876, %v2344
        %v2346 = vpop.f32.mrf.mxu0
        %v2347 = vadd.f32 %v1876, %v2346
        %2348 = vdwg.mxu0
        %2349 = vmatpush.bf16.msra.mxu0 0
        %2350 = vmatpush.bf16.msra.mxu0 0
        %2351 = vmatpush.bf16.msra.mxu0 0
        %2352 = vmatpush.bf16.msra.mxu0 0
        %2353 = vmatpush.bf16.msra.mxu0 %v2149
        %2354 = vmatpush.bf16.msra.mxu0 %v2133
        %2355 = vmatpush.bf16.msra.mxu0 %v2117
        %2356 = vmatpush.bf16.msra.mxu0 %v2101
        %2357 = vmatmul.bf16.gmra.mxu0 %v2221
        %v2358 = vpop.f32.mrf.mxu0
        %v2359 = vadd.f32 %v1877, %v2358
        %v2360 = vpop.f32.mrf.mxu0
        %v2361 = vadd.f32 %v1877, %v2360
        %2362 = vdwg.mxu0
        %2363 = vmatpush.bf16.msra.mxu0 0
        %2364 = vmatpush.bf16.msra.mxu0 0
        %2365 = vmatpush.bf16.msra.mxu0 0
        %2366 = vmatpush.bf16.msra.mxu0 0
        %2367 = vmatpush.bf16.msra.mxu0 %v2150
        %2368 = vmatpush.bf16.msra.mxu0 %v2134
        %2369 = vmatpush.bf16.msra.mxu0 %v2118
        %2370 = vmatpush.bf16.msra.mxu0 %v2102
        %2371 = vmatmul.bf16.gmra.mxu0 %v2221
        %v2372 = vpop.f32.mrf.mxu0
        %v2373 = vadd.f32 %v1878, %v2372
        %v2374 = vpop.f32.mrf.mxu0
        %v2375 = vadd.f32 %v1878, %v2374
        %2376 = vdwg.mxu0
        %2377 = vmatpush.bf16.msra.mxu0 0
        %2378 = vmatpush.bf16.msra.mxu0 0
        %2379 = vmatpush.bf16.msra.mxu0 0
        %2380 = vmatpush.bf16.msra.mxu0 0
        %2381 = vmatpush.bf16.msra.mxu0 %v2151
        %2382 = vmatpush.bf16.msra.mxu0 %v2135
        %2383 = vmatpush.bf16.msra.mxu0 %v2119
        %2384 = vmatpush.bf16.msra.mxu0 %v2103
        %2385 = vmatmul.bf16.gmra.mxu0 %v2221
        %v2386 = vpop.f32.mrf.mxu0
        %v2387 = vadd.f32 %v1879, %v2386
        %v2388 = vpop.f32.mrf.mxu0
        %v2389 = vadd.f32 %v1879, %v2388
        %2390 = vdwg.mxu0
        %2391 = vmatpush.bf16.msra.mxu0 0
        %2392 = vmatpush.bf16.msra.mxu0 0
        %2393 = vmatpush.bf16.msra.mxu0 0
        %2394 = vmatpush.bf16.msra.mxu0 0
        %2395 = vmatpush.bf16.msra.mxu0 %v2152
        %2396 = vmatpush.bf16.msra.mxu0 %v2136
        %2397 = vmatpush.bf16.msra.mxu0 %v2120
        %2398 = vmatpush.bf16.msra.mxu0 %v2104
        %2399 = vmatmul.bf16.gmra.mxu0 %v2221
        %v2400 = vpop.f32.mrf.mxu0
        %v2401 = vadd.f32 %v1880, %v2400
        %v2402 = vpop.f32.mrf.mxu0
        %v2403 = vadd.f32 %v1880, %v2402
        %2404 = vdwg.mxu0
        %2405 = vmatpush.bf16.msra.mxu0 0
        %2406 = vmatpush.bf16.msra.mxu0 0
        %2407 = vmatpush.bf16.msra.mxu0 0
        %2408 = vmatpush.bf16.msra.mxu0 0
        %2409 = vmatpush.bf16.msra.mxu0 %v2153
        %2410 = vmatpush.bf16.msra.mxu0 %v2137
        %2411 = vmatpush.bf16.msra.mxu0 %v2121
        %2412 = vmatpush.bf16.msra.mxu0 %v2105
        %2413 = vmatmul.bf16.gmra.mxu0 %v2221
        %v2414 = vpop.f32.mrf.mxu0
        %v2415 = vadd.f32 %v1881, %v2414
        %v2416 = vpop.f32.mrf.mxu0
        %v2417 = vadd.f32 %v1881, %v2416
        %2418 = vdwg.mxu0
        %2419 = vmatpush.bf16.msra.mxu0 0
        %2420 = vmatpush.bf16.msra.mxu0 0
        %2421 = vmatpush.bf16.msra.mxu0 0
        %2422 = vmatpush.bf16.msra.mxu0 0
        %2423 = vmatpush.bf16.msra.mxu0 %v2154
        %2424 = vmatpush.bf16.msra.mxu0 %v2138
        %2425 = vmatpush.bf16.msra.mxu0 %v2122
        %2426 = vmatpush.bf16.msra.mxu0 %v2106
        %2427 = vmatmul.bf16.gmra.mxu0 %v2221
        %v2428 = vpop.f32.mrf.mxu0
        %v2429 = vadd.f32 %v1882, %v2428
        %v2430 = vpop.f32.mrf.mxu0
        %v2431 = vadd.f32 %v1882, %v2430
        %2432 = vdwg.mxu0
        %2433 = vmatpush.bf16.msra.mxu0 0
        %2434 = vmatpush.bf16.msra.mxu0 0
        %2435 = vmatpush.bf16.msra.mxu0 0
        %2436 = vmatpush.bf16.msra.mxu0 0
        %2437 = vmatpush.bf16.msra.mxu0 %v2155
        %2438 = vmatpush.bf16.msra.mxu0 %v2139
        %2439 = vmatpush.bf16.msra.mxu0 %v2123
        %2440 = vmatpush.bf16.msra.mxu0 %v2107
        %2441 = vmatmul.bf16.gmra.mxu0 %v2221
        %v2442 = vpop.f32.mrf.mxu0
        %v2443 = vadd.f32 %v1883, %v2442
        %v2444 = vpop.f32.mrf.mxu0
        %v2445 = vadd.f32 %v1883, %v2444
        %2446 = vdwg.mxu0
        %v2447 = vmax.f32 %v2233, 0.0
        %v2448 = vmax.f32 %v2247, 0.0
        %v2449 = vmax.f32 %v2261, 0.0
        %v2450 = vmax.f32 %v2275, 0.0
        %v2451 = vmax.f32 %v2289, 0.0
        %v2452 = vmax.f32 %v2303, 0.0
        %v2453 = vmax.f32 %v2317, 0.0
        %v2454 = vmax.f32 %v2331, 0.0
        %v2455 = vmax.f32 %v2345, 0.0
        %v2456 = vmax.f32 %v2359, 0.0
        %v2457 = vmax.f32 %v2373, 0.0
        %v2458 = vmax.f32 %v2387, 0.0
        %v2459 = vmax.f32 %v2401, 0.0
        %v2460 = vmax.f32 %v2415, 0.0
        %v2461 = vmax.f32 %v2429, 0.0
        %v2462 = vmax.f32 %v2443, 0.0
        %v2463 = vmax.f32 %v2235, 0.0
        %v2464 = vmax.f32 %v2249, 0.0
        %v2465 = vmax.f32 %v2263, 0.0
        %v2466 = vmax.f32 %v2277, 0.0
        %v2467 = vmax.f32 %v2291, 0.0
        %v2468 = vmax.f32 %v2305, 0.0
        %v2469 = vmax.f32 %v2319, 0.0
        %v2470 = vmax.f32 %v2333, 0.0
        %v2471 = vmax.f32 %v2347, 0.0
        %v2472 = vmax.f32 %v2361, 0.0
        %v2473 = vmax.f32 %v2375, 0.0
        %v2474 = vmax.f32 %v2389, 0.0
        %v2475 = vmax.f32 %v2403, 0.0
        %v2476 = vmax.f32 %v2417, 0.0
        %v2477 = vmax.f32 %v2431, 0.0
        %v2478 = vmax.f32 %v2445, 0.0
        %v2479 = vpack.c.bf16 %v2463, %v2447
        %v2480 = vpack.c.bf16 %v2464, %v2448
        %v2481 = vpack.c.bf16 %v2465, %v2449
        %v2482 = vpack.c.bf16 %v2466, %v2450
        %v2483 = vpack.c.bf16 %v2467, %v2451
        %v2484 = vpack.c.bf16 %v2468, %v2452
        %v2485 = vpack.c.bf16 %v2469, %v2453
        %v2486 = vpack.c.bf16 %v2470, %v2454
        %v2487 = vpack.c.bf16 %v2471, %v2455
        %v2488 = vpack.c.bf16 %v2472, %v2456
        %v2489 = vpack.c.bf16 %v2473, %v2457
        %v2490 = vpack.c.bf16 %v2474, %v2458
        %v2491 = vpack.c.bf16 %v2475, %v2459
        %v2492 = vpack.c.bf16 %v2476, %v2460
        %v2493 = vpack.c.bf16 %v2477, %v2461
        %v2494 = vpack.c.bf16 %v2478, %v2462
        %v2495 = vld [vmem:[%s946] sm:$0xf]
        %v2496 = vld [vmem:[%s946 + $0x4] sm:$0xf]
        %v2497 = vld [vmem:[%s946 + $0x8] sm:$0xf]
        %v2498 = vld [vmem:[%s946 + $0xc] sm:$0xf]
        %v2499 = vld [vmem:[%s946 + $0x10] sm:$0xf]
        %v2500 = vld [vmem:[%s946 + $0x14] sm:$0xf]
        %v2501 = vld [vmem:[%s946 + $0x18] sm:$0xf]
        %v2502 = vld [vmem:[%s946 + $0x1c] sm:$0xf]
        %v2503 = vld [vmem:[%s946 + $0x20] sm:$0xf]
        %v2504 = vld [vmem:[%s946 + $0x24] sm:$0xf]
        %v2505 = vld [vmem:[%s946 + $0x28] sm:$0xf]
        %v2506 = vld [vmem:[%s946 + $0x2c] sm:$0xf]
        %v2507 = vld [vmem:[%s946 + $0x30] sm:$0xf]
        %v2508 = vld [vmem:[%s946 + $0x34] sm:$0xf]
        %v2509 = vld [vmem:[%s946 + $0x38] sm:$0xf]
        %v2510 = vld [vmem:[%s946 + $0x3c] sm:$0xf]
        %v2511 = vld [vmem:[%s946 + $0x40] sm:$0xf]
        %v2512 = vld [vmem:[%s946 + $0x44] sm:$0xf]
        %v2513 = vld [vmem:[%s946 + $0x48] sm:$0xf]
        %v2514 = vld [vmem:[%s946 + $0x4c] sm:$0xf]
        %v2515 = vld [vmem:[%s946 + $0x50] sm:$0xf]
        %v2516 = vld [vmem:[%s946 + $0x54] sm:$0xf]
        %v2517 = vld [vmem:[%s946 + $0x58] sm:$0xf]
        %v2518 = vld [vmem:[%s946 + $0x5c] sm:$0xf]
        %v2519 = vld [vmem:[%s946 + $0x60] sm:$0xf]
        %v2520 = vld [vmem:[%s946 + $0x64] sm:$0xf]
        %v2521 = vld [vmem:[%s946 + $0x68] sm:$0xf]
        %v2522 = vld [vmem:[%s946 + $0x6c] sm:$0xf]
        %v2523 = vld [vmem:[%s946 + $0x70] sm:$0xf]
        %v2524 = vld [vmem:[%s946 + $0x74] sm:$0xf]
        %v2525 = vld [vmem:[%s946 + $0x78] sm:$0xf]
        %v2526 = vld [vmem:[%s946 + $0x7c] sm:$0xf]
        %v2527 = vld [vmem:[%s946 + $0x80] sm:$0xf]
        %v2528 = vld [vmem:[%s946 + $0x84] sm:$0xf]
        %v2529 = vld [vmem:[%s946 + $0x88] sm:$0xf]
        %v2530 = vld [vmem:[%s946 + $0x8c] sm:$0xf]
        %v2531 = vld [vmem:[%s946 + $0x90] sm:$0xf]
        %v2532 = vld [vmem:[%s946 + $0x94] sm:$0xf]
        %v2533 = vld [vmem:[%s946 + $0x98] sm:$0xf]
        %v2534 = vld [vmem:[%s946 + $0x9c] sm:$0xf]
        %v2535 = vld [vmem:[%s946 + $0xa0] sm:$0xf]
        %v2536 = vld [vmem:[%s946 + $0xa4] sm:$0xf]
        %v2537 = vld [vmem:[%s946 + $0xa8] sm:$0xf]
        %v2538 = vld [vmem:[%s946 + $0xac] sm:$0xf]
        %v2539 = vld [vmem:[%s946 + $0xb0] sm:$0xf]
        %v2540 = vld [vmem:[%s946 + $0xb4] sm:$0xf]
        %v2541 = vld [vmem:[%s946 + $0xb8] sm:$0xf]
        %v2542 = vld [vmem:[%s946 + $0xbc] sm:$0xf]
        %v2543 = vld [vmem:[%s946 + $0xc0] sm:$0xf]
        %v2544 = vld [vmem:[%s946 + $0xc4] sm:$0xf]
        %v2545 = vld [vmem:[%s946 + $0xc8] sm:$0xf]
        %v2546 = vld [vmem:[%s946 + $0xcc] sm:$0xf]
        %v2547 = vld [vmem:[%s946 + $0xd0] sm:$0xf]
        %v2548 = vld [vmem:[%s946 + $0xd4] sm:$0xf]
        %v2549 = vld [vmem:[%s946 + $0xd8] sm:$0xf]
        %v2550 = vld [vmem:[%s946 + $0xdc] sm:$0xf]
        %v2551 = vld [vmem:[%s946 + $0xe0] sm:$0xf]
        %v2552 = vld [vmem:[%s946 + $0xe4] sm:$0xf]
        %v2553 = vld [vmem:[%s946 + $0xe8] sm:$0xf]
        %v2554 = vld [vmem:[%s946 + $0xec] sm:$0xf]
        %v2555 = vld [vmem:[%s946 + $0xf0] sm:$0xf]
        %v2556 = vld [vmem:[%s946 + $0xf4] sm:$0xf]
        %v2557 = vld [vmem:[%s946 + $0xf8] sm:$0xf]
        %v2558 = vld [vmem:[%s946 + $0xfc] sm:$0xf]
        %v2559 = vld [vmem:[%s946 + $0x100] sm:$0xf]
        %v2560 = vld [vmem:[%s946 + $0x104] sm:$0xf]
        %v2561 = vld [vmem:[%s946 + $0x108] sm:$0xf]
        %v2562 = vld [vmem:[%s946 + $0x10c] sm:$0xf]
        %v2563 = vld [vmem:[%s946 + $0x110] sm:$0xf]
        %v2564 = vld [vmem:[%s946 + $0x114] sm:$0xf]
        %v2565 = vld [vmem:[%s946 + $0x118] sm:$0xf]
        %v2566 = vld [vmem:[%s946 + $0x11c] sm:$0xf]
        %v2567 = vld [vmem:[%s946 + $0x120] sm:$0xf]
        %v2568 = vld [vmem:[%s946 + $0x124] sm:$0xf]
        %v2569 = vld [vmem:[%s946 + $0x128] sm:$0xf]
        %v2570 = vld [vmem:[%s946 + $0x12c] sm:$0xf]
        %v2571 = vld [vmem:[%s946 + $0x130] sm:$0xf]
        %v2572 = vld [vmem:[%s946 + $0x134] sm:$0xf]
        %v2573 = vld [vmem:[%s946 + $0x138] sm:$0xf]
        %v2574 = vld [vmem:[%s946 + $0x13c] sm:$0xf]
        %v2575 = vld [vmem:[%s946 + $0x140] sm:$0xf]
        %v2576 = vld [vmem:[%s946 + $0x144] sm:$0xf]
        %v2577 = vld [vmem:[%s946 + $0x148] sm:$0xf]
        %v2578 = vld [vmem:[%s946 + $0x14c] sm:$0xf]
        %v2579 = vld [vmem:[%s946 + $0x150] sm:$0xf]
        %v2580 = vld [vmem:[%s946 + $0x154] sm:$0xf]
        %v2581 = vld [vmem:[%s946 + $0x158] sm:$0xf]
        %v2582 = vld [vmem:[%s946 + $0x15c] sm:$0xf]
        %v2583 = vld [vmem:[%s946 + $0x160] sm:$0xf]
        %v2584 = vld [vmem:[%s946 + $0x164] sm:$0xf]
        %v2585 = vld [vmem:[%s946 + $0x168] sm:$0xf]
        %v2586 = vld [vmem:[%s946 + $0x16c] sm:$0xf]
        %v2587 = vld [vmem:[%s946 + $0x170] sm:$0xf]
        %v2588 = vld [vmem:[%s946 + $0x174] sm:$0xf]
        %v2589 = vld [vmem:[%s946 + $0x178] sm:$0xf]
        %v2590 = vld [vmem:[%s946 + $0x17c] sm:$0xf]
        %v2591 = vld [vmem:[%s946 + $0x180] sm:$0xf]
        %v2592 = vld [vmem:[%s946 + $0x184] sm:$0xf]
        %v2593 = vld [vmem:[%s946 + $0x188] sm:$0xf]
        %v2594 = vld [vmem:[%s946 + $0x18c] sm:$0xf]
        %v2595 = vld [vmem:[%s946 + $0x190] sm:$0xf]
        %v2596 = vld [vmem:[%s946 + $0x194] sm:$0xf]
        %v2597 = vld [vmem:[%s946 + $0x198] sm:$0xf]
        %v2598 = vld [vmem:[%s946 + $0x19c] sm:$0xf]
        %v2599 = vld [vmem:[%s946 + $0x1a0] sm:$0xf]
        %v2600 = vld [vmem:[%s946 + $0x1a4] sm:$0xf]
        %v2601 = vld [vmem:[%s946 + $0x1a8] sm:$0xf]
        %v2602 = vld [vmem:[%s946 + $0x1ac] sm:$0xf]
        %v2603 = vld [vmem:[%s946 + $0x1b0] sm:$0xf]
        %v2604 = vld [vmem:[%s946 + $0x1b4] sm:$0xf]
        %v2605 = vld [vmem:[%s946 + $0x1b8] sm:$0xf]
        %v2606 = vld [vmem:[%s946 + $0x1bc] sm:$0xf]
        %v2607 = vld [vmem:[%s946 + $0x1c0] sm:$0xf]
        %v2608 = vld [vmem:[%s946 + $0x1c4] sm:$0xf]
        %v2609 = vld [vmem:[%s946 + $0x1c8] sm:$0xf]
        %v2610 = vld [vmem:[%s946 + $0x1cc] sm:$0xf]
        %v2611 = vld [vmem:[%s946 + $0x1d0] sm:$0xf]
        %v2612 = vld [vmem:[%s946 + $0x1d4] sm:$0xf]
        %v2613 = vld [vmem:[%s946 + $0x1d8] sm:$0xf]
        %v2614 = vld [vmem:[%s946 + $0x1dc] sm:$0xf]
        %v2615 = vld [vmem:[%s946 + $0x1e0] sm:$0xf]
        %v2616 = vld [vmem:[%s946 + $0x1e4] sm:$0xf]
        %v2617 = vld [vmem:[%s946 + $0x1e8] sm:$0xf]
        %v2618 = vld [vmem:[%s946 + $0x1ec] sm:$0xf]
        %v2619 = vld [vmem:[%s946 + $0x1f0] sm:$0xf]
        %v2620 = vld [vmem:[%s946 + $0x1f4] sm:$0xf]
        %v2621 = vld [vmem:[%s946 + $0x1f8] sm:$0xf]
        %v2622 = vld [vmem:[%s946 + $0x1fc] sm:$0xf]
        %v2623 = vld [vmem:[%s946 + $0x200] sm:$0xf]
        %v2624 = vld [vmem:[%s946 + $0x204] sm:$0xf]
        %v2625 = vld [vmem:[%s946 + $0x208] sm:$0xf]
        %v2626 = vld [vmem:[%s946 + $0x20c] sm:$0xf]
        %v2627 = vld [vmem:[%s946 + $0x210] sm:$0xf]
        %v2628 = vld [vmem:[%s946 + $0x214] sm:$0xf]
        %v2629 = vld [vmem:[%s946 + $0x218] sm:$0xf]
        %v2630 = vld [vmem:[%s946 + $0x21c] sm:$0xf]
        %v2631 = vld [vmem:[%s946 + $0x220] sm:$0xf]
        %v2632 = vld [vmem:[%s946 + $0x224] sm:$0xf]
        %v2633 = vld [vmem:[%s946 + $0x228] sm:$0xf]
        %v2634 = vld [vmem:[%s946 + $0x22c] sm:$0xf]
        %v2635 = vld [vmem:[%s946 + $0x230] sm:$0xf]
        %v2636 = vld [vmem:[%s946 + $0x234] sm:$0xf]
        %v2637 = vld [vmem:[%s946 + $0x238] sm:$0xf]
        %v2638 = vld [vmem:[%s946 + $0x23c] sm:$0xf]
        %v2639 = vld [vmem:[%s946 + $0x240] sm:$0xf]
        %v2640 = vld [vmem:[%s946 + $0x244] sm:$0xf]
        %v2641 = vld [vmem:[%s946 + $0x248] sm:$0xf]
        %v2642 = vld [vmem:[%s946 + $0x24c] sm:$0xf]
        %v2643 = vld [vmem:[%s946 + $0x250] sm:$0xf]
        %v2644 = vld [vmem:[%s946 + $0x254] sm:$0xf]
        %v2645 = vld [vmem:[%s946 + $0x258] sm:$0xf]
        %v2646 = vld [vmem:[%s946 + $0x25c] sm:$0xf]
        %v2647 = vld [vmem:[%s946 + $0x260] sm:$0xf]
        %v2648 = vld [vmem:[%s946 + $0x264] sm:$0xf]
        %v2649 = vld [vmem:[%s946 + $0x268] sm:$0xf]
        %v2650 = vld [vmem:[%s946 + $0x26c] sm:$0xf]
        %v2651 = vld [vmem:[%s946 + $0x270] sm:$0xf]
        %v2652 = vld [vmem:[%s946 + $0x274] sm:$0xf]
        %v2653 = vld [vmem:[%s946 + $0x278] sm:$0xf]
        %v2654 = vld [vmem:[%s946 + $0x27c] sm:$0xf]
        %v2655 = vld [vmem:[%s946 + $0x280] sm:$0xf]
        %v2656 = vld [vmem:[%s946 + $0x284] sm:$0xf]
        %v2657 = vld [vmem:[%s946 + $0x288] sm:$0xf]
        %v2658 = vld [vmem:[%s946 + $0x28c] sm:$0xf]
        %v2659 = vld [vmem:[%s946 + $0x290] sm:$0xf]
        %v2660 = vld [vmem:[%s946 + $0x294] sm:$0xf]
        %v2661 = vld [vmem:[%s946 + $0x298] sm:$0xf]
        %v2662 = vld [vmem:[%s946 + $0x29c] sm:$0xf]
        %v2663 = vld [vmem:[%s946 + $0x2a0] sm:$0xf]
        %v2664 = vld [vmem:[%s946 + $0x2a4] sm:$0xf]
        %v2665 = vld [vmem:[%s946 + $0x2a8] sm:$0xf]
        %v2666 = vld [vmem:[%s946 + $0x2ac] sm:$0xf]
        %v2667 = vld [vmem:[%s946 + $0x2b0] sm:$0xf]
        %v2668 = vld [vmem:[%s946 + $0x2b4] sm:$0xf]
        %v2669 = vld [vmem:[%s946 + $0x2b8] sm:$0xf]
        %v2670 = vld [vmem:[%s946 + $0x2bc] sm:$0xf]
        %v2671 = vld [vmem:[%s946 + $0x2c0] sm:$0xf]
        %v2672 = vld [vmem:[%s946 + $0x2c4] sm:$0xf]
        %v2673 = vld [vmem:[%s946 + $0x2c8] sm:$0xf]
        %v2674 = vld [vmem:[%s946 + $0x2cc] sm:$0xf]
        %v2675 = vld [vmem:[%s946 + $0x2d0] sm:$0xf]
        %v2676 = vld [vmem:[%s946 + $0x2d4] sm:$0xf]
        %v2677 = vld [vmem:[%s946 + $0x2d8] sm:$0xf]
        %v2678 = vld [vmem:[%s946 + $0x2dc] sm:$0xf]
        %v2679 = vld [vmem:[%s946 + $0x2e0] sm:$0xf]
        %v2680 = vld [vmem:[%s946 + $0x2e4] sm:$0xf]
        %v2681 = vld [vmem:[%s946 + $0x2e8] sm:$0xf]
        %v2682 = vld [vmem:[%s946 + $0x2ec] sm:$0xf]
        %v2683 = vld [vmem:[%s946 + $0x2f0] sm:$0xf]
        %v2684 = vld [vmem:[%s946 + $0x2f4] sm:$0xf]
        %v2685 = vld [vmem:[%s946 + $0x2f8] sm:$0xf]
        %v2686 = vld [vmem:[%s946 + $0x2fc] sm:$0xf]
        %v2687 = vld [vmem:[%s946 + $0x300] sm:$0xf]
        %v2688 = vld [vmem:[%s946 + $0x304] sm:$0xf]
        %v2689 = vld [vmem:[%s946 + $0x308] sm:$0xf]
        %v2690 = vld [vmem:[%s946 + $0x30c] sm:$0xf]
        %v2691 = vld [vmem:[%s946 + $0x310] sm:$0xf]
        %v2692 = vld [vmem:[%s946 + $0x314] sm:$0xf]
        %v2693 = vld [vmem:[%s946 + $0x318] sm:$0xf]
        %v2694 = vld [vmem:[%s946 + $0x31c] sm:$0xf]
        %v2695 = vld [vmem:[%s946 + $0x320] sm:$0xf]
        %v2696 = vld [vmem:[%s946 + $0x324] sm:$0xf]
        %v2697 = vld [vmem:[%s946 + $0x328] sm:$0xf]
        %v2698 = vld [vmem:[%s946 + $0x32c] sm:$0xf]
        %v2699 = vld [vmem:[%s946 + $0x330] sm:$0xf]
        %v2700 = vld [vmem:[%s946 + $0x334] sm:$0xf]
        %v2701 = vld [vmem:[%s946 + $0x338] sm:$0xf]
        %v2702 = vld [vmem:[%s946 + $0x33c] sm:$0xf]
        %v2703 = vld [vmem:[%s946 + $0x340] sm:$0xf]
        %v2704 = vld [vmem:[%s946 + $0x344] sm:$0xf]
        %v2705 = vld [vmem:[%s946 + $0x348] sm:$0xf]
        %v2706 = vld [vmem:[%s946 + $0x34c] sm:$0xf]
        %v2707 = vld [vmem:[%s946 + $0x350] sm:$0xf]
        %v2708 = vld [vmem:[%s946 + $0x354] sm:$0xf]
        %v2709 = vld [vmem:[%s946 + $0x358] sm:$0xf]
        %v2710 = vld [vmem:[%s946 + $0x35c] sm:$0xf]
        %v2711 = vld [vmem:[%s946 + $0x360] sm:$0xf]
        %v2712 = vld [vmem:[%s946 + $0x364] sm:$0xf]
        %v2713 = vld [vmem:[%s946 + $0x368] sm:$0xf]
        %v2714 = vld [vmem:[%s946 + $0x36c] sm:$0xf]
        %v2715 = vld [vmem:[%s946 + $0x370] sm:$0xf]
        %v2716 = vld [vmem:[%s946 + $0x374] sm:$0xf]
        %v2717 = vld [vmem:[%s946 + $0x378] sm:$0xf]
        %v2718 = vld [vmem:[%s946 + $0x37c] sm:$0xf]
        %v2719 = vld [vmem:[%s946 + $0x380] sm:$0xf]
        %v2720 = vld [vmem:[%s946 + $0x384] sm:$0xf]
        %v2721 = vld [vmem:[%s946 + $0x388] sm:$0xf]
        %v2722 = vld [vmem:[%s946 + $0x38c] sm:$0xf]
        %v2723 = vld [vmem:[%s946 + $0x390] sm:$0xf]
        %v2724 = vld [vmem:[%s946 + $0x394] sm:$0xf]
        %v2725 = vld [vmem:[%s946 + $0x398] sm:$0xf]
        %v2726 = vld [vmem:[%s946 + $0x39c] sm:$0xf]
        %v2727 = vld [vmem:[%s946 + $0x3a0] sm:$0xf]
        %v2728 = vld [vmem:[%s946 + $0x3a4] sm:$0xf]
        %v2729 = vld [vmem:[%s946 + $0x3a8] sm:$0xf]
        %v2730 = vld [vmem:[%s946 + $0x3ac] sm:$0xf]
        %v2731 = vld [vmem:[%s946 + $0x3b0] sm:$0xf]
        %v2732 = vld [vmem:[%s946 + $0x3b4] sm:$0xf]
        %v2733 = vld [vmem:[%s946 + $0x3b8] sm:$0xf]
        %v2734 = vld [vmem:[%s946 + $0x3bc] sm:$0xf]
        %v2735 = vld [vmem:[%s946 + $0x3c0] sm:$0xf]
        %v2736 = vld [vmem:[%s946 + $0x3c4] sm:$0xf]
        %v2737 = vld [vmem:[%s946 + $0x3c8] sm:$0xf]
        %v2738 = vld [vmem:[%s946 + $0x3cc] sm:$0xf]
        %v2739 = vld [vmem:[%s946 + $0x3d0] sm:$0xf]
        %v2740 = vld [vmem:[%s946 + $0x3d4] sm:$0xf]
        %v2741 = vld [vmem:[%s946 + $0x3d8] sm:$0xf]
        %v2742 = vld [vmem:[%s946 + $0x3dc] sm:$0xf]
        %v2743 = vld [vmem:[%s946 + $0x3e0] sm:$0xf]
        %v2744 = vld [vmem:[%s946 + $0x3e4] sm:$0xf]
        %v2745 = vld [vmem:[%s946 + $0x3e8] sm:$0xf]
        %v2746 = vld [vmem:[%s946 + $0x3ec] sm:$0xf]
        %v2747 = vld [vmem:[%s946 + $0x3f0] sm:$0xf]
        %v2748 = vld [vmem:[%s946 + $0x3f4] sm:$0xf]
        %v2749 = vld [vmem:[%s946 + $0x3f8] sm:$0xf]
        %v2750 = vld [vmem:[%s946 + $0x3fc] sm:$0xf]
        %v2751 = vld [vmem:[%s949] sm:$0x1]
        %v2753 = vperm.slane %v2751, 0
        %v3011 = vunpack.c.l.b16 %v2495
        %v3012 = vunpack.c.l.b16 %v2496
        %v3013 = vunpack.c.l.b16 %v2497
        %v3014 = vunpack.c.l.b16 %v2498
        %v3015 = vunpack.c.l.b16 %v2499
        %v3016 = vunpack.c.l.b16 %v2500
        %v3017 = vunpack.c.l.b16 %v2501
        %v3018 = vunpack.c.l.b16 %v2502
        %v3019 = vunpack.c.l.b16 %v2503
        %v3020 = vunpack.c.l.b16 %v2504
        %v3021 = vunpack.c.l.b16 %v2505
        %v3022 = vunpack.c.l.b16 %v2506
        %v3023 = vunpack.c.l.b16 %v2507
        %v3024 = vunpack.c.l.b16 %v2508
        %v3025 = vunpack.c.l.b16 %v2509
        %v3026 = vunpack.c.l.b16 %v2510
        %v3027 = vunpack.c.l.b16 %v2511
        %v3028 = vunpack.c.l.b16 %v2512
        %v3029 = vunpack.c.l.b16 %v2513
        %v3030 = vunpack.c.l.b16 %v2514
        %v3031 = vunpack.c.l.b16 %v2515
        %v3032 = vunpack.c.l.b16 %v2516
        %v3033 = vunpack.c.l.b16 %v2517
        %v3034 = vunpack.c.l.b16 %v2518
        %v3035 = vunpack.c.l.b16 %v2519
        %v3036 = vunpack.c.l.b16 %v2520
        %v3037 = vunpack.c.l.b16 %v2521
        %v3038 = vunpack.c.l.b16 %v2522
        %v3039 = vunpack.c.l.b16 %v2523
        %v3040 = vunpack.c.l.b16 %v2524
        %v3041 = vunpack.c.l.b16 %v2525
        %v3042 = vunpack.c.l.b16 %v2526
        %v3043 = vunpack.c.l.b16 %v2527
        %v3044 = vunpack.c.l.b16 %v2528
        %v3045 = vunpack.c.l.b16 %v2529
        %v3046 = vunpack.c.l.b16 %v2530
        %v3047 = vunpack.c.l.b16 %v2531
        %v3048 = vunpack.c.l.b16 %v2532
        %v3049 = vunpack.c.l.b16 %v2533
        %v3050 = vunpack.c.l.b16 %v2534
        %v3051 = vunpack.c.l.b16 %v2535
        %v3052 = vunpack.c.l.b16 %v2536
        %v3053 = vunpack.c.l.b16 %v2537
        %v3054 = vunpack.c.l.b16 %v2538
        %v3055 = vunpack.c.l.b16 %v2539
        %v3056 = vunpack.c.l.b16 %v2540
        %v3057 = vunpack.c.l.b16 %v2541
        %v3058 = vunpack.c.l.b16 %v2542
        %v3059 = vunpack.c.l.b16 %v2543
        %v3060 = vunpack.c.l.b16 %v2544
        %v3061 = vunpack.c.l.b16 %v2545
        %v3062 = vunpack.c.l.b16 %v2546
        %v3063 = vunpack.c.l.b16 %v2547
        %v3064 = vunpack.c.l.b16 %v2548
        %v3065 = vunpack.c.l.b16 %v2549
        %v3066 = vunpack.c.l.b16 %v2550
        %v3067 = vunpack.c.l.b16 %v2551
        %v3068 = vunpack.c.l.b16 %v2552
        %v3069 = vunpack.c.l.b16 %v2553
        %v3070 = vunpack.c.l.b16 %v2554
        %v3071 = vunpack.c.l.b16 %v2555
        %v3072 = vunpack.c.l.b16 %v2556
        %v3073 = vunpack.c.l.b16 %v2557
        %v3074 = vunpack.c.l.b16 %v2558
        %v3075 = vunpack.c.l.b16 %v2559
        %v3076 = vunpack.c.l.b16 %v2560
        %v3077 = vunpack.c.l.b16 %v2561
        %v3078 = vunpack.c.l.b16 %v2562
        %v3079 = vunpack.c.l.b16 %v2563
        %v3080 = vunpack.c.l.b16 %v2564
        %v3081 = vunpack.c.l.b16 %v2565
        %v3082 = vunpack.c.l.b16 %v2566
        %v3083 = vunpack.c.l.b16 %v2567
        %v3084 = vunpack.c.l.b16 %v2568
        %v3085 = vunpack.c.l.b16 %v2569
        %v3086 = vunpack.c.l.b16 %v2570
        %v3087 = vunpack.c.l.b16 %v2571
        %v3088 = vunpack.c.l.b16 %v2572
        %v3089 = vunpack.c.l.b16 %v2573
        %v3090 = vunpack.c.l.b16 %v2574
        %v3091 = vunpack.c.l.b16 %v2575
        %v3092 = vunpack.c.l.b16 %v2576
        %v3093 = vunpack.c.l.b16 %v2577
        %v3094 = vunpack.c.l.b16 %v2578
        %v3095 = vunpack.c.l.b16 %v2579
        %v3096 = vunpack.c.l.b16 %v2580
        %v3097 = vunpack.c.l.b16 %v2581
        %v3098 = vunpack.c.l.b16 %v2582
        %v3099 = vunpack.c.l.b16 %v2583
        %v3100 = vunpack.c.l.b16 %v2584
        %v3101 = vunpack.c.l.b16 %v2585
        %v3102 = vunpack.c.l.b16 %v2586
        %v3103 = vunpack.c.l.b16 %v2587
        %v3104 = vunpack.c.l.b16 %v2588
        %v3105 = vunpack.c.l.b16 %v2589
        %v3106 = vunpack.c.l.b16 %v2590
        %v3107 = vunpack.c.l.b16 %v2591
        %v3108 = vunpack.c.l.b16 %v2592
        %v3109 = vunpack.c.l.b16 %v2593
        %v3110 = vunpack.c.l.b16 %v2594
        %v3111 = vunpack.c.l.b16 %v2595
        %v3112 = vunpack.c.l.b16 %v2596
        %v3113 = vunpack.c.l.b16 %v2597
        %v3114 = vunpack.c.l.b16 %v2598
        %v3115 = vunpack.c.l.b16 %v2599
        %v3116 = vunpack.c.l.b16 %v2600
        %v3117 = vunpack.c.l.b16 %v2601
        %v3118 = vunpack.c.l.b16 %v2602
        %v3119 = vunpack.c.l.b16 %v2603
        %v3120 = vunpack.c.l.b16 %v2604
        %v3121 = vunpack.c.l.b16 %v2605
        %v3122 = vunpack.c.l.b16 %v2606
        %v3123 = vunpack.c.l.b16 %v2607
        %v3124 = vunpack.c.l.b16 %v2608
        %v3125 = vunpack.c.l.b16 %v2609
        %v3126 = vunpack.c.l.b16 %v2610
        %v3127 = vunpack.c.l.b16 %v2611
        %v3128 = vunpack.c.l.b16 %v2612
        %v3129 = vunpack.c.l.b16 %v2613
        %v3130 = vunpack.c.l.b16 %v2614
        %v3131 = vunpack.c.l.b16 %v2615
        %v3132 = vunpack.c.l.b16 %v2616
        %v3133 = vunpack.c.l.b16 %v2617
        %v3134 = vunpack.c.l.b16 %v2618
        %v3135 = vunpack.c.l.b16 %v2619
        %v3136 = vunpack.c.l.b16 %v2620
        %v3137 = vunpack.c.l.b16 %v2621
        %v3138 = vunpack.c.l.b16 %v2622
        %v3139 = vunpack.c.l.b16 %v2623
        %v3140 = vunpack.c.l.b16 %v2624
        %v3141 = vunpack.c.l.b16 %v2625
        %v3142 = vunpack.c.l.b16 %v2626
        %v3143 = vunpack.c.l.b16 %v2627
        %v3144 = vunpack.c.l.b16 %v2628
        %v3145 = vunpack.c.l.b16 %v2629
        %v3146 = vunpack.c.l.b16 %v2630
        %v3147 = vunpack.c.l.b16 %v2631
        %v3148 = vunpack.c.l.b16 %v2632
        %v3149 = vunpack.c.l.b16 %v2633
        %v3150 = vunpack.c.l.b16 %v2634
        %v3151 = vunpack.c.l.b16 %v2635
        %v3152 = vunpack.c.l.b16 %v2636
        %v3153 = vunpack.c.l.b16 %v2637
        %v3154 = vunpack.c.l.b16 %v2638
        %v3155 = vunpack.c.l.b16 %v2639
        %v3156 = vunpack.c.l.b16 %v2640
        %v3157 = vunpack.c.l.b16 %v2641
        %v3158 = vunpack.c.l.b16 %v2642
        %v3159 = vunpack.c.l.b16 %v2643
        %v3160 = vunpack.c.l.b16 %v2644
        %v3161 = vunpack.c.l.b16 %v2645
        %v3162 = vunpack.c.l.b16 %v2646
        %v3163 = vunpack.c.l.b16 %v2647
        %v3164 = vunpack.c.l.b16 %v2648
        %v3165 = vunpack.c.l.b16 %v2649
        %v3166 = vunpack.c.l.b16 %v2650
        %v3167 = vunpack.c.l.b16 %v2651
        %v3168 = vunpack.c.l.b16 %v2652
        %v3169 = vunpack.c.l.b16 %v2653
        %v3170 = vunpack.c.l.b16 %v2654
        %v3171 = vunpack.c.l.b16 %v2655
        %v3172 = vunpack.c.l.b16 %v2656
        %v3173 = vunpack.c.l.b16 %v2657
        %v3174 = vunpack.c.l.b16 %v2658
        %v3175 = vunpack.c.l.b16 %v2659
        %v3176 = vunpack.c.l.b16 %v2660
        %v3177 = vunpack.c.l.b16 %v2661
        %v3178 = vunpack.c.l.b16 %v2662
        %v3179 = vunpack.c.l.b16 %v2663
        %v3180 = vunpack.c.l.b16 %v2664
        %v3181 = vunpack.c.l.b16 %v2665
        %v3182 = vunpack.c.l.b16 %v2666
        %v3183 = vunpack.c.l.b16 %v2667
        %v3184 = vunpack.c.l.b16 %v2668
        %v3185 = vunpack.c.l.b16 %v2669
        %v3186 = vunpack.c.l.b16 %v2670
        %v3187 = vunpack.c.l.b16 %v2671
        %v3188 = vunpack.c.l.b16 %v2672
        %v3189 = vunpack.c.l.b16 %v2673
        %v3190 = vunpack.c.l.b16 %v2674
        %v3191 = vunpack.c.l.b16 %v2675
        %v3192 = vunpack.c.l.b16 %v2676
        %v3193 = vunpack.c.l.b16 %v2677
        %v3194 = vunpack.c.l.b16 %v2678
        %v3195 = vunpack.c.l.b16 %v2679
        %v3196 = vunpack.c.l.b16 %v2680
        %v3197 = vunpack.c.l.b16 %v2681
        %v3198 = vunpack.c.l.b16 %v2682
        %v3199 = vunpack.c.l.b16 %v2683
        %v3200 = vunpack.c.l.b16 %v2684
        %v3201 = vunpack.c.l.b16 %v2685
        %v3202 = vunpack.c.l.b16 %v2686
        %v3203 = vunpack.c.l.b16 %v2687
        %v3204 = vunpack.c.l.b16 %v2688
        %v3205 = vunpack.c.l.b16 %v2689
        %v3206 = vunpack.c.l.b16 %v2690
        %v3207 = vunpack.c.l.b16 %v2691
        %v3208 = vunpack.c.l.b16 %v2692
        %v3209 = vunpack.c.l.b16 %v2693
        %v3210 = vunpack.c.l.b16 %v2694
        %v3211 = vunpack.c.l.b16 %v2695
        %v3212 = vunpack.c.l.b16 %v2696
        %v3213 = vunpack.c.l.b16 %v2697
        %v3214 = vunpack.c.l.b16 %v2698
        %v3215 = vunpack.c.l.b16 %v2699
        %v3216 = vunpack.c.l.b16 %v2700
        %v3217 = vunpack.c.l.b16 %v2701
        %v3218 = vunpack.c.l.b16 %v2702
        %v3219 = vunpack.c.l.b16 %v2703
        %v3220 = vunpack.c.l.b16 %v2704
        %v3221 = vunpack.c.l.b16 %v2705
        %v3222 = vunpack.c.l.b16 %v2706
        %v3223 = vunpack.c.l.b16 %v2707
        %v3224 = vunpack.c.l.b16 %v2708
        %v3225 = vunpack.c.l.b16 %v2709
        %v3226 = vunpack.c.l.b16 %v2710
        %v3227 = vunpack.c.l.b16 %v2711
        %v3228 = vunpack.c.l.b16 %v2712
        %v3229 = vunpack.c.l.b16 %v2713
        %v3230 = vunpack.c.l.b16 %v2714
        %v3231 = vunpack.c.l.b16 %v2715
        %v3232 = vunpack.c.l.b16 %v2716
        %v3233 = vunpack.c.l.b16 %v2717
        %v3234 = vunpack.c.l.b16 %v2718
        %v3235 = vunpack.c.l.b16 %v2719
        %v3236 = vunpack.c.l.b16 %v2720
        %v3237 = vunpack.c.l.b16 %v2721
        %v3238 = vunpack.c.l.b16 %v2722
        %v3239 = vunpack.c.l.b16 %v2723
        %v3240 = vunpack.c.l.b16 %v2724
        %v3241 = vunpack.c.l.b16 %v2725
        %v3242 = vunpack.c.l.b16 %v2726
        %v3243 = vunpack.c.l.b16 %v2727
        %v3244 = vunpack.c.l.b16 %v2728
        %v3245 = vunpack.c.l.b16 %v2729
        %v3246 = vunpack.c.l.b16 %v2730
        %v3247 = vunpack.c.l.b16 %v2731
        %v3248 = vunpack.c.l.b16 %v2732
        %v3249 = vunpack.c.l.b16 %v2733
        %v3250 = vunpack.c.l.b16 %v2734
        %v3251 = vunpack.c.l.b16 %v2735
        %v3252 = vunpack.c.l.b16 %v2736
        %v3253 = vunpack.c.l.b16 %v2737
        %v3254 = vunpack.c.l.b16 %v2738
        %v3255 = vunpack.c.l.b16 %v2739
        %v3256 = vunpack.c.l.b16 %v2740
        %v3257 = vunpack.c.l.b16 %v2741
        %v3258 = vunpack.c.l.b16 %v2742
        %v3259 = vunpack.c.l.b16 %v2743
        %v3260 = vunpack.c.l.b16 %v2744
        %v3261 = vunpack.c.l.b16 %v2745
        %v3262 = vunpack.c.l.b16 %v2746
        %v3263 = vunpack.c.l.b16 %v2747
        %v3264 = vunpack.c.l.b16 %v2748
        %v3265 = vunpack.c.l.b16 %v2749
        %v3266 = vunpack.c.l.b16 %v2750
        %v3267 = vpack.c.b16 %v3012, %v3011
        %v3268 = vpack.c.b16 %v3014, %v3013
        %v3269 = vpack.c.b16 %v3016, %v3015
        %v3270 = vpack.c.b16 %v3018, %v3017
        %v3271 = vpack.c.b16 %v3020, %v3019
        %v3272 = vpack.c.b16 %v3022, %v3021
        %v3273 = vpack.c.b16 %v3024, %v3023
        %v3274 = vpack.c.b16 %v3026, %v3025
        %v3275 = vpack.c.b16 %v3028, %v3027
        %v3276 = vpack.c.b16 %v3030, %v3029
        %v3277 = vpack.c.b16 %v3032, %v3031
        %v3278 = vpack.c.b16 %v3034, %v3033
        %v3279 = vpack.c.b16 %v3036, %v3035
        %v3280 = vpack.c.b16 %v3038, %v3037
        %v3281 = vpack.c.b16 %v3040, %v3039
        %v3282 = vpack.c.b16 %v3042, %v3041
        %v3283 = vpack.c.b16 %v3044, %v3043
        %v3284 = vpack.c.b16 %v3046, %v3045
        %v3285 = vpack.c.b16 %v3048, %v3047
        %v3286 = vpack.c.b16 %v3050, %v3049
        %v3287 = vpack.c.b16 %v3052, %v3051
        %v3288 = vpack.c.b16 %v3054, %v3053
        %v3289 = vpack.c.b16 %v3056, %v3055
        %v3290 = vpack.c.b16 %v3058, %v3057
        %v3291 = vpack.c.b16 %v3060, %v3059
        %v3292 = vpack.c.b16 %v3062, %v3061
        %v3293 = vpack.c.b16 %v3064, %v3063
        %v3294 = vpack.c.b16 %v3066, %v3065
        %v3295 = vpack.c.b16 %v3068, %v3067
        %v3296 = vpack.c.b16 %v3070, %v3069
        %v3297 = vpack.c.b16 %v3072, %v3071
        %v3298 = vpack.c.b16 %v3074, %v3073
        %v3299 = vpack.c.b16 %v3076, %v3075
        %v3300 = vpack.c.b16 %v3078, %v3077
        %v3301 = vpack.c.b16 %v3080, %v3079
        %v3302 = vpack.c.b16 %v3082, %v3081
        %v3303 = vpack.c.b16 %v3084, %v3083
        %v3304 = vpack.c.b16 %v3086, %v3085
        %v3305 = vpack.c.b16 %v3088, %v3087
        %v3306 = vpack.c.b16 %v3090, %v3089
        %v3307 = vpack.c.b16 %v3092, %v3091
        %v3308 = vpack.c.b16 %v3094, %v3093
        %v3309 = vpack.c.b16 %v3096, %v3095
        %v3310 = vpack.c.b16 %v3098, %v3097
        %v3311 = vpack.c.b16 %v3100, %v3099
        %v3312 = vpack.c.b16 %v3102, %v3101
        %v3313 = vpack.c.b16 %v3104, %v3103
        %v3314 = vpack.c.b16 %v3106, %v3105
        %v3315 = vpack.c.b16 %v3108, %v3107
        %v3316 = vpack.c.b16 %v3110, %v3109
        %v3317 = vpack.c.b16 %v3112, %v3111
        %v3318 = vpack.c.b16 %v3114, %v3113
        %v3319 = vpack.c.b16 %v3116, %v3115
        %v3320 = vpack.c.b16 %v3118, %v3117
        %v3321 = vpack.c.b16 %v3120, %v3119
        %v3322 = vpack.c.b16 %v3122, %v3121
        %v3323 = vpack.c.b16 %v3124, %v3123
        %v3324 = vpack.c.b16 %v3126, %v3125
        %v3325 = vpack.c.b16 %v3128, %v3127
        %v3326 = vpack.c.b16 %v3130, %v3129
        %v3327 = vpack.c.b16 %v3132, %v3131
        %v3328 = vpack.c.b16 %v3134, %v3133
        %v3329 = vpack.c.b16 %v3136, %v3135
        %v3330 = vpack.c.b16 %v3138, %v3137
        %v3331 = vpack.c.b16 %v3140, %v3139
        %v3332 = vpack.c.b16 %v3142, %v3141
        %v3333 = vpack.c.b16 %v3144, %v3143
        %v3334 = vpack.c.b16 %v3146, %v3145
        %v3335 = vpack.c.b16 %v3148, %v3147
        %v3336 = vpack.c.b16 %v3150, %v3149
        %v3337 = vpack.c.b16 %v3152, %v3151
        %v3338 = vpack.c.b16 %v3154, %v3153
        %v3339 = vpack.c.b16 %v3156, %v3155
        %v3340 = vpack.c.b16 %v3158, %v3157
        %v3341 = vpack.c.b16 %v3160, %v3159
        %v3342 = vpack.c.b16 %v3162, %v3161
        %v3343 = vpack.c.b16 %v3164, %v3163
        %v3344 = vpack.c.b16 %v3166, %v3165
        %v3345 = vpack.c.b16 %v3168, %v3167
        %v3346 = vpack.c.b16 %v3170, %v3169
        %v3347 = vpack.c.b16 %v3172, %v3171
        %v3348 = vpack.c.b16 %v3174, %v3173
        %v3349 = vpack.c.b16 %v3176, %v3175
        %v3350 = vpack.c.b16 %v3178, %v3177
        %v3351 = vpack.c.b16 %v3180, %v3179
        %v3352 = vpack.c.b16 %v3182, %v3181
        %v3353 = vpack.c.b16 %v3184, %v3183
        %v3354 = vpack.c.b16 %v3186, %v3185
        %v3355 = vpack.c.b16 %v3188, %v3187
        %v3356 = vpack.c.b16 %v3190, %v3189
        %v3357 = vpack.c.b16 %v3192, %v3191
        %v3358 = vpack.c.b16 %v3194, %v3193
        %v3359 = vpack.c.b16 %v3196, %v3195
        %v3360 = vpack.c.b16 %v3198, %v3197
        %v3361 = vpack.c.b16 %v3200, %v3199
        %v3362 = vpack.c.b16 %v3202, %v3201
        %v3363 = vpack.c.b16 %v3204, %v3203
        %v3364 = vpack.c.b16 %v3206, %v3205
        %v3365 = vpack.c.b16 %v3208, %v3207
        %v3366 = vpack.c.b16 %v3210, %v3209
        %v3367 = vpack.c.b16 %v3212, %v3211
        %v3368 = vpack.c.b16 %v3214, %v3213
        %v3369 = vpack.c.b16 %v3216, %v3215
        %v3370 = vpack.c.b16 %v3218, %v3217
        %v3371 = vpack.c.b16 %v3220, %v3219
        %v3372 = vpack.c.b16 %v3222, %v3221
        %v3373 = vpack.c.b16 %v3224, %v3223
        %v3374 = vpack.c.b16 %v3226, %v3225
        %v3375 = vpack.c.b16 %v3228, %v3227
        %v3376 = vpack.c.b16 %v3230, %v3229
        %v3377 = vpack.c.b16 %v3232, %v3231
        %v3378 = vpack.c.b16 %v3234, %v3233
        %v3379 = vpack.c.b16 %v3236, %v3235
        %v3380 = vpack.c.b16 %v3238, %v3237
        %v3381 = vpack.c.b16 %v3240, %v3239
        %v3382 = vpack.c.b16 %v3242, %v3241
        %v3383 = vpack.c.b16 %v3244, %v3243
        %v3384 = vpack.c.b16 %v3246, %v3245
        %v3385 = vpack.c.b16 %v3248, %v3247
        %v3386 = vpack.c.b16 %v3250, %v3249
        %v3387 = vpack.c.b16 %v3252, %v3251
        %v3388 = vpack.c.b16 %v3254, %v3253
        %v3389 = vpack.c.b16 %v3256, %v3255
        %v3390 = vpack.c.b16 %v3258, %v3257
        %v3391 = vpack.c.b16 %v3260, %v3259
        %v3392 = vpack.c.b16 %v3262, %v3261
        %v3393 = vpack.c.b16 %v3264, %v3263
        %v3394 = vpack.c.b16 %v3266, %v3265
        %3523 = vmatpush.bf16.msra.mxu0 %v3274
        %3524 = vmatpush.bf16.msra.mxu0 %v3273
        %3525 = vmatpush.bf16.msra.mxu0 %v3272
        %3526 = vmatpush.bf16.msra.mxu0 %v3271
        %3527 = vmatpush.bf16.msra.mxu0 %v3270
        %3528 = vmatpush.bf16.msra.mxu0 %v3269
        %3529 = vmatpush.bf16.msra.mxu0 %v3268
        %3530 = vmatpush.bf16.msra.mxu0 %v3267
        %3531 = vmatmul.bf16.gmra.mxu0 %v2479
        %v3532 = vpop.f32.mrf.mxu0
        %v3533 = vadd.f32 %v2753, %v3532
        %v3534 = vpop.f32.mrf.mxu0
        %v3535 = vadd.f32 %v2753, %v3534
        %3536 = vdwg.mxu0
        %3537 = vmatpush.bf16.msra.mxu0 %v3282
        %3538 = vmatpush.bf16.msra.mxu0 %v3281
        %3539 = vmatpush.bf16.msra.mxu0 %v3280
        %3540 = vmatpush.bf16.msra.mxu0 %v3279
        %3541 = vmatpush.bf16.msra.mxu0 %v3278
        %3542 = vmatpush.bf16.msra.mxu0 %v3277
        %3543 = vmatpush.bf16.msra.mxu0 %v3276
        %3544 = vmatpush.bf16.msra.mxu0 %v3275
        %3545 = vmatmul.bf16.gmra.mxu0 %v2480
        %v3546 = vpop.f32.mrf.mxu0
        %v3547 = vadd.f32 %v3533, %v3546
        %v3548 = vpop.f32.mrf.mxu0
        %v3549 = vadd.f32 %v3535, %v3548
        %3550 = vdwg.mxu0
        %3551 = vmatpush.bf16.msra.mxu0 %v3290
        %3552 = vmatpush.bf16.msra.mxu0 %v3289
        %3553 = vmatpush.bf16.msra.mxu0 %v3288
        %3554 = vmatpush.bf16.msra.mxu0 %v3287
        %3555 = vmatpush.bf16.msra.mxu0 %v3286
        %3556 = vmatpush.bf16.msra.mxu0 %v3285
        %3557 = vmatpush.bf16.msra.mxu0 %v3284
        %3558 = vmatpush.bf16.msra.mxu0 %v3283
        %3559 = vmatmul.bf16.gmra.mxu0 %v2481
        %v3560 = vpop.f32.mrf.mxu0
        %v3561 = vadd.f32 %v3547, %v3560
        %v3562 = vpop.f32.mrf.mxu0
        %v3563 = vadd.f32 %v3549, %v3562
        %3564 = vdwg.mxu0
        %3565 = vmatpush.bf16.msra.mxu0 %v3298
        %3566 = vmatpush.bf16.msra.mxu0 %v3297
        %3567 = vmatpush.bf16.msra.mxu0 %v3296
        %3568 = vmatpush.bf16.msra.mxu0 %v3295
        %3569 = vmatpush.bf16.msra.mxu0 %v3294
        %3570 = vmatpush.bf16.msra.mxu0 %v3293
        %3571 = vmatpush.bf16.msra.mxu0 %v3292
        %3572 = vmatpush.bf16.msra.mxu0 %v3291
        %3573 = vmatmul.bf16.gmra.mxu0 %v2482
        %v3574 = vpop.f32.mrf.mxu0
        %v3575 = vadd.f32 %v3561, %v3574
        %v3576 = vpop.f32.mrf.mxu0
        %v3577 = vadd.f32 %v3563, %v3576
        %3578 = vdwg.mxu0
        %3579 = vmatpush.bf16.msra.mxu0 %v3306
        %3580 = vmatpush.bf16.msra.mxu0 %v3305
        %3581 = vmatpush.bf16.msra.mxu0 %v3304
        %3582 = vmatpush.bf16.msra.mxu0 %v3303
        %3583 = vmatpush.bf16.msra.mxu0 %v3302
        %3584 = vmatpush.bf16.msra.mxu0 %v3301
        %3585 = vmatpush.bf16.msra.mxu0 %v3300
        %3586 = vmatpush.bf16.msra.mxu0 %v3299
        %3587 = vmatmul.bf16.gmra.mxu0 %v2483
        %v3588 = vpop.f32.mrf.mxu0
        %v3589 = vadd.f32 %v3575, %v3588
        %v3590 = vpop.f32.mrf.mxu0
        %v3591 = vadd.f32 %v3577, %v3590
        %3592 = vdwg.mxu0
        %3593 = vmatpush.bf16.msra.mxu0 %v3314
        %3594 = vmatpush.bf16.msra.mxu0 %v3313
        %3595 = vmatpush.bf16.msra.mxu0 %v3312
        %3596 = vmatpush.bf16.msra.mxu0 %v3311
        %3597 = vmatpush.bf16.msra.mxu0 %v3310
        %3598 = vmatpush.bf16.msra.mxu0 %v3309
        %3599 = vmatpush.bf16.msra.mxu0 %v3308
        %3600 = vmatpush.bf16.msra.mxu0 %v3307
        %3601 = vmatmul.bf16.gmra.mxu0 %v2484
        %v3602 = vpop.f32.mrf.mxu0
        %v3603 = vadd.f32 %v3589, %v3602
        %v3604 = vpop.f32.mrf.mxu0
        %v3605 = vadd.f32 %v3591, %v3604
        %3606 = vdwg.mxu0
        %3607 = vmatpush.bf16.msra.mxu0 %v3322
        %3608 = vmatpush.bf16.msra.mxu0 %v3321
        %3609 = vmatpush.bf16.msra.mxu0 %v3320
        %3610 = vmatpush.bf16.msra.mxu0 %v3319
        %3611 = vmatpush.bf16.msra.mxu0 %v3318
        %3612 = vmatpush.bf16.msra.mxu0 %v3317
        %3613 = vmatpush.bf16.msra.mxu0 %v3316
        %3614 = vmatpush.bf16.msra.mxu0 %v3315
        %3615 = vmatmul.bf16.gmra.mxu0 %v2485
        %v3616 = vpop.f32.mrf.mxu0
        %v3617 = vadd.f32 %v3603, %v3616
        %v3618 = vpop.f32.mrf.mxu0
        %v3619 = vadd.f32 %v3605, %v3618
        %3620 = vdwg.mxu0
        %3621 = vmatpush.bf16.msra.mxu0 %v3330
        %3622 = vmatpush.bf16.msra.mxu0 %v3329
        %3623 = vmatpush.bf16.msra.mxu0 %v3328
        %3624 = vmatpush.bf16.msra.mxu0 %v3327
        %3625 = vmatpush.bf16.msra.mxu0 %v3326
        %3626 = vmatpush.bf16.msra.mxu0 %v3325
        %3627 = vmatpush.bf16.msra.mxu0 %v3324
        %3628 = vmatpush.bf16.msra.mxu0 %v3323
        %3629 = vmatmul.bf16.gmra.mxu0 %v2486
        %v3630 = vpop.f32.mrf.mxu0
        %v3631 = vadd.f32 %v3617, %v3630
        %v3632 = vpop.f32.mrf.mxu0
        %v3633 = vadd.f32 %v3619, %v3632
        %3634 = vdwg.mxu0
        %3635 = vmatpush.bf16.msra.mxu0 %v3338
        %3636 = vmatpush.bf16.msra.mxu0 %v3337
        %3637 = vmatpush.bf16.msra.mxu0 %v3336
        %3638 = vmatpush.bf16.msra.mxu0 %v3335
        %3639 = vmatpush.bf16.msra.mxu0 %v3334
        %3640 = vmatpush.bf16.msra.mxu0 %v3333
        %3641 = vmatpush.bf16.msra.mxu0 %v3332
        %3642 = vmatpush.bf16.msra.mxu0 %v3331
        %3643 = vmatmul.bf16.gmra.mxu0 %v2487
        %v3644 = vpop.f32.mrf.mxu0
        %v3645 = vadd.f32 %v3631, %v3644
        %v3646 = vpop.f32.mrf.mxu0
        %v3647 = vadd.f32 %v3633, %v3646
        %3648 = vdwg.mxu0
        %3649 = vmatpush.bf16.msra.mxu0 %v3346
        %3650 = vmatpush.bf16.msra.mxu0 %v3345
        %3651 = vmatpush.bf16.msra.mxu0 %v3344
        %3652 = vmatpush.bf16.msra.mxu0 %v3343
        %3653 = vmatpush.bf16.msra.mxu0 %v3342
        %3654 = vmatpush.bf16.msra.mxu0 %v3341
        %3655 = vmatpush.bf16.msra.mxu0 %v3340
        %3656 = vmatpush.bf16.msra.mxu0 %v3339
        %3657 = vmatmul.bf16.gmra.mxu0 %v2488
        %v3658 = vpop.f32.mrf.mxu0
        %v3659 = vadd.f32 %v3645, %v3658
        %v3660 = vpop.f32.mrf.mxu0
        %v3661 = vadd.f32 %v3647, %v3660
        %3662 = vdwg.mxu0
        %3663 = vmatpush.bf16.msra.mxu0 %v3354
        %3664 = vmatpush.bf16.msra.mxu0 %v3353
        %3665 = vmatpush.bf16.msra.mxu0 %v3352
        %3666 = vmatpush.bf16.msra.mxu0 %v3351
        %3667 = vmatpush.bf16.msra.mxu0 %v3350
        %3668 = vmatpush.bf16.msra.mxu0 %v3349
        %3669 = vmatpush.bf16.msra.mxu0 %v3348
        %3670 = vmatpush.bf16.msra.mxu0 %v3347
        %3671 = vmatmul.bf16.gmra.mxu0 %v2489
        %v3672 = vpop.f32.mrf.mxu0
        %v3673 = vadd.f32 %v3659, %v3672
        %v3674 = vpop.f32.mrf.mxu0
        %v3675 = vadd.f32 %v3661, %v3674
        %3676 = vdwg.mxu0
        %3677 = vmatpush.bf16.msra.mxu0 %v3362
        %3678 = vmatpush.bf16.msra.mxu0 %v3361
        %3679 = vmatpush.bf16.msra.mxu0 %v3360
        %3680 = vmatpush.bf16.msra.mxu0 %v3359
        %3681 = vmatpush.bf16.msra.mxu0 %v3358
        %3682 = vmatpush.bf16.msra.mxu0 %v3357
        %3683 = vmatpush.bf16.msra.mxu0 %v3356
        %3684 = vmatpush.bf16.msra.mxu0 %v3355
        %3685 = vmatmul.bf16.gmra.mxu0 %v2490
        %v3686 = vpop.f32.mrf.mxu0
        %v3687 = vadd.f32 %v3673, %v3686
        %v3688 = vpop.f32.mrf.mxu0
        %v3689 = vadd.f32 %v3675, %v3688
        %3690 = vdwg.mxu0
        %3691 = vmatpush.bf16.msra.mxu0 %v3370
        %3692 = vmatpush.bf16.msra.mxu0 %v3369
        %3693 = vmatpush.bf16.msra.mxu0 %v3368
        %3694 = vmatpush.bf16.msra.mxu0 %v3367
        %3695 = vmatpush.bf16.msra.mxu0 %v3366
        %3696 = vmatpush.bf16.msra.mxu0 %v3365
        %3697 = vmatpush.bf16.msra.mxu0 %v3364
        %3698 = vmatpush.bf16.msra.mxu0 %v3363
        %3699 = vmatmul.bf16.gmra.mxu0 %v2491
        %v3700 = vpop.f32.mrf.mxu0
        %v3701 = vadd.f32 %v3687, %v3700
        %v3702 = vpop.f32.mrf.mxu0
        %v3703 = vadd.f32 %v3689, %v3702
        %3704 = vdwg.mxu0
        %3705 = vmatpush.bf16.msra.mxu0 %v3378
        %3706 = vmatpush.bf16.msra.mxu0 %v3377
        %3707 = vmatpush.bf16.msra.mxu0 %v3376
        %3708 = vmatpush.bf16.msra.mxu0 %v3375
        %3709 = vmatpush.bf16.msra.mxu0 %v3374
        %3710 = vmatpush.bf16.msra.mxu0 %v3373
        %3711 = vmatpush.bf16.msra.mxu0 %v3372
        %3712 = vmatpush.bf16.msra.mxu0 %v3371
        %3713 = vmatmul.bf16.gmra.mxu0 %v2492
        %v3714 = vpop.f32.mrf.mxu0
        %v3715 = vadd.f32 %v3701, %v3714
        %v3716 = vpop.f32.mrf.mxu0
        %v3717 = vadd.f32 %v3703, %v3716
        %3718 = vdwg.mxu0
        %3719 = vmatpush.bf16.msra.mxu0 %v3386
        %3720 = vmatpush.bf16.msra.mxu0 %v3385
        %3721 = vmatpush.bf16.msra.mxu0 %v3384
        %3722 = vmatpush.bf16.msra.mxu0 %v3383
        %3723 = vmatpush.bf16.msra.mxu0 %v3382
        %3724 = vmatpush.bf16.msra.mxu0 %v3381
        %3725 = vmatpush.bf16.msra.mxu0 %v3380
        %3726 = vmatpush.bf16.msra.mxu0 %v3379
        %3727 = vmatmul.bf16.gmra.mxu0 %v2493
        %v3728 = vpop.f32.mrf.mxu0
        %v3729 = vadd.f32 %v3715, %v3728
        %v3730 = vpop.f32.mrf.mxu0
        %v3731 = vadd.f32 %v3717, %v3730
        %3732 = vdwg.mxu0
        %3733 = vmatpush.bf16.msra.mxu0 %v3394
        %3734 = vmatpush.bf16.msra.mxu0 %v3393
        %3735 = vmatpush.bf16.msra.mxu0 %v3392
        %3736 = vmatpush.bf16.msra.mxu0 %v3391
        %3737 = vmatpush.bf16.msra.mxu0 %v3390
        %3738 = vmatpush.bf16.msra.mxu0 %v3389
        %3739 = vmatpush.bf16.msra.mxu0 %v3388
        %3740 = vmatpush.bf16.msra.mxu0 %v3387
        %3741 = vmatmul.bf16.gmra.mxu0 %v2494
        %v3742 = vpop.f32.mrf.mxu0
        %v3743 = vadd.f32 %v3729, %v3742
        %v3744 = vpop.f32.mrf.mxu0
        %v3745 = vadd.f32 %v3731, %v3744
        %3746 = vdwg.mxu0
        %v3747 = vadd.f32 %v1797, %v3743
        %v3748 = vadd.f32 %v1798, %v3745
        %v3749 = vld [vmem:[%s952] sm:$0x1]
        %v3750 = vld [vmem:[%s955] sm:$0x1]
        %v3751 = vsel %vm1233, %v3747, 0.0
        %3752 = vadd.xlane.f32.xlu0 %v3751
        %v3753 = vpop.xlane.xlu0 %3752
        %v3754 = vsel %vm1233, %v3748, 0.0
        %3755 = vadd.xlane.f32.xlu0 %v3754
        %v3756 = vpop.xlane.xlu0 %3755
        %v3757 = vmul.f32 %v3753, %v1746
        %v3758 = vmul.f32 %v3756, %v1746
        %v3759 = vmul.f32 %v3747, %v3747
        %v3760 = vmul.f32 %v3748, %v3748
        %v3761 = vsel %vm1233, %v3759, 0.0
        %3762 = vadd.xlane.f32.xlu0 %v3761
        %v3763 = vpop.xlane.xlu0 %3762
        %v3764 = vsel %vm1233, %v3760, 0.0
        %3765 = vadd.xlane.f32.xlu0 %v3764
        %v3766 = vpop.xlane.xlu0 %3765
        %v3767 = vmul.f32 %v3763, %v1746
        %v3768 = vmul.f32 %v3766, %v1746
        %v3769 = vmul.f32 %v3757, %v3757
        %v3770 = vmul.f32 %v3758, %v3758
        %v3771 = vsub.f32 %v3767, %v3769
        %v3772 = vsub.f32 %v3768, %v3770
        %v3773 = vsub.f32 %v3747, %v3757
        %v3774 = vsub.f32 %v3748, %v3758
        %v3775 = vadd.f32 %v3771, 1e-05
        %v3776 = vadd.f32 %v3772, 1e-05
        %v3777 = vrsqrt.pop %v3775
        %v3778 = vmul.f32 %v3777, %v3775
        %v3779 = vmul.f32 %v3778, %v3777
        %v3780 = vmul.f32 0.5, %v3779
        %v3781 = vsub.f32 1.5, %v3780
        %v3782 = vmul.f32 %v3777, %v3781
        %vm3783 = vweird.f32 %v3775
        %vm3784 = vweird.f32 %v3777
        %vm3785 = vmor %vm3783, %vm3784
        %v3786 = vsel %vm3785, %v3777, %v3782
        %v3787 = vrsqrt.pop %v3776
        %v3788 = vmul.f32 %v3787, %v3776
        %v3789 = vmul.f32 %v3788, %v3787
        %v3790 = vmul.f32 0.5, %v3789
        %v3791 = vsub.f32 1.5, %v3790
        %v3792 = vmul.f32 %v3787, %v3791
        %vm3793 = vweird.f32 %v3776
        %vm3794 = vweird.f32 %v3787
        %vm3795 = vmor %vm3793, %vm3794
        %v3796 = vsel %vm3795, %v3787, %v3792
        %v3797 = vmul.f32 %v3773, %v3786
        %v3798 = vmul.f32 %v3774, %v3796
        %v3800 = vperm.slane %v3749, 0
        %v3802 = vmul.f32 %v3797, %v3800
        %v3803 = vmul.f32 %v3798, %v3800
        %v3805 = vperm.slane %v3750, 0
        %v3807 = vadd.f32 %v3802, %v3805
        %v3808 = vadd.f32 %v3803, %v3805
        %3809 = vst.msk [vmem:[#allocation2] sm:$0xff] %vm1233, %v3807
        %3810 = vst.msk [vmem:[#allocation2 + $0x8] sm:$0xff] %vm1233, %v3808
        %p3811 = scmp.eq.s32.totalorder %s38, 2
        // Predicated region
        $region129: #{pure_transformer_forward.1} parent=123 // pred_check
          %p3812 = pneg %p3811
        $region130: #{pure_transformer_forward.1} parent=123 // pred_check_branch
          %3814 = sbr.rel (%p3812) target = $region132
        $region131: #{pure_transformer_forward.1} parent=123 // pred_region
          %v3815 = vld [vmem:[%s3] sm:$0x3]
          %v3817 = vsel %vm1271, %v3815, 0
          %3819 = vmatpush.msra.mxu0 0.0
          %3820 = vmatpush.msra.mxu0 0.0
          %3821 = vmatpush.msra.mxu0 0.0
          %3822 = vmatpush.msra.mxu0 0.0
          %3823 = vmatpush.msra.mxu0 0.0
          %3824 = vmatpush.msra.mxu0 0.0
          %3825 = vmatpush.msra.mxu0 0.0
          %3826 = vmatpush.msra.mxu0 0.0
          %3827 = vmatpush.msra.mxu0 0.0
          %3828 = vmatpush.msra.mxu0 0.0
          %3829 = vmatpush.msra.mxu0 0.0
          %3830 = vmatpush.msra.mxu0 0.0
          %3831 = vmatpush.msra.mxu0 0.0
          %3832 = vmatpush.msra.mxu0 0.0
          %3833 = vmatpush.msra.mxu0 %v3808
          %3834 = vmatpush.msra.mxu0 %v3807
          %3835 = vmatmul.f32.gmra.mxu0 %v3817
          %v3836 = vpop.f32.mrf.mxu0
          %v3837 = vadd.f32 0.0, %v3836
          %3838 = vdwg.mxu0
          %v3839 = vpack.c.bf16 %v3837, %v3837
          %v3840 = vld [vmem:[%s24] sm:$0xf]
          %v3841 = vld [vmem:[%s24 + $0x4] sm:$0xf]
          %v3842 = vld [vmem:[%s24 + $0x8] sm:$0xf]
          %v3843 = vld [vmem:[%s24 + $0xc] sm:$0xf]
          %v3844 = vld [vmem:[%s24 + $0x10] sm:$0xf]
          %v3845 = vld [vmem:[%s24 + $0x14] sm:$0xf]
          %v3846 = vld [vmem:[%s24 + $0x18] sm:$0xf]
          %v3847 = vld [vmem:[%s24 + $0x1c] sm:$0xf]
          %v3848 = vld [vmem:[%s25] sm:$0x1]
          %v3850 = vperm.slane %v3848, 0
          %v3860 = vunpack.c.l.b16 %v3840
          %v3861 = vunpack.c.l.b16 %v3841
          %v3862 = vunpack.c.l.b16 %v3842
          %v3863 = vunpack.c.l.b16 %v3843
          %v3864 = vunpack.c.l.b16 %v3844
          %v3865 = vunpack.c.l.b16 %v3845
          %v3866 = vunpack.c.l.b16 %v3846
          %v3867 = vunpack.c.l.b16 %v3847
          %v3868 = vpack.c.b16 %v3861, %v3860
          %v3869 = vpack.c.b16 %v3863, %v3862
          %v3870 = vpack.c.b16 %v3865, %v3864
          %v3871 = vpack.c.b16 %v3867, %v3866
          %v3877 = vsel %vm1233, %v3839, 0
          %3879 = vmatpush.bf16.msra.mxu0 0
          %3880 = vmatpush.bf16.msra.mxu0 0
          %3881 = vmatpush.bf16.msra.mxu0 0
          %3882 = vmatpush.bf16.msra.mxu0 0
          %3883 = vmatpush.bf16.msra.mxu0 %v3871
          %3884 = vmatpush.bf16.msra.mxu0 %v3870
          %3885 = vmatpush.bf16.msra.mxu0 %v3869
          %3886 = vmatpush.bf16.msra.mxu0 %v3868
          %3887 = vmatmul.bf16.gmra.mxu0 %v3877
          %v3888 = vpop.f32.mrf.mxu0
          %v3889 = vadd.f32 %v3850, %v3888
          %v3890 = vpop.f32.mrf.mxu0
          %3891 = vdwg.mxu0
          %3892 = vst [vmem:[#allocation3] sm:$0x3] %v3889
        $region132: #{pure_transformer_forward.1} parent=123 // pred_fallthru
          _
        // Predicated region
        $region133: #{pure_transformer_forward.1} parent=123 // pred_check
          %p3893 = pneg %p657
        $region134: #{pure_transformer_forward.1} parent=123 // pred_check_branch
          %3895 = sbr.rel (%p3893) target = $region136
        $region135: #{pure_transformer_forward.1} parent=123 // pred_region
          %3897 = vsyncadd [#allocation4], 0
          %s3899 = sshll.u32 [#allocation3], 4
          %s3900 = int_to_ptr.vmem [resolvable:$true] %s3899
          %s3901 = sshll.u32 %s26, 4
          %s3902 = int_to_ptr.hbm [resolvable:$true] %s3901
          %3904 = dma.vmem_to_hbm [thread:$0]  %s3900, 32, %s3902, [#allocation4]
        $region136: #{pure_transformer_forward.1} parent=123 // pred_fallthru
          _
        // Predicated region
        $region137: #{pure_transformer_forward.1} parent=123 // pred_check
          %p3905 = pneg %p657
        $region138: #{pure_transformer_forward.1} parent=123 // pred_check_branch
          %3907 = sbr.rel (%p3905) target = $region140
        $region139: #{pure_transformer_forward.1} parent=123 // pred_region
          %3909 = dma.done [#allocation4], 32
        $region140: #{pure_transformer_forward.1} parent=123 // pred_fallthru
          _
      $region124: #{pure_transformer_forward.1} parent=5 // pred_fallthru
        _
      %p3910 = scmp.le.s32.totalorder 2, %s33
      // Predicated region
      $region141: #{pure_transformer_forward.1} parent=5 // pred_check
        %p3911 = pneg %p3910
      $region142: #{pure_transformer_forward.1} parent=5 // pred_check_branch
        %3913 = sbr.rel (%p3911) target = $region144
      $region143: #{pure_transformer_forward.1} parent=5 // pred_region
        %s3914 = ssub.s32 %s33, 2
      $region144: #{pure_transformer_forward.1} parent=5 // pred_fallthru
        _
    $region6: #{pure_transformer_forward.1} parent=1 // loop_footer
      %s37 = sadd.s32 1, %s33
    $region7: #{pure_transformer_forward.1} parent=1 // loop_footer_branch
      %32 = sbr.rel target = $region3
    $region8: #{pure_transformer_forward.1} parent=1 // loop_exit
      _
    %3915 = vsyncpa [#allocation4], 1
    %s3916 = scalar_lea.sflag [#allocation4], 1
    %3917 = vsyncpa %s3916, 1

</llo_original>
